<compile_context>
chip_gen: v6e
topology: v6e:2x2x1
jax: 0.10.0
libtpu: 0.0.40
codegen_flags: <defaults>
</compile_context>

<pallas_src>
import math
import functools

import jax
import jax.numpy as jnp
from jax.experimental import pallas as pl
from jax.experimental.pallas import tpu as pltpu


VMEM_LIMIT_BYTES = 32 * 1024 * 1024        # safe on v5e/v6e (128 MiB) and v7x (64 MiB)
_M_TILES = (256, 128, 64, 32, 16)          # sublane-dim tiles (16-multiples: bf16 friendly)
_KN_TILES = (512, 256, 128)                # lane / contraction tiles (MXU friendly)


def _round_up(x, m):
    return ((x + m - 1) // m) * m


def _pick_tile(dim, candidates):
    # Largest candidate that evenly divides `dim`, else the full dim (always legal).
    for c in candidates:
        if dim % c == 0:
            return c
    return dim


def _mosaic_params(dims):
    return pltpu.CompilerParams(dimension_semantics=dims,
                                vmem_limit_bytes=VMEM_LIMIT_BYTES)


# ----------------------------- Pallas kernels ------------------------------

def _linear_kernel(x_ref, w_ref, b_ref, o_ref, acc_ref, *, activation):
    """Tiled y = act(x @ W + b). Grid = (M/tm, N/tn, K/tk), f32 accumulator."""
    k = pl.program_id(2)

    @pl.when(k == 0)
    def _():
        acc_ref[...] = jnp.zeros_like(acc_ref)

    acc_ref[...] += jnp.dot(x_ref[...], w_ref[...],
                            preferred_element_type=jnp.float32)

    @pl.when(k == pl.num_programs(2) - 1)
    def _():
        y = acc_ref[...] + b_ref[...].astype(jnp.float32)
        if activation == "relu":
            y = jnp.maximum(y, 0.0)
        o_ref[...] = y.astype(o_ref.dtype)


def _linear_res_ln_kernel(x_ref, w_ref, b_ref, r_ref, g_ref, bt_ref,
                          o_ref, acc_ref, *, eps):
    """Tiled y = LayerNorm(residual + x @ W + b) * gamma + beta.
    Grid = (M/tm, K/tk); full feature dim D per block (needed for the row reduction)."""
    k = pl.program_id(1)

    @pl.when(k == 0)
    def _():
        acc_ref[...] = jnp.zeros_like(acc_ref)

    acc_ref[...] += jnp.dot(x_ref[...], w_ref[...],
                            preferred_element_type=jnp.float32)

    @pl.when(k == pl.num_programs(1) - 1)
    def _():
        y = (acc_ref[...] + b_ref[...].astype(jnp.float32)
             + r_ref[...].astype(jnp.float32))
        mean = jnp.mean(y, axis=-1, keepdims=True)
        var = jnp.mean(y * y, axis=-1, keepdims=True) - mean * mean  # single pass
        yn = (y - mean) * jax.lax.rsqrt(var + eps)
        o_ref[...] = (yn * g_ref[...].astype(jnp.float32)
                      + bt_ref[...].astype(jnp.float32)).astype(o_ref.dtype)


def _mha_core(q, kv, o_ref, *, num_heads, scale, causal):
    """q: (S, D) bf16, kv: (Skv, 2D) bf16 (K block then V block). Writes o_ref[0]=(S, D)."""
    S, D = q.shape
    Skv = kv.shape[0]
    dk = D // num_heads

    if causal:
        row = jax.lax.broadcasted_iota(jnp.int32, (S, Skv), 0)
        col = jax.lax.broadcasted_iota(jnp.int32, (S, Skv), 1)
        allow = row >= col

    outs = []
    for h in range(num_heads):
        qh = q[:, h * dk:(h + 1) * dk].astype(jnp.float32) * scale
        kh = kv[:, h * dk:(h + 1) * dk].astype(jnp.float32)
        vh = kv[:, D + h * dk:D + (h + 1) * dk]
        # contract last dims of both operands -> no materialized K transpose
        scores = jax.lax.dot_general(qh, kh, (((1,), (1,)), ((), ())),
                                     preferred_element_type=jnp.float32)
        if causal:
            scores = jnp.where(allow, scores, -1000000000.0)
        m = jnp.max(scores, axis=-1, keepdims=True)
        e = jnp.exp(scores - m)
        inv = pl.reciprocal(jnp.sum(e, axis=-1, keepdims=True), approx=True)
        probs = (e * inv).astype(vh.dtype)
        outs.append(jnp.dot(probs, vh, preferred_element_type=jnp.float32))
    # merged-head, lane-dense output store
    o_ref[0] = jnp.concatenate(outs, axis=-1).astype(o_ref.dtype)


def _self_attn_kernel(qkv_ref, o_ref, *, num_heads, scale, causal):
    qkv = qkv_ref[0]                    # (S, 3D)
    D = qkv.shape[-1] // 3
    _mha_core(qkv[:, :D], qkv[:, D:], o_ref,
              num_heads=num_heads, scale=scale, causal=causal)


def _cross_attn_kernel(q_ref, kv_ref, o_ref, *, num_heads, scale, causal):
    _mha_core(q_ref[0], kv_ref[0], o_ref,
              num_heads=num_heads, scale=scale, causal=causal)


# ------------------------------ thin wrappers -------------------------------

def linear(x2d, w, b, *, activation=None, out_dtype=jnp.bfloat16):
    M, K = x2d.shape
    N = w.shape[1]
    tm = _pick_tile(M, _M_TILES)
    tn = _pick_tile(N, _KN_TILES)
    tk = _pick_tile(K, _KN_TILES)
    return pl.pallas_call(
        functools.partial(_linear_kernel, activation=activation),
        out_shape=jax.ShapeDtypeStruct((M, N), out_dtype),
        grid=(M // tm, N // tn, K // tk),
        in_specs=[
            pl.BlockSpec((tm, tk), lambda i, j, k: (i, k)),
            pl.BlockSpec((tk, tn), lambda i, j, k: (k, j)),
            pl.BlockSpec((1, tn), lambda i, j, k: (0, j)),
        ],
        out_specs=pl.BlockSpec((tm, tn), lambda i, j, k: (i, j)),
        scratch_shapes=[pltpu.VMEM((tm, tn), jnp.float32)],
        compiler_params=_mosaic_params(("parallel", "parallel", "arbitrary")),
    )(x2d, w, b.reshape(1, N))


def linear_residual_layernorm(x2d, w, b, res2d, gamma, beta, *, eps=1e-5,
                              out_dtype=jnp.bfloat16):
    M, K = x2d.shape
    D = w.shape[1]
    tm = _pick_tile(M, _M_TILES)
    tk = _pick_tile(K, _KN_TILES)
    return pl.pallas_call(
        functools.partial(_linear_res_ln_kernel, eps=eps),
        out_shape=jax.ShapeDtypeStruct((M, D), out_dtype),
        grid=(M // tm, K // tk),
        in_specs=[
            pl.BlockSpec((tm, tk), lambda i, k: (i, k)),
            pl.BlockSpec((tk, D), lambda i, k: (k, 0)),
            pl.BlockSpec((1, D), lambda i, k: (0, 0)),
            pl.BlockSpec((tm, D), lambda i, k: (i, 0)),
            pl.BlockSpec((1, D), lambda i, k: (0, 0)),
            pl.BlockSpec((1, D), lambda i, k: (0, 0)),
        ],
        out_specs=pl.BlockSpec((tm, D), lambda i, k: (i, 0)),
        scratch_shapes=[pltpu.VMEM((tm, D), jnp.float32)],
        compiler_params=_mosaic_params(("parallel", "arbitrary")),
    )(x2d, w, b.reshape(1, D), res2d, gamma.reshape(1, D), beta.reshape(1, D))


def self_attention(qkv, num_heads, *, causal):
    # qkv: (B, S, 3D) bf16 (fused Q|K|V projection output, head-major inside each D block)
    B, S, D3 = qkv.shape
    D = D3 // 3
    dk = D // num_heads
    kernel = functools.partial(_self_attn_kernel, num_heads=num_heads,
                               scale=1.0 / math.sqrt(dk), causal=causal)
    # TODO(synk): for long sequences restructure as a flash-style online-softmax loop over
    # Skv tiles; at these sizes the full per-batch slab fits VMEM comfortably.
    return pl.pallas_call(
        kernel,
        out_shape=jax.ShapeDtypeStruct((B, S, D), jnp.bfloat16),
        grid=(B,),
        in_specs=[pl.BlockSpec((1, S, D3), lambda b: (b, 0, 0))],
        out_specs=pl.BlockSpec((1, S, D), lambda b: (b, 0, 0)),
        compiler_params=_mosaic_params(("parallel",)),
    )(qkv)


def cross_attention(q, kv, num_heads):
    # q: (B, S, D), kv: (B, Skv, 2D); no mask (cross_mask=None path)
    B, S, D = q.shape
    Skv = kv.shape[1]
    dk = D // num_heads
    kernel = functools.partial(_cross_attn_kernel, num_heads=num_heads,
                               scale=1.0 / math.sqrt(dk), causal=False)
    return pl.pallas_call(
        kernel,
        out_shape=jax.ShapeDtypeStruct((B, S, D), jnp.bfloat16),
        grid=(B,),
        in_specs=[pl.BlockSpec((1, S, D), lambda b: (b, 0, 0)),
                  pl.BlockSpec((1, Skv, 2 * D), lambda b: (b, 0, 0))],
        out_specs=pl.BlockSpec((1, S, D), lambda b: (b, 0, 0)),
        compiler_params=_mosaic_params(("parallel",)),
    )(q, kv)


# --------------------------------- forward ----------------------------------

def gpt_decoder_forward(params, tokens, enc_output, *, num_heads, causal_self=True):
    # TODO(synk): arbitrary user-supplied self/cross mask tensors are not plumbed through;
    # the causal self-mask / no cross-mask cases are generated in-kernel instead.
    B, S = tokens.shape
    d_model = params["token_emb"].shape[1]
    vocab_size = params["token_emb"].shape[0]
    Skv = enc_output.shape[1]

    x = params["token_emb"][tokens] + params["pos_emb"][:S][None, :, :]
    x = (x * math.sqrt(d_model)).astype(jnp.bfloat16)   # dropout -> identity (eval)
    x2d = x.reshape(B * S, d_model)
    enc2d = enc_output.astype(jnp.bfloat16).reshape(B * Skv, d_model)

    for lp in params["layers"]:
        # ---- self-attention sublayer (fused QKV GEMM + fused Wo/residual/LN) ----
        sa = lp["self_attn"]
        qkv = linear(x2d, sa["w_qkv"], sa["b_qkv"])                       # (B*S, 3D)
        attn = self_attention(qkv.reshape(B, S, 3 * d_model), num_heads,
                              causal=causal_self)                        # (B, S, D)
        x2d = linear_residual_layernorm(attn.reshape(B * S, d_model),
                                        sa["wo"], sa["bo"], x2d,
                                        lp["ln1_g"], lp["ln1_b"])
        # ---- cross-attention sublayer (fused KV GEMM on encoder output) ----
        ca = lp["cross_attn"]
        q = linear(x2d, ca["wq"], ca["bq"])                               # (B*S, D)
        kv = linear(enc2d, ca["w_kv"], ca["b_kv"])                        # (B*Skv, 2D)
        attn = cross_attention(q.reshape(B, S, d_model),
                               kv.reshape(B, Skv, 2 * d_model), num_heads)
        x2d = linear_residual_layernorm(attn.reshape(B * S, d_model),
                                        ca["wo"], ca["bo"], x2d,
                                        lp["ln2_g"], lp["ln2_b"])
        # ---- feed-forward sublayer (relu epilogue + fused residual/LN epilogue) ----
        h = linear(x2d, lp["w1"], lp["b1"], activation="relu")            # (B*S, d_ff)
        x2d = linear_residual_layernorm(h, lp["w2"], lp["b2"], x2d,
                                        lp["ln3_g"], lp["ln3_b"])

    logits = linear(x2d, params["lm_head_w"], params["lm_head_b"],
                    out_dtype=jnp.float32)                                # (B*S, Vpad)
    return logits.reshape(B, S, -1)[:, :, :vocab_size]


# --------------------------- parameter construction -------------------------

def _init_linear(key, d_in, d_out):
    kw, kb = jax.random.split(key)
    w = (jax.random.normal(kw, (d_in, d_out), jnp.float32) * 0.02).astype(jnp.bfloat16)
    b = jax.random.normal(kb, (d_out,), jnp.float32) * 0.02
    return w, b


def init_params(key, vocab_size, d_model, num_heads, d_ff, num_layers, max_seq_len):
    keys = jax.random.split(key, 3 + num_layers)
    params = {
        "token_emb": jax.random.normal(keys[0], (vocab_size, d_model), jnp.float32) * 0.02,
        "pos_emb": jax.random.normal(keys[1], (max_seq_len, d_model), jnp.float32) * 0.02,
        "layers": [],
    }
    # lm_head, vocab padded to a lane-dense multiple of 128 (sliced off in forward)
    vpad = _round_up(vocab_size, 128)
    lw, lb = _init_linear(keys[2], d_model, vocab_size)
    params["lm_head_w"] = jnp.pad(lw, ((0, 0), (0, vpad - vocab_size)))
    params["lm_head_b"] = jnp.pad(lb, (0, vpad - vocab_size))

    for li in range(num_layers):
        lk = jax.random.split(keys[3 + li], 10)
        wq, bq = _init_linear(lk[0], d_model, d_model)
        wk, bk = _init_linear(lk[1], d_model, d_model)
        wv, bv = _init_linear(lk[2], d_model, d_model)
        wo, bo = _init_linear(lk[3], d_model, d_model)
        self_attn = {"w_qkv": jnp.concatenate([wq, wk, wv], axis=1),
                     "b_qkv": jnp.concatenate([bq, bk, bv]),
                     "wo": wo, "bo": bo}
        cq, cbq = _init_linear(lk[4], d_model, d_model)
        ck, cbk = _init_linear(lk[5], d_model, d_model)
        cv, cbv = _init_linear(lk[6], d_model, d_model)
        cwo, cbo = _init_linear(lk[7], d_model, d_model)
        cross_attn = {"wq": cq, "bq": cbq,
                      "w_kv": jnp.concatenate([ck, cv], axis=1),
                      "b_kv": jnp.concatenate([cbk, cbv]),
                      "wo": cwo, "bo": cbo}
        w1, b1 = _init_linear(lk[8], d_model, d_ff)
        w2, b2 = _init_linear(lk[9], d_ff, d_model)
        params["layers"].append({
            "self_attn": self_attn, "cross_attn": cross_attn,
            "w1": w1, "b1": b1, "w2": w2, "b2": b2,
            "ln1_g": jnp.ones((d_model,), jnp.float32),
            "ln1_b": jnp.zeros((d_model,), jnp.float32),
            "ln2_g": jnp.ones((d_model,), jnp.float32),
            "ln2_b": jnp.zeros((d_model,), jnp.float32),
            "ln3_g": jnp.ones((d_model,), jnp.float32),
            "ln3_b": jnp.zeros((d_model,), jnp.float32),
        })
    return params


# ----------------------------------- main ------------------------------------

if __name__ == "__main__":
    vocab_size, d_model, num_heads, d_ff = 50, 32, 4, 64
    num_layers, max_seq_len = 2, 16
    batch, seq_len, enc_seq_len = 2, 8, 10

    key = jax.random.PRNGKey(0)
    k_par, k_tok, k_enc = jax.random.split(key, 3)

    params = init_params(k_par, vocab_size, d_model, num_heads,
                         d_ff, num_layers, max_seq_len)
    tokens = jax.random.randint(k_tok, (batch, seq_len), 0, vocab_size, jnp.int32)
    enc_output = jax.random.normal(k_enc, (batch, enc_seq_len, d_model), jnp.float32)

    fwd = jax.jit(functools.partial(gpt_decoder_forward,
                                    num_heads=num_heads, causal_self=True))
    logits = fwd(params, tokens, enc_output)
    jax.block_until_ready(logits)

    assert logits.shape == (batch, seq_len, vocab_size)
    assert bool(jnp.all(jnp.isfinite(logits)))
    print("KERNEL_OK")
</pallas_src>

<mosaic_0001>
module attributes {stable_mosaic.version = 11 : i64} {
  func.func @_self_attn_kernel(%arg0: i32, %arg1: memref<1x8x96xbf16, #tpu.memory_space<vmem>>, %arg2: memref<1x8x32xbf16, #tpu.memory_space<vmem>>) attributes {dimension_semantics = [#tpu.dimension_semantics<parallel>], iteration_bounds = array<i64: 2>, scalar_prefetch = 0 : i64, scratch_operands = 0 : i64, tpu.core_type = #tpu.core_type<tc>, window_params = [{transform_indices = @transform_0, window_bounds = array<i64: 1, 8, 96>}, {transform_indices = @transform_1, window_bounds = array<i64: 1, 8, 32>}]} {
    %c0 = arith.constant 0 : index
    %c0_0 = arith.constant 0 : index
    %c0_1 = arith.constant 0 : index
    %0 = vector.load %arg1[%c0, %c0_0, %c0_1] : memref<1x8x96xbf16, #tpu.memory_space<vmem>>, vector<1x8x96xbf16>
    %1 = vector.shape_cast %0 : vector<1x8x96xbf16> to vector<8x96xbf16>
    %2 = vector.extract_strided_slice %1 {offsets = [0, 0], sizes = [8, 32], strides = [1, 1]} : vector<8x96xbf16> to vector<8x32xbf16>
    %3 = vector.extract_strided_slice %1 {offsets = [0, 32], sizes = [8, 64], strides = [1, 1]} : vector<8x96xbf16> to vector<8x64xbf16>
    %4 = tpu.iota {dimensions = array<i32: 0>} : vector<8x8xi32>
    %5 = tpu.iota {dimensions = array<i32: 1>} : vector<8x8xi32>
    %6 = arith.cmpi sge, %4, %5 : vector<8x8xi32>
    %7 = vector.extract_strided_slice %2 {offsets = [0, 0], sizes = [8, 8], strides = [1, 1]} : vector<8x32xbf16> to vector<8x8xbf16>
    %8 = arith.extf %7 : vector<8x8xbf16> to vector<8x8xf32>
    %cst = arith.constant 0.353553385 : f32
    %9 = vector.broadcast %cst : f32 to vector<8x8xf32>
    %10 = arith.mulf %8, %9 : vector<8x8xf32>
    %11 = vector.extract_strided_slice %3 {offsets = [0, 0], sizes = [8, 8], strides = [1, 1]} : vector<8x64xbf16> to vector<8x8xbf16>
    %12 = arith.extf %11 : vector<8x8xbf16> to vector<8x8xf32>
    %13 = vector.extract_strided_slice %3 {offsets = [0, 32], sizes = [8, 8], strides = [1, 1]} : vector<8x64xbf16> to vector<8x8xbf16>
    %cst_2 = arith.constant dense<0.000000e+00> : vector<8x8xf32>
    %14 = tpu.matmul %10, %12, %cst_2 {dimension_numbers = #tpu.dot_dimension_numbers<[1], [1], [0], [0], [0, 0, 1, 0], [], []>} : vector<8x8xf32>, vector<8x8xf32>, vector<8x8xf32> -> vector<8x8xf32>
    %cst_3 = arith.constant -1.000000e+09 : f32
    %15 = vector.broadcast %cst_3 : f32 to vector<8x8xf32>
    %16 = arith.select %6, %14, %15 : vector<8x8xi1>, vector<8x8xf32>
    %cst_4 = arith.constant dense<0xFF800000> : vector<8xf32>
    %17 = vector.multi_reduction <maximumf>, %16, %cst_4 [1] : vector<8x8xf32> to vector<8xf32>
    %18 = vector.shape_cast %17 : vector<8xf32> to vector<8x1xf32>
    %19 = vector.broadcast %18 : vector<8x1xf32> to vector<8x8xf32>
    %20 = arith.subf %16, %19 : vector<8x8xf32>
    %21 = math.exp %20 : vector<8x8xf32>
    %cst_5 = arith.constant dense<0.000000e+00> : vector<8xf32>
    %22 = vector.multi_reduction <add>, %21, %cst_5 [1] : vector<8x8xf32> to vector<8xf32>
    %23 = vector.shape_cast %22 : vector<8xf32> to vector<8x1xf32>
    %24 = tpu.reciprocal %23 {approx = true} : vector<8x1xf32> -> vector<8x1xf32>
    %25 = vector.broadcast %24 : vector<8x1xf32> to vector<8x8xf32>
    %26 = arith.mulf %21, %25 : vector<8x8xf32>
    %27 = arith.truncf %26 : vector<8x8xf32> to vector<8x8xbf16>
    %cst_6 = arith.constant dense<0.000000e+00> : vector<8x8xf32>
    %28 = tpu.matmul %27, %13, %cst_6 {dimension_numbers = #tpu.dot_dimension_numbers<[1], [0], [0], [1], [0, 0, 1, 1], [], []>} : vector<8x8xbf16>, vector<8x8xbf16>, vector<8x8xf32> -> vector<8x8xf32>
    %29 = vector.extract_strided_slice %2 {offsets = [0, 8], sizes = [8, 8], strides = [1, 1]} : vector<8x32xbf16> to vector<8x8xbf16>
    %30 = arith.extf %29 : vector<8x8xbf16> to vector<8x8xf32>
    %cst_7 = arith.constant 0.353553385 : f32
    %31 = vector.broadcast %cst_7 : f32 to vector<8x8xf32>
    %32 = arith.mulf %30, %31 : vector<8x8xf32>
    %33 = vector.extract_strided_slice %3 {offsets = [0, 8], sizes = [8, 8], strides = [1, 1]} : vector<8x64xbf16> to vector<8x8xbf16>
    %34 = arith.extf %33 : vector<8x8xbf16> to vector<8x8xf32>
    %35 = vector.extract_strided_slice %3 {offsets = [0, 40], sizes = [8, 8], strides = [1, 1]} : vector<8x64xbf16> to vector<8x8xbf16>
    %cst_8 = arith.constant dense<0.000000e+00> : vector<8x8xf32>
    %36 = tpu.matmul %32, %34, %cst_8 {dimension_numbers = #tpu.dot_dimension_numbers<[1], [1], [0], [0], [0, 0, 1, 0], [], []>} : vector<8x8xf32>, vector<8x8xf32>, vector<8x8xf32> -> vector<8x8xf32>
    %cst_9 = arith.constant -1.000000e+09 : f32
    %37 = vector.broadcast %cst_9 : f32 to vector<8x8xf32>
    %38 = arith.select %6, %36, %37 : vector<8x8xi1>, vector<8x8xf32>
    %cst_10 = arith.constant dense<0xFF800000> : vector<8xf32>
    %39 = vector.multi_reduction <maximumf>, %38, %cst_10 [1] : vector<8x8xf32> to vector<8xf32>
    %40 = vector.shape_cast %39 : vector<8xf32> to vector<8x1xf32>
    %41 = vector.broadcast %40 : vector<8x1xf32> to vector<8x8xf32>
    %42 = arith.subf %38, %41 : vector<8x8xf32>
    %43 = math.exp %42 : vector<8x8xf32>
    %cst_11 = arith.constant dense<0.000000e+00> : vector<8xf32>
    %44 = vector.multi_reduction <add>, %43, %cst_11 [1] : vector<8x8xf32> to vector<8xf32>
    %45 = vector.shape_cast %44 : vector<8xf32> to vector<8x1xf32>
    %46 = tpu.reciprocal %45 {approx = true} : vector<8x1xf32> -> vector<8x1xf32>
    %47 = vector.broadcast %46 : vector<8x1xf32> to vector<8x8xf32>
    %48 = arith.mulf %43, %47 : vector<8x8xf32>
    %49 = arith.truncf %48 : vector<8x8xf32> to vector<8x8xbf16>
    %cst_12 = arith.constant dense<0.000000e+00> : vector<8x8xf32>
    %50 = tpu.matmul %49, %35, %cst_12 {dimension_numbers = #tpu.dot_dimension_numbers<[1], [0], [0], [1], [0, 0, 1, 1], [], []>} : vector<8x8xbf16>, vector<8x8xbf16>, vector<8x8xf32> -> vector<8x8xf32>
    %51 = vector.extract_strided_slice %2 {offsets = [0, 16], sizes = [8, 8], strides = [1, 1]} : vector<8x32xbf16> to vector<8x8xbf16>
    %52 = arith.extf %51 : vector<8x8xbf16> to vector<8x8xf32>
    %cst_13 = arith.constant 0.353553385 : f32
    %53 = vector.broadcast %cst_13 : f32 to vector<8x8xf32>
    %54 = arith.mulf %52, %53 : vector<8x8xf32>
    %55 = vector.extract_strided_slice %3 {offsets = [0, 16], sizes = [8, 8], strides = [1, 1]} : vector<8x64xbf16> to vector<8x8xbf16>
    %56 = arith.extf %55 : vector<8x8xbf16> to vector<8x8xf32>
    %57 = vector.extract_strided_slice %3 {offsets = [0, 48], sizes = [8, 8], strides = [1, 1]} : vector<8x64xbf16> to vector<8x8xbf16>
    %cst_14 = arith.constant dense<0.000000e+00> : vector<8x8xf32>
    %58 = tpu.matmul %54, %56, %cst_14 {dimension_numbers = #tpu.dot_dimension_numbers<[1], [1], [0], [0], [0, 0, 1, 0], [], []>} : vector<8x8xf32>, vector<8x8xf32>, vector<8x8xf32> -> vector<8x8xf32>
    %cst_15 = arith.constant -1.000000e+09 : f32
    %59 = vector.broadcast %cst_15 : f32 to vector<8x8xf32>
    %60 = arith.select %6, %58, %59 : vector<8x8xi1>, vector<8x8xf32>
    %cst_16 = arith.constant dense<0xFF800000> : vector<8xf32>
    %61 = vector.multi_reduction <maximumf>, %60, %cst_16 [1] : vector<8x8xf32> to vector<8xf32>
    %62 = vector.shape_cast %61 : vector<8xf32> to vector<8x1xf32>
    %63 = vector.broadcast %62 : vector<8x1xf32> to vector<8x8xf32>
    %64 = arith.subf %60, %63 : vector<8x8xf32>
    %65 = math.exp %64 : vector<8x8xf32>
    %cst_17 = arith.constant dense<0.000000e+00> : vector<8xf32>
    %66 = vector.multi_reduction <add>, %65, %cst_17 [1] : vector<8x8xf32> to vector<8xf32>
    %67 = vector.shape_cast %66 : vector<8xf32> to vector<8x1xf32>
    %68 = tpu.reciprocal %67 {approx = true} : vector<8x1xf32> -> vector<8x1xf32>
    %69 = vector.broadcast %68 : vector<8x1xf32> to vector<8x8xf32>
    %70 = arith.mulf %65, %69 : vector<8x8xf32>
    %71 = arith.truncf %70 : vector<8x8xf32> to vector<8x8xbf16>
    %cst_18 = arith.constant dense<0.000000e+00> : vector<8x8xf32>
    %72 = tpu.matmul %71, %57, %cst_18 {dimension_numbers = #tpu.dot_dimension_numbers<[1], [0], [0], [1], [0, 0, 1, 1], [], []>} : vector<8x8xbf16>, vector<8x8xbf16>, vector<8x8xf32> -> vector<8x8xf32>
    %73 = vector.extract_strided_slice %2 {offsets = [0, 24], sizes = [8, 8], strides = [1, 1]} : vector<8x32xbf16> to vector<8x8xbf16>
    %74 = arith.extf %73 : vector<8x8xbf16> to vector<8x8xf32>
    %cst_19 = arith.constant 0.353553385 : f32
    %75 = vector.broadcast %cst_19 : f32 to vector<8x8xf32>
    %76 = arith.mulf %74, %75 : vector<8x8xf32>
    %77 = vector.extract_strided_slice %3 {offsets = [0, 24], sizes = [8, 8], strides = [1, 1]} : vector<8x64xbf16> to vector<8x8xbf16>
    %78 = arith.extf %77 : vector<8x8xbf16> to vector<8x8xf32>
    %79 = vector.extract_strided_slice %3 {offsets = [0, 56], sizes = [8, 8], strides = [1, 1]} : vector<8x64xbf16> to vector<8x8xbf16>
    %cst_20 = arith.constant dense<0.000000e+00> : vector<8x8xf32>
    %80 = tpu.matmul %76, %78, %cst_20 {dimension_numbers = #tpu.dot_dimension_numbers<[1], [1], [0], [0], [0, 0, 1, 0], [], []>} : vector<8x8xf32>, vector<8x8xf32>, vector<8x8xf32> -> vector<8x8xf32>
    %cst_21 = arith.constant -1.000000e+09 : f32
    %81 = vector.broadcast %cst_21 : f32 to vector<8x8xf32>
    %82 = arith.select %6, %80, %81 : vector<8x8xi1>, vector<8x8xf32>
    %cst_22 = arith.constant dense<0xFF800000> : vector<8xf32>
    %83 = vector.multi_reduction <maximumf>, %82, %cst_22 [1] : vector<8x8xf32> to vector<8xf32>
    %84 = vector.shape_cast %83 : vector<8xf32> to vector<8x1xf32>
    %85 = vector.broadcast %84 : vector<8x1xf32> to vector<8x8xf32>
    %86 = arith.subf %82, %85 : vector<8x8xf32>
    %87 = math.exp %86 : vector<8x8xf32>
    %cst_23 = arith.constant dense<0.000000e+00> : vector<8xf32>
    %88 = vector.multi_reduction <add>, %87, %cst_23 [1] : vector<8x8xf32> to vector<8xf32>
    %89 = vector.shape_cast %88 : vector<8xf32> to vector<8x1xf32>
    %90 = tpu.reciprocal %89 {approx = true} : vector<8x1xf32> -> vector<8x1xf32>
    %91 = vector.broadcast %90 : vector<8x1xf32> to vector<8x8xf32>
    %92 = arith.mulf %87, %91 : vector<8x8xf32>
    %93 = arith.truncf %92 : vector<8x8xf32> to vector<8x8xbf16>
    %cst_24 = arith.constant dense<0.000000e+00> : vector<8x8xf32>
    %94 = tpu.matmul %93, %79, %cst_24 {dimension_numbers = #tpu.dot_dimension_numbers<[1], [0], [0], [1], [0, 0, 1, 1], [], []>} : vector<8x8xbf16>, vector<8x8xbf16>, vector<8x8xf32> -> vector<8x8xf32>
    %95 = tpu.concatenate %28, %50, %72, %94 in 1 : vector<8x8xf32>, vector<8x8xf32>, vector<8x8xf32>, vector<8x8xf32> -> vector<8x32xf32>
    %96 = arith.truncf %95 : vector<8x32xf32> to vector<8x32xbf16>
    %c0_25 = arith.constant 0 : index
    %c0_26 = arith.constant 0 : index
    %c0_27 = arith.constant 0 : index
    %97 = vector.load %arg2[%c0_25, %c0_26, %c0_27] : memref<1x8x32xbf16, #tpu.memory_space<vmem>>, vector<1x8x32xbf16>
    %98 = vector.shape_cast %97 : vector<1x8x32xbf16> to vector<8x32xbf16>
    %99 = vector.shape_cast %96 : vector<8x32xbf16> to vector<1x8x32xbf16>
    tpu.vector_store %arg2[%c0_25, %c0_26, %c0_27], %99 {strides = array<i32>} : memref<1x8x32xbf16, #tpu.memory_space<vmem>>, vector<1x8x32xbf16>,
    return
  }
  func.func @transform_0(%arg0: i32) -> (i32, i32, i32) {
    %c0_i32 = arith.constant 0 : i32
    %c0_i32_0 = arith.constant 0 : i32
    %c0_i32_1 = arith.constant 0 : i32
    return %arg0, %c0_i32, %c0_i32_0 : i32, i32, i32
  }
  func.func @transform_1(%arg0: i32) -> (i32, i32, i32) {
    %c0_i32 = arith.constant 0 : i32
    %c0_i32_0 = arith.constant 0 : i32
    %c0_i32_1 = arith.constant 0 : i32
    return %arg0, %c0_i32, %c0_i32_0 : i32, i32, i32
  }
}

module attributes {stable_mosaic.version = 11 : i64} {
  func.func @_linear_kernel(%arg0: i32, %arg1: i32, %arg2: i32, %arg3: memref<16x32xbf16, #tpu.memory_space<vmem>>, %arg4: memref<32x32xbf16, #tpu.memory_space<vmem>>, %arg5: memref<1x32xf32, #tpu.memory_space<vmem>>, %arg6: memref<16x32xbf16, #tpu.memory_space<vmem>>, %arg7: memref<16x32xf32, #tpu.memory_space<vmem>>) attributes {dimension_semantics = [#tpu.dimension_semantics<parallel>, #tpu.dimension_semantics<parallel>, #tpu.dimension_semantics<arbitrary>], iteration_bounds = array<i64: 1, 1, 1>, scalar_prefetch = 0 : i64, scratch_operands = 1 : i64, tpu.core_type = #tpu.core_type<tc>, window_params = [{transform_indices = @transform_0, window_bounds = array<i64: 16, 32>}, {transform_indices = @transform_1, window_bounds = array<i64: 32, 32>}, {transform_indices = @transform_2, window_bounds = array<i64: 1, 32>}, {transform_indices = @transform_3, window_bounds = array<i64: 16, 32>}]} {
    %c0_i32 = arith.constant 0 : i32
    %0 = arith.cmpi eq, %arg2, %c0_i32 : i32
    %1 = arith.extui %0 : i1 to i32
    %c0_i32_0 = arith.constant 0 : i32
    %2 = arith.cmpi ne, %1, %c0_i32_0 : i32
    scf.if %2 {
      %cst_10 = arith.constant 0.000000e+00 : f32
      %12 = vector.broadcast %cst_10 : f32 to vector<16x32xf32>
      %c0_11 = arith.constant 0 : index
      %c0_12 = arith.constant 0 : index
      %13 = vector.load %arg7[%c0_11, %c0_12] : memref<16x32xf32, #tpu.memory_space<vmem>>, vector<16x32xf32>
      tpu.vector_store %arg7[%c0_11, %c0_12], %12 {strides = array<i32>} : memref<16x32xf32, #tpu.memory_space<vmem>>, vector<16x32xf32>,
    } else {
    }
    %c0 = arith.constant 0 : index
    %c0_1 = arith.constant 0 : index
    %3 = vector.load %arg7[%c0, %c0_1] : memref<16x32xf32, #tpu.memory_space<vmem>>, vector<16x32xf32>
    %c0_2 = arith.constant 0 : index
    %c0_3 = arith.constant 0 : index
    %4 = vector.load %arg3[%c0_2, %c0_3] : memref<16x32xbf16, #tpu.memory_space<vmem>>, vector<16x32xbf16>
    %c0_4 = arith.constant 0 : index
    %c0_5 = arith.constant 0 : index
    %5 = vector.load %arg4[%c0_4, %c0_5] : memref<32x32xbf16, #tpu.memory_space<vmem>>, vector<32x32xbf16>
    %cst = arith.constant dense<0.000000e+00> : vector<16x32xf32>
    %6 = tpu.matmul %4, %5, %cst {dimension_numbers = #tpu.dot_dimension_numbers<[1], [0], [0], [1], [0, 0, 1, 1], [], []>} : vector<16x32xbf16>, vector<32x32xbf16>, vector<16x32xf32> -> vector<16x32xf32>
    %7 = arith.addf %3, %6 : vector<16x32xf32>
    %c0_6 = arith.constant 0 : index
    %c0_7 = arith.constant 0 : index
    %8 = vector.load %arg7[%c0_6, %c0_7] : memref<16x32xf32, #tpu.memory_space<vmem>>, vector<16x32xf32>
    tpu.vector_store %arg7[%c0_6, %c0_7], %7 {strides = array<i32>} : memref<16x32xf32, #tpu.memory_space<vmem>>, vector<16x32xf32>,
    %c0_i32_8 = arith.constant 0 : i32
    %9 = arith.cmpi eq, %arg2, %c0_i32_8 : i32
    %10 = arith.extui %9 : i1 to i32
    %c0_i32_9 = arith.constant 0 : i32
    %11 = arith.cmpi ne, %10, %c0_i32_9 : i32
    scf.if %11 {
      %c0_10 = arith.constant 0 : index
      %c0_11 = arith.constant 0 : index
      %12 = vector.load %arg7[%c0_10, %c0_11] : memref<16x32xf32, #tpu.memory_space<vmem>>, vector<16x32xf32>
      %c0_12 = arith.constant 0 : index
      %c0_13 = arith.constant 0 : index
      %13 = vector.load %arg5[%c0_12, %c0_13] : memref<1x32xf32, #tpu.memory_space<vmem>>, vector<1x32xf32>
      %14 = vector.broadcast %13 : vector<1x32xf32> to vector<16x32xf32>
      %15 = arith.addf %12, %14 : vector<16x32xf32>
      %16 = arith.truncf %15 : vector<16x32xf32> to vector<16x32xbf16>
      %c0_14 = arith.constant 0 : index
      %c0_15 = arith.constant 0 : index
      %17 = vector.load %arg6[%c0_14, %c0_15] : memref<16x32xbf16, #tpu.memory_space<vmem>>, vector<16x32xbf16>
      tpu.vector_store %arg6[%c0_14, %c0_15], %16 {strides = array<i32>} : memref<16x32xbf16, #tpu.memory_space<vmem>>, vector<16x32xbf16>,
    } else {
    }
    return
  }
  func.func @transform_0(%arg0: i32, %arg1: i32, %arg2: i32) -> (i32, i32) {
    %c0_i32 = arith.constant 0 : i32
    return %arg0, %arg2 : i32, i32
  }
  func.func @transform_1(%arg0: i32, %arg1: i32, %arg2: i32) -> (i32, i32) {
    %c0_i32 = arith.constant 0 : i32
    return %arg2, %arg1 : i32, i32
  }
  func.func @transform_2(%arg0: i32, %arg1: i32, %arg2: i32) -> (i32, i32) {
    %c0_i32 = arith.constant 0 : i32
    %c0_i32_0 = arith.constant 0 : i32
    return %c0_i32, %arg1 : i32, i32
  }
  func.func @transform_3(%arg0: i32, %arg1: i32, %arg2: i32) -> (i32, i32) {
    %c0_i32 = arith.constant 0 : i32
    return %arg0, %arg1 : i32, i32
  }
}

module attributes {stable_mosaic.version = 11 : i64} {
  func.func @_linear_kernel(%arg0: i32, %arg1: i32, %arg2: i32, %arg3: memref<16x32xbf16, #tpu.memory_space<vmem>>, %arg4: memref<32x96xbf16, #tpu.memory_space<vmem>>, %arg5: memref<1x96xf32, #tpu.memory_space<vmem>>, %arg6: memref<16x96xbf16, #tpu.memory_space<vmem>>, %arg7: memref<16x96xf32, #tpu.memory_space<vmem>>) attributes {dimension_semantics = [#tpu.dimension_semantics<parallel>, #tpu.dimension_semantics<parallel>, #tpu.dimension_semantics<arbitrary>], iteration_bounds = array<i64: 1, 1, 1>, scalar_prefetch = 0 : i64, scratch_operands = 1 : i64, tpu.core_type = #tpu.core_type<tc>, window_params = [{transform_indices = @transform_0, window_bounds = array<i64: 16, 32>}, {transform_indices = @transform_1, window_bounds = array<i64: 32, 96>}, {transform_indices = @transform_2, window_bounds = array<i64: 1, 96>}, {transform_indices = @transform_3, window_bounds = array<i64: 16, 96>}]} {
    %c0_i32 = arith.constant 0 : i32
    %0 = arith.cmpi eq, %arg2, %c0_i32 : i32
    %1 = arith.extui %0 : i1 to i32
    %c0_i32_0 = arith.constant 0 : i32
    %2 = arith.cmpi ne, %1, %c0_i32_0 : i32
    scf.if %2 {
      %cst_10 = arith.constant 0.000000e+00 : f32
      %12 = vector.broadcast %cst_10 : f32 to vector<16x96xf32>
      %c0_11 = arith.constant 0 : index
      %c0_12 = arith.constant 0 : index
      %13 = vector.load %arg7[%c0_11, %c0_12] : memref<16x96xf32, #tpu.memory_space<vmem>>, vector<16x96xf32>
      tpu.vector_store %arg7[%c0_11, %c0_12], %12 {strides = array<i32>} : memref<16x96xf32, #tpu.memory_space<vmem>>, vector<16x96xf32>,
    } else {
    }
    %c0 = arith.constant 0 : index
    %c0_1 = arith.constant 0 : index
    %3 = vector.load %arg7[%c0, %c0_1] : memref<16x96xf32, #tpu.memory_space<vmem>>, vector<16x96xf32>
    %c0_2 = arith.constant 0 : index
    %c0_3 = arith.constant 0 : index
    %4 = vector.load %arg3[%c0_2, %c0_3] : memref<16x32xbf16, #tpu.memory_space<vmem>>, vector<16x32xbf16>
    %c0_4 = arith.constant 0 : index
    %c0_5 = arith.constant 0 : index
    %5 = vector.load %arg4[%c0_4, %c0_5] : memref<32x96xbf16, #tpu.memory_space<vmem>>, vector<32x96xbf16>
    %cst = arith.constant dense<0.000000e+00> : vector<16x96xf32>
    %6 = tpu.matmul %4, %5, %cst {dimension_numbers = #tpu.dot_dimension_numbers<[1], [0], [0], [1], [0, 0, 1, 1], [], []>} : vector<16x32xbf16>, vector<32x96xbf16>, vector<16x96xf32> -> vector<16x96xf32>
    %7 = arith.addf %3, %6 : vector<16x96xf32>
    %c0_6 = arith.constant 0 : index
    %c0_7 = arith.constant 0 : index
    %8 = vector.load %arg7[%c0_6, %c0_7] : memref<16x96xf32, #tpu.memory_space<vmem>>, vector<16x96xf32>
    tpu.vector_store %arg7[%c0_6, %c0_7], %7 {strides = array<i32>} : memref<16x96xf32, #tpu.memory_space<vmem>>, vector<16x96xf32>,
    %c0_i32_8 = arith.constant 0 : i32
    %9 = arith.cmpi eq, %arg2, %c0_i32_8 : i32
    %10 = arith.extui %9 : i1 to i32
    %c0_i32_9 = arith.constant 0 : i32
    %11 = arith.cmpi ne, %10, %c0_i32_9 : i32
    scf.if %11 {
      %c0_10 = arith.constant 0 : index
      %c0_11 = arith.constant 0 : index
      %12 = vector.load %arg7[%c0_10, %c0_11] : memref<16x96xf32, #tpu.memory_space<vmem>>, vector<16x96xf32>
      %c0_12 = arith.constant 0 : index
      %c0_13 = arith.constant 0 : index
      %13 = vector.load %arg5[%c0_12, %c0_13] : memref<1x96xf32, #tpu.memory_space<vmem>>, vector<1x96xf32>
      %14 = vector.broadcast %13 : vector<1x96xf32> to vector<16x96xf32>
      %15 = arith.addf %12, %14 : vector<16x96xf32>
      %16 = arith.truncf %15 : vector<16x96xf32> to vector<16x96xbf16>
      %c0_14 = arith.constant 0 : index
      %c0_15 = arith.constant 0 : index
      %17 = vector.load %arg6[%c0_14, %c0_15] : memref<16x96xbf16, #tpu.memory_space<vmem>>, vector<16x96xbf16>
      tpu.vector_store %arg6[%c0_14, %c0_15], %16 {strides = array<i32>} : memref<16x96xbf16, #tpu.memory_space<vmem>>, vector<16x96xbf16>,
    } else {
    }
    return
  }
  func.func @transform_0(%arg0: i32, %arg1: i32, %arg2: i32) -> (i32, i32) {
    %c0_i32 = arith.constant 0 : i32
    return %arg0, %arg2 : i32, i32
  }
  func.func @transform_1(%arg0: i32, %arg1: i32, %arg2: i32) -> (i32, i32) {
    %c0_i32 = arith.constant 0 : i32
    return %arg2, %arg1 : i32, i32
  }
  func.func @transform_2(%arg0: i32, %arg1: i32, %arg2: i32) -> (i32, i32) {
    %c0_i32 = arith.constant 0 : i32
    %c0_i32_0 = arith.constant 0 : i32
    return %c0_i32, %arg1 : i32, i32
  }
  func.func @transform_3(%arg0: i32, %arg1: i32, %arg2: i32) -> (i32, i32) {
    %c0_i32 = arith.constant 0 : i32
    return %arg0, %arg1 : i32, i32
  }
}

module attributes {stable_mosaic.version = 11 : i64} {
  func.func @_linear_res_ln_kernel(%arg0: i32, %arg1: i32, %arg2: memref<16x32xbf16, #tpu.memory_space<vmem>>, %arg3: memref<32x32xbf16, #tpu.memory_space<vmem>>, %arg4: memref<1x32xf32, #tpu.memory_space<vmem>>, %arg5: memref<16x32xbf16, #tpu.memory_space<vmem>>, %arg6: memref<1x32xf32, #tpu.memory_space<vmem>>, %arg7: memref<1x32xf32, #tpu.memory_space<vmem>>, %arg8: memref<16x32xbf16, #tpu.memory_space<vmem>>, %arg9: memref<16x32xf32, #tpu.memory_space<vmem>>) attributes {dimension_semantics = [#tpu.dimension_semantics<parallel>, #tpu.dimension_semantics<arbitrary>], iteration_bounds = array<i64: 1, 1>, scalar_prefetch = 0 : i64, scratch_operands = 1 : i64, tpu.core_type = #tpu.core_type<tc>, window_params = [{transform_indices = @transform_0, window_bounds = array<i64: 16, 32>}, {transform_indices = @transform_1, window_bounds = array<i64: 32, 32>}, {pipeline_mode = #tpu.pipeline_mode<synchronous>, transform_indices = @transform_2, window_bounds = array<i64: 1, 32>}, {transform_indices = @transform_3, window_bounds = array<i64: 16, 32>}, {pipeline_mode = #tpu.pipeline_mode<synchronous>, transform_indices = @transform_4, window_bounds = array<i64: 1, 32>}, {pipeline_mode = #tpu.pipeline_mode<synchronous>, transform_indices = @transform_5, window_bounds = array<i64: 1, 32>}, {transform_indices = @transform_6, window_bounds = array<i64: 16, 32>}]} {
    %c0_i32 = arith.constant 0 : i32
    %0 = arith.cmpi eq, %arg1, %c0_i32 : i32
    %1 = arith.extui %0 : i1 to i32
    %c0_i32_0 = arith.constant 0 : i32
    %2 = arith.cmpi ne, %1, %c0_i32_0 : i32
    scf.if %2 {
      %cst_10 = arith.constant 0.000000e+00 : f32
      %12 = vector.broadcast %cst_10 : f32 to vector<16x32xf32>
      %c0_11 = arith.constant 0 : index
      %c0_12 = arith.constant 0 : index
      %13 = vector.load %arg9[%c0_11, %c0_12] : memref<16x32xf32, #tpu.memory_space<vmem>>, vector<16x32xf32>
      tpu.vector_store %arg9[%c0_11, %c0_12], %12 {strides = array<i32>} : memref<16x32xf32, #tpu.memory_space<vmem>>, vector<16x32xf32>,
    } else {
    }
    %c0 = arith.constant 0 : index
    %c0_1 = arith.constant 0 : index
    %3 = vector.load %arg9[%c0, %c0_1] : memref<16x32xf32, #tpu.memory_space<vmem>>, vector<16x32xf32>
    %c0_2 = arith.constant 0 : index
    %c0_3 = arith.constant 0 : index
    %4 = vector.load %arg2[%c0_2, %c0_3] : memref<16x32xbf16, #tpu.memory_space<vmem>>, vector<16x32xbf16>
    %c0_4 = arith.constant 0 : index
    %c0_5 = arith.constant 0 : index
    %5 = vector.load %arg3[%c0_4, %c0_5] : memref<32x32xbf16, #tpu.memory_space<vmem>>, vector<32x32xbf16>
    %cst = arith.constant dense<0.000000e+00> : vector<16x32xf32>
    %6 = tpu.matmul %4, %5, %cst {dimension_numbers = #tpu.dot_dimension_numbers<[1], [0], [0], [1], [0, 0, 1, 1], [], []>} : vector<16x32xbf16>, vector<32x32xbf16>, vector<16x32xf32> -> vector<16x32xf32>
    %7 = arith.addf %3, %6 : vector<16x32xf32>
    %c0_6 = arith.constant 0 : index
    %c0_7 = arith.constant 0 : index
    %8 = vector.load %arg9[%c0_6, %c0_7] : memref<16x32xf32, #tpu.memory_space<vmem>>, vector<16x32xf32>
    tpu.vector_store %arg9[%c0_6, %c0_7], %7 {strides = array<i32>} : memref<16x32xf32, #tpu.memory_space<vmem>>, vector<16x32xf32>,
    %c0_i32_8 = arith.constant 0 : i32
    %9 = arith.cmpi eq, %arg1, %c0_i32_8 : i32
    %10 = arith.extui %9 : i1 to i32
    %c0_i32_9 = arith.constant 0 : i32
    %11 = arith.cmpi ne, %10, %c0_i32_9 : i32
    scf.if %11 {
      %c0_10 = arith.constant 0 : index
      %c0_11 = arith.constant 0 : index
      %12 = vector.load %arg9[%c0_10, %c0_11] : memref<16x32xf32, #tpu.memory_space<vmem>>, vector<16x32xf32>
      %c0_12 = arith.constant 0 : index
      %c0_13 = arith.constant 0 : index
      %13 = vector.load %arg4[%c0_12, %c0_13] : memref<1x32xf32, #tpu.memory_space<vmem>>, vector<1x32xf32>
      %14 = vector.broadcast %13 : vector<1x32xf32> to vector<16x32xf32>
      %15 = arith.addf %12, %14 : vector<16x32xf32>
      %c0_14 = arith.constant 0 : index
      %c0_15 = arith.constant 0 : index
      %16 = vector.load %arg5[%c0_14, %c0_15] : memref<16x32xbf16, #tpu.memory_space<vmem>>, vector<16x32xbf16>
      %17 = arith.extf %16 : vector<16x32xbf16> to vector<16x32xf32>
      %18 = arith.addf %15, %17 : vector<16x32xf32>
      %cst_16 = arith.constant dense<0.000000e+00> : vector<16xf32>
      %19 = vector.multi_reduction <add>, %18, %cst_16 [1] : vector<16x32xf32> to vector<16xf32>
      %20 = vector.shape_cast %19 : vector<16xf32> to vector<16x1xf32>
      %cst_17 = arith.constant 3.200000e+01 : f32
      %21 = vector.broadcast %cst_17 : f32 to vector<16x1xf32>
      %22 = arith.divf %20, %21 : vector<16x1xf32>
      %23 = arith.mulf %18, %18 : vector<16x32xf32>
      %cst_18 = arith.constant dense<0.000000e+00> : vector<16xf32>
      %24 = vector.multi_reduction <add>, %23, %cst_18 [1] : vector<16x32xf32> to vector<16xf32>
      %25 = vector.shape_cast %24 : vector<16xf32> to vector<16x1xf32>
      %cst_19 = arith.constant 3.200000e+01 : f32
      %26 = vector.broadcast %cst_19 : f32 to vector<16x1xf32>
      %27 = arith.divf %25, %26 : vector<16x1xf32>
      %28 = arith.mulf %22, %22 : vector<16x1xf32>
      %29 = arith.subf %27, %28 : vector<16x1xf32>
      %30 = vector.broadcast %22 : vector<16x1xf32> to vector<16x32xf32>
      %31 = arith.subf %18, %30 : vector<16x32xf32>
      %cst_20 = arith.constant 9.99999974E-6 : f32
      %32 = vector.broadcast %cst_20 : f32 to vector<16x1xf32>
      %33 = arith.addf %29, %32 : vector<16x1xf32>
      %34 = math.rsqrt %33 : vector<16x1xf32>
      %35 = vector.broadcast %34 : vector<16x1xf32> to vector<16x32xf32>
      %36 = arith.mulf %31, %35 : vector<16x32xf32>
      %c0_21 = arith.constant 0 : index
      %c0_22 = arith.constant 0 : index
      %37 = vector.load %arg6[%c0_21, %c0_22] : memref<1x32xf32, #tpu.memory_space<vmem>>, vector<1x32xf32>
      %38 = vector.broadcast %37 : vector<1x32xf32> to vector<16x32xf32>
      %39 = arith.mulf %36, %38 : vector<16x32xf32>
      %c0_23 = arith.constant 0 : index
      %c0_24 = arith.constant 0 : index
      %40 = vector.load %arg7[%c0_23, %c0_24] : memref<1x32xf32, #tpu.memory_space<vmem>>, vector<1x32xf32>
      %41 = vector.broadcast %40 : vector<1x32xf32> to vector<16x32xf32>
      %42 = arith.addf %39, %41 : vector<16x32xf32>
      %43 = arith.truncf %42 : vector<16x32xf32> to vector<16x32xbf16>
      %c0_25 = arith.constant 0 : index
      %c0_26 = arith.constant 0 : index
      %44 = vector.load %arg8[%c0_25, %c0_26] : memref<16x32xbf16, #tpu.memory_space<vmem>>, vector<16x32xbf16>
      tpu.vector_store %arg8[%c0_25, %c0_26], %43 {strides = array<i32>} : memref<16x32xbf16, #tpu.memory_space<vmem>>, vector<16x32xbf16>,
    } else {
    }
    return
  }
  func.func @transform_0(%arg0: i32, %arg1: i32) -> (i32, i32) {
    %c0_i32 = arith.constant 0 : i32
    return %arg0, %arg1 : i32, i32
  }
  func.func @transform_1(%arg0: i32, %arg1: i32) -> (i32, i32) {
    %c0_i32 = arith.constant 0 : i32
    %c0_i32_0 = arith.constant 0 : i32
    return %arg1, %c0_i32 : i32, i32
  }
  func.func @transform_2(%arg0: i32, %arg1: i32) -> (i32, i32) {
    %c0_i32 = arith.constant 0 : i32
    %c0_i32_0 = arith.constant 0 : i32
    %c0_i32_1 = arith.constant 0 : i32
    return %c0_i32, %c0_i32_0 : i32, i32
  }
  func.func @transform_3(%arg0: i32, %arg1: i32) -> (i32, i32) {
    %c0_i32 = arith.constant 0 : i32
    %c0_i32_0 = arith.constant 0 : i32
    return %arg0, %c0_i32 : i32, i32
  }
  func.func @transform_4(%arg0: i32, %arg1: i32) -> (i32, i32) {
    %c0_i32 = arith.constant 0 : i32
    %c0_i32_0 = arith.constant 0 : i32
    %c0_i32_1 = arith.constant 0 : i32
    return %c0_i32, %c0_i32_0 : i32, i32
  }
  func.func @transform_5(%arg0: i32, %arg1: i32) -> (i32, i32) {
    %c0_i32 = arith.constant 0 : i32
    %c0_i32_0 = arith.constant 0 : i32
    %c0_i32_1 = arith.constant 0 : i32
    return %c0_i32, %c0_i32_0 : i32, i32
  }
  func.func @transform_6(%arg0: i32, %arg1: i32) -> (i32, i32) {
    %c0_i32 = arith.constant 0 : i32
    %c0_i32_0 = arith.constant 0 : i32
    return %arg0, %c0_i32 : i32, i32
  }
}

module attributes {stable_mosaic.version = 11 : i64} {
  func.func @_linear_kernel(%arg0: i32, %arg1: i32, %arg2: i32, %arg3: memref<20x32xbf16, #tpu.memory_space<vmem>>, %arg4: memref<32x64xbf16, #tpu.memory_space<vmem>>, %arg5: memref<1x64xf32, #tpu.memory_space<vmem>>, %arg6: memref<20x64xbf16, #tpu.memory_space<vmem>>, %arg7: memref<20x64xf32, #tpu.memory_space<vmem>>) attributes {dimension_semantics = [#tpu.dimension_semantics<parallel>, #tpu.dimension_semantics<parallel>, #tpu.dimension_semantics<arbitrary>], iteration_bounds = array<i64: 1, 1, 1>, scalar_prefetch = 0 : i64, scratch_operands = 1 : i64, tpu.core_type = #tpu.core_type<tc>, window_params = [{transform_indices = @transform_0, window_bounds = array<i64: 20, 32>}, {transform_indices = @transform_1, window_bounds = array<i64: 32, 64>}, {transform_indices = @transform_2, window_bounds = array<i64: 1, 64>}, {transform_indices = @transform_3, window_bounds = array<i64: 20, 64>}]} {
    %c0_i32 = arith.constant 0 : i32
    %0 = arith.cmpi eq, %arg2, %c0_i32 : i32
    %1 = arith.extui %0 : i1 to i32
    %c0_i32_0 = arith.constant 0 : i32
    %2 = arith.cmpi ne, %1, %c0_i32_0 : i32
    scf.if %2 {
      %cst_10 = arith.constant 0.000000e+00 : f32
      %12 = vector.broadcast %cst_10 : f32 to vector<20x64xf32>
      %c0_11 = arith.constant 0 : index
      %c0_12 = arith.constant 0 : index
      %13 = vector.load %arg7[%c0_11, %c0_12] : memref<20x64xf32, #tpu.memory_space<vmem>>, vector<20x64xf32>
      tpu.vector_store %arg7[%c0_11, %c0_12], %12 {strides = array<i32>} : memref<20x64xf32, #tpu.memory_space<vmem>>, vector<20x64xf32>,
    } else {
    }
    %c0 = arith.constant 0 : index
    %c0_1 = arith.constant 0 : index
    %3 = vector.load %arg7[%c0, %c0_1] : memref<20x64xf32, #tpu.memory_space<vmem>>, vector<20x64xf32>
    %c0_2 = arith.constant 0 : index
    %c0_3 = arith.constant 0 : index
    %4 = vector.load %arg3[%c0_2, %c0_3] : memref<20x32xbf16, #tpu.memory_space<vmem>>, vector<20x32xbf16>
    %c0_4 = arith.constant 0 : index
    %c0_5 = arith.constant 0 : index
    %5 = vector.load %arg4[%c0_4, %c0_5] : memref<32x64xbf16, #tpu.memory_space<vmem>>, vector<32x64xbf16>
    %cst = arith.constant dense<0.000000e+00> : vector<20x64xf32>
    %6 = tpu.matmul %4, %5, %cst {dimension_numbers = #tpu.dot_dimension_numbers<[1], [0], [0], [1], [0, 0, 1, 1], [], []>} : vector<20x32xbf16>, vector<32x64xbf16>, vector<20x64xf32> -> vector<20x64xf32>
    %7 = arith.addf %3, %6 : vector<20x64xf32>
    %c0_6 = arith.constant 0 : index
    %c0_7 = arith.constant 0 : index
    %8 = vector.load %arg7[%c0_6, %c0_7] : memref<20x64xf32, #tpu.memory_space<vmem>>, vector<20x64xf32>
    tpu.vector_store %arg7[%c0_6, %c0_7], %7 {strides = array<i32>} : memref<20x64xf32, #tpu.memory_space<vmem>>, vector<20x64xf32>,
    %c0_i32_8 = arith.constant 0 : i32
    %9 = arith.cmpi eq, %arg2, %c0_i32_8 : i32
    %10 = arith.extui %9 : i1 to i32
    %c0_i32_9 = arith.constant 0 : i32
    %11 = arith.cmpi ne, %10, %c0_i32_9 : i32
    scf.if %11 {
      %c0_10 = arith.constant 0 : index
      %c0_11 = arith.constant 0 : index
      %12 = vector.load %arg7[%c0_10, %c0_11] : memref<20x64xf32, #tpu.memory_space<vmem>>, vector<20x64xf32>
      %c0_12 = arith.constant 0 : index
      %c0_13 = arith.constant 0 : index
      %13 = vector.load %arg5[%c0_12, %c0_13] : memref<1x64xf32, #tpu.memory_space<vmem>>, vector<1x64xf32>
      %14 = vector.broadcast %13 : vector<1x64xf32> to vector<20x64xf32>
      %15 = arith.addf %12, %14 : vector<20x64xf32>
      %16 = arith.truncf %15 : vector<20x64xf32> to vector<20x64xbf16>
      %c0_14 = arith.constant 0 : index
      %c0_15 = arith.constant 0 : index
      %17 = vector.load %arg6[%c0_14, %c0_15] : memref<20x64xbf16, #tpu.memory_space<vmem>>, vector<20x64xbf16>
      tpu.vector_store %arg6[%c0_14, %c0_15], %16 {strides = array<i32>} : memref<20x64xbf16, #tpu.memory_space<vmem>>, vector<20x64xbf16>,
    } else {
    }
    return
  }
  func.func @transform_0(%arg0: i32, %arg1: i32, %arg2: i32) -> (i32, i32) {
    %c0_i32 = arith.constant 0 : i32
    return %arg0, %arg2 : i32, i32
  }
  func.func @transform_1(%arg0: i32, %arg1: i32, %arg2: i32) -> (i32, i32) {
    %c0_i32 = arith.constant 0 : i32
    return %arg2, %arg1 : i32, i32
  }
  func.func @transform_2(%arg0: i32, %arg1: i32, %arg2: i32) -> (i32, i32) {
    %c0_i32 = arith.constant 0 : i32
    %c0_i32_0 = arith.constant 0 : i32
    return %c0_i32, %arg1 : i32, i32
  }
  func.func @transform_3(%arg0: i32, %arg1: i32, %arg2: i32) -> (i32, i32) {
    %c0_i32 = arith.constant 0 : i32
    return %arg0, %arg1 : i32, i32
  }
}

module attributes {stable_mosaic.version = 11 : i64} {
  func.func @_cross_attn_kernel(%arg0: i32, %arg1: memref<1x8x32xbf16, #tpu.memory_space<vmem>>, %arg2: memref<1x10x64xbf16, #tpu.memory_space<vmem>>, %arg3: memref<1x8x32xbf16, #tpu.memory_space<vmem>>) attributes {dimension_semantics = [#tpu.dimension_semantics<parallel>], iteration_bounds = array<i64: 2>, scalar_prefetch = 0 : i64, scratch_operands = 0 : i64, tpu.core_type = #tpu.core_type<tc>, window_params = [{transform_indices = @transform_0, window_bounds = array<i64: 1, 8, 32>}, {transform_indices = @transform_1, window_bounds = array<i64: 1, 10, 64>}, {transform_indices = @transform_2, window_bounds = array<i64: 1, 8, 32>}]} {
    %c0 = arith.constant 0 : index
    %c0_0 = arith.constant 0 : index
    %c0_1 = arith.constant 0 : index
    %0 = vector.load %arg1[%c0, %c0_0, %c0_1] : memref<1x8x32xbf16, #tpu.memory_space<vmem>>, vector<1x8x32xbf16>
    %1 = vector.shape_cast %0 : vector<1x8x32xbf16> to vector<8x32xbf16>
    %c0_2 = arith.constant 0 : index
    %c0_3 = arith.constant 0 : index
    %c0_4 = arith.constant 0 : index
    %2 = vector.load %arg2[%c0_2, %c0_3, %c0_4] : memref<1x10x64xbf16, #tpu.memory_space<vmem>>, vector<1x10x64xbf16>
    %3 = vector.shape_cast %2 : vector<1x10x64xbf16> to vector<10x64xbf16>
    %4 = vector.extract_strided_slice %1 {offsets = [0, 0], sizes = [8, 8], strides = [1, 1]} : vector<8x32xbf16> to vector<8x8xbf16>
    %5 = arith.extf %4 : vector<8x8xbf16> to vector<8x8xf32>
    %cst = arith.constant 0.353553385 : f32
    %6 = vector.broadcast %cst : f32 to vector<8x8xf32>
    %7 = arith.mulf %5, %6 : vector<8x8xf32>
    %8 = vector.extract_strided_slice %3 {offsets = [0, 0], sizes = [10, 8], strides = [1, 1]} : vector<10x64xbf16> to vector<10x8xbf16>
    %9 = arith.extf %8 : vector<10x8xbf16> to vector<10x8xf32>
    %10 = vector.extract_strided_slice %3 {offsets = [0, 32], sizes = [10, 8], strides = [1, 1]} : vector<10x64xbf16> to vector<10x8xbf16>
    %cst_5 = arith.constant dense<0.000000e+00> : vector<8x10xf32>
    %11 = tpu.matmul %7, %9, %cst_5 {dimension_numbers = #tpu.dot_dimension_numbers<[1], [1], [0], [0], [0, 0, 1, 0], [], []>} : vector<8x8xf32>, vector<10x8xf32>, vector<8x10xf32> -> vector<8x10xf32>
    %cst_6 = arith.constant dense<0xFF800000> : vector<8xf32>
    %12 = vector.multi_reduction <maximumf>, %11, %cst_6 [1] : vector<8x10xf32> to vector<8xf32>
    %13 = vector.shape_cast %12 : vector<8xf32> to vector<8x1xf32>
    %14 = vector.broadcast %13 : vector<8x1xf32> to vector<8x10xf32>
    %15 = arith.subf %11, %14 : vector<8x10xf32>
    %16 = math.exp %15 : vector<8x10xf32>
    %cst_7 = arith.constant dense<0.000000e+00> : vector<8xf32>
    %17 = vector.multi_reduction <add>, %16, %cst_7 [1] : vector<8x10xf32> to vector<8xf32>
    %18 = vector.shape_cast %17 : vector<8xf32> to vector<8x1xf32>
    %19 = tpu.reciprocal %18 {approx = true} : vector<8x1xf32> -> vector<8x1xf32>
    %20 = vector.broadcast %19 : vector<8x1xf32> to vector<8x10xf32>
    %21 = arith.mulf %16, %20 : vector<8x10xf32>
    %22 = arith.truncf %21 : vector<8x10xf32> to vector<8x10xbf16>
    %cst_8 = arith.constant dense<0.000000e+00> : vector<8x8xf32>
    %23 = tpu.matmul %22, %10, %cst_8 {dimension_numbers = #tpu.dot_dimension_numbers<[1], [0], [0], [1], [0, 0, 1, 1], [], []>} : vector<8x10xbf16>, vector<10x8xbf16>, vector<8x8xf32> -> vector<8x8xf32>
    %24 = vector.extract_strided_slice %1 {offsets = [0, 8], sizes = [8, 8], strides = [1, 1]} : vector<8x32xbf16> to vector<8x8xbf16>
    %25 = arith.extf %24 : vector<8x8xbf16> to vector<8x8xf32>
    %cst_9 = arith.constant 0.353553385 : f32
    %26 = vector.broadcast %cst_9 : f32 to vector<8x8xf32>
    %27 = arith.mulf %25, %26 : vector<8x8xf32>
    %28 = vector.extract_strided_slice %3 {offsets = [0, 8], sizes = [10, 8], strides = [1, 1]} : vector<10x64xbf16> to vector<10x8xbf16>
    %29 = arith.extf %28 : vector<10x8xbf16> to vector<10x8xf32>
    %30 = vector.extract_strided_slice %3 {offsets = [0, 40], sizes = [10, 8], strides = [1, 1]} : vector<10x64xbf16> to vector<10x8xbf16>
    %cst_10 = arith.constant dense<0.000000e+00> : vector<8x10xf32>
    %31 = tpu.matmul %27, %29, %cst_10 {dimension_numbers = #tpu.dot_dimension_numbers<[1], [1], [0], [0], [0, 0, 1, 0], [], []>} : vector<8x8xf32>, vector<10x8xf32>, vector<8x10xf32> -> vector<8x10xf32>
    %cst_11 = arith.constant dense<0xFF800000> : vector<8xf32>
    %32 = vector.multi_reduction <maximumf>, %31, %cst_11 [1] : vector<8x10xf32> to vector<8xf32>
    %33 = vector.shape_cast %32 : vector<8xf32> to vector<8x1xf32>
    %34 = vector.broadcast %33 : vector<8x1xf32> to vector<8x10xf32>
    %35 = arith.subf %31, %34 : vector<8x10xf32>
    %36 = math.exp %35 : vector<8x10xf32>
    %cst_12 = arith.constant dense<0.000000e+00> : vector<8xf32>
    %37 = vector.multi_reduction <add>, %36, %cst_12 [1] : vector<8x10xf32> to vector<8xf32>
    %38 = vector.shape_cast %37 : vector<8xf32> to vector<8x1xf32>
    %39 = tpu.reciprocal %38 {approx = true} : vector<8x1xf32> -> vector<8x1xf32>
    %40 = vector.broadcast %39 : vector<8x1xf32> to vector<8x10xf32>
    %41 = arith.mulf %36, %40 : vector<8x10xf32>
    %42 = arith.truncf %41 : vector<8x10xf32> to vector<8x10xbf16>
    %cst_13 = arith.constant dense<0.000000e+00> : vector<8x8xf32>
    %43 = tpu.matmul %42, %30, %cst_13 {dimension_numbers = #tpu.dot_dimension_numbers<[1], [0], [0], [1], [0, 0, 1, 1], [], []>} : vector<8x10xbf16>, vector<10x8xbf16>, vector<8x8xf32> -> vector<8x8xf32>
    %44 = vector.extract_strided_slice %1 {offsets = [0, 16], sizes = [8, 8], strides = [1, 1]} : vector<8x32xbf16> to vector<8x8xbf16>
    %45 = arith.extf %44 : vector<8x8xbf16> to vector<8x8xf32>
    %cst_14 = arith.constant 0.353553385 : f32
    %46 = vector.broadcast %cst_14 : f32 to vector<8x8xf32>
    %47 = arith.mulf %45, %46 : vector<8x8xf32>
    %48 = vector.extract_strided_slice %3 {offsets = [0, 16], sizes = [10, 8], strides = [1, 1]} : vector<10x64xbf16> to vector<10x8xbf16>
    %49 = arith.extf %48 : vector<10x8xbf16> to vector<10x8xf32>
    %50 = vector.extract_strided_slice %3 {offsets = [0, 48], sizes = [10, 8], strides = [1, 1]} : vector<10x64xbf16> to vector<10x8xbf16>
    %cst_15 = arith.constant dense<0.000000e+00> : vector<8x10xf32>
    %51 = tpu.matmul %47, %49, %cst_15 {dimension_numbers = #tpu.dot_dimension_numbers<[1], [1], [0], [0], [0, 0, 1, 0], [], []>} : vector<8x8xf32>, vector<10x8xf32>, vector<8x10xf32> -> vector<8x10xf32>
    %cst_16 = arith.constant dense<0xFF800000> : vector<8xf32>
    %52 = vector.multi_reduction <maximumf>, %51, %cst_16 [1] : vector<8x10xf32> to vector<8xf32>
    %53 = vector.shape_cast %52 : vector<8xf32> to vector<8x1xf32>
    %54 = vector.broadcast %53 : vector<8x1xf32> to vector<8x10xf32>
    %55 = arith.subf %51, %54 : vector<8x10xf32>
    %56 = math.exp %55 : vector<8x10xf32>
    %cst_17 = arith.constant dense<0.000000e+00> : vector<8xf32>
    %57 = vector.multi_reduction <add>, %56, %cst_17 [1] : vector<8x10xf32> to vector<8xf32>
    %58 = vector.shape_cast %57 : vector<8xf32> to vector<8x1xf32>
    %59 = tpu.reciprocal %58 {approx = true} : vector<8x1xf32> -> vector<8x1xf32>
    %60 = vector.broadcast %59 : vector<8x1xf32> to vector<8x10xf32>
    %61 = arith.mulf %56, %60 : vector<8x10xf32>
    %62 = arith.truncf %61 : vector<8x10xf32> to vector<8x10xbf16>
    %cst_18 = arith.constant dense<0.000000e+00> : vector<8x8xf32>
    %63 = tpu.matmul %62, %50, %cst_18 {dimension_numbers = #tpu.dot_dimension_numbers<[1], [0], [0], [1], [0, 0, 1, 1], [], []>} : vector<8x10xbf16>, vector<10x8xbf16>, vector<8x8xf32> -> vector<8x8xf32>
    %64 = vector.extract_strided_slice %1 {offsets = [0, 24], sizes = [8, 8], strides = [1, 1]} : vector<8x32xbf16> to vector<8x8xbf16>
    %65 = arith.extf %64 : vector<8x8xbf16> to vector<8x8xf32>
    %cst_19 = arith.constant 0.353553385 : f32
    %66 = vector.broadcast %cst_19 : f32 to vector<8x8xf32>
    %67 = arith.mulf %65, %66 : vector<8x8xf32>
    %68 = vector.extract_strided_slice %3 {offsets = [0, 24], sizes = [10, 8], strides = [1, 1]} : vector<10x64xbf16> to vector<10x8xbf16>
    %69 = arith.extf %68 : vector<10x8xbf16> to vector<10x8xf32>
    %70 = vector.extract_strided_slice %3 {offsets = [0, 56], sizes = [10, 8], strides = [1, 1]} : vector<10x64xbf16> to vector<10x8xbf16>
    %cst_20 = arith.constant dense<0.000000e+00> : vector<8x10xf32>
    %71 = tpu.matmul %67, %69, %cst_20 {dimension_numbers = #tpu.dot_dimension_numbers<[1], [1], [0], [0], [0, 0, 1, 0], [], []>} : vector<8x8xf32>, vector<10x8xf32>, vector<8x10xf32> -> vector<8x10xf32>
    %cst_21 = arith.constant dense<0xFF800000> : vector<8xf32>
    %72 = vector.multi_reduction <maximumf>, %71, %cst_21 [1] : vector<8x10xf32> to vector<8xf32>
    %73 = vector.shape_cast %72 : vector<8xf32> to vector<8x1xf32>
    %74 = vector.broadcast %73 : vector<8x1xf32> to vector<8x10xf32>
    %75 = arith.subf %71, %74 : vector<8x10xf32>
    %76 = math.exp %75 : vector<8x10xf32>
    %cst_22 = arith.constant dense<0.000000e+00> : vector<8xf32>
    %77 = vector.multi_reduction <add>, %76, %cst_22 [1] : vector<8x10xf32> to vector<8xf32>
    %78 = vector.shape_cast %77 : vector<8xf32> to vector<8x1xf32>
    %79 = tpu.reciprocal %78 {approx = true} : vector<8x1xf32> -> vector<8x1xf32>
    %80 = vector.broadcast %79 : vector<8x1xf32> to vector<8x10xf32>
    %81 = arith.mulf %76, %80 : vector<8x10xf32>
    %82 = arith.truncf %81 : vector<8x10xf32> to vector<8x10xbf16>
    %cst_23 = arith.constant dense<0.000000e+00> : vector<8x8xf32>
    %83 = tpu.matmul %82, %70, %cst_23 {dimension_numbers = #tpu.dot_dimension_numbers<[1], [0], [0], [1], [0, 0, 1, 1], [], []>} : vector<8x10xbf16>, vector<10x8xbf16>, vector<8x8xf32> -> vector<8x8xf32>
    %84 = tpu.concatenate %23, %43, %63, %83 in 1 : vector<8x8xf32>, vector<8x8xf32>, vector<8x8xf32>, vector<8x8xf32> -> vector<8x32xf32>
    %85 = arith.truncf %84 : vector<8x32xf32> to vector<8x32xbf16>
    %c0_24 = arith.constant 0 : index
    %c0_25 = arith.constant 0 : index
    %c0_26 = arith.constant 0 : index
    %86 = vector.load %arg3[%c0_24, %c0_25, %c0_26] : memref<1x8x32xbf16, #tpu.memory_space<vmem>>, vector<1x8x32xbf16>
    %87 = vector.shape_cast %86 : vector<1x8x32xbf16> to vector<8x32xbf16>
    %88 = vector.shape_cast %85 : vector<8x32xbf16> to vector<1x8x32xbf16>
    tpu.vector_store %arg3[%c0_24, %c0_25, %c0_26], %88 {strides = array<i32>} : memref<1x8x32xbf16, #tpu.memory_space<vmem>>, vector<1x8x32xbf16>,
    return
  }
  func.func @transform_0(%arg0: i32) -> (i32, i32, i32) {
    %c0_i32 = arith.constant 0 : i32
    %c0_i32_0 = arith.constant 0 : i32
    %c0_i32_1 = arith.constant 0 : i32
    return %arg0, %c0_i32, %c0_i32_0 : i32, i32, i32
  }
  func.func @transform_1(%arg0: i32) -> (i32, i32, i32) {
    %c0_i32 = arith.constant 0 : i32
    %c0_i32_0 = arith.constant 0 : i32
    %c0_i32_1 = arith.constant 0 : i32
    return %arg0, %c0_i32, %c0_i32_0 : i32, i32, i32
  }
  func.func @transform_2(%arg0: i32) -> (i32, i32, i32) {
    %c0_i32 = arith.constant 0 : i32
    %c0_i32_0 = arith.constant 0 : i32
    %c0_i32_1 = arith.constant 0 : i32
    return %arg0, %c0_i32, %c0_i32_0 : i32, i32, i32
  }
}

module attributes {stable_mosaic.version = 11 : i64} {
  func.func @_linear_kernel(%arg0: i32, %arg1: i32, %arg2: i32, %arg3: memref<16x32xbf16, #tpu.memory_space<vmem>>, %arg4: memref<32x64xbf16, #tpu.memory_space<vmem>>, %arg5: memref<1x64xf32, #tpu.memory_space<vmem>>, %arg6: memref<16x64xbf16, #tpu.memory_space<vmem>>, %arg7: memref<16x64xf32, #tpu.memory_space<vmem>>) attributes {dimension_semantics = [#tpu.dimension_semantics<parallel>, #tpu.dimension_semantics<parallel>, #tpu.dimension_semantics<arbitrary>], iteration_bounds = array<i64: 1, 1, 1>, scalar_prefetch = 0 : i64, scratch_operands = 1 : i64, tpu.core_type = #tpu.core_type<tc>, window_params = [{transform_indices = @transform_0, window_bounds = array<i64: 16, 32>}, {transform_indices = @transform_1, window_bounds = array<i64: 32, 64>}, {transform_indices = @transform_2, window_bounds = array<i64: 1, 64>}, {transform_indices = @transform_3, window_bounds = array<i64: 16, 64>}]} {
    %c0_i32 = arith.constant 0 : i32
    %0 = arith.cmpi eq, %arg2, %c0_i32 : i32
    %1 = arith.extui %0 : i1 to i32
    %c0_i32_0 = arith.constant 0 : i32
    %2 = arith.cmpi ne, %1, %c0_i32_0 : i32
    scf.if %2 {
      %cst_10 = arith.constant 0.000000e+00 : f32
      %12 = vector.broadcast %cst_10 : f32 to vector<16x64xf32>
      %c0_11 = arith.constant 0 : index
      %c0_12 = arith.constant 0 : index
      %13 = vector.load %arg7[%c0_11, %c0_12] : memref<16x64xf32, #tpu.memory_space<vmem>>, vector<16x64xf32>
      tpu.vector_store %arg7[%c0_11, %c0_12], %12 {strides = array<i32>} : memref<16x64xf32, #tpu.memory_space<vmem>>, vector<16x64xf32>,
    } else {
    }
    %c0 = arith.constant 0 : index
    %c0_1 = arith.constant 0 : index
    %3 = vector.load %arg7[%c0, %c0_1] : memref<16x64xf32, #tpu.memory_space<vmem>>, vector<16x64xf32>
    %c0_2 = arith.constant 0 : index
    %c0_3 = arith.constant 0 : index
    %4 = vector.load %arg3[%c0_2, %c0_3] : memref<16x32xbf16, #tpu.memory_space<vmem>>, vector<16x32xbf16>
    %c0_4 = arith.constant 0 : index
    %c0_5 = arith.constant 0 : index
    %5 = vector.load %arg4[%c0_4, %c0_5] : memref<32x64xbf16, #tpu.memory_space<vmem>>, vector<32x64xbf16>
    %cst = arith.constant dense<0.000000e+00> : vector<16x64xf32>
    %6 = tpu.matmul %4, %5, %cst {dimension_numbers = #tpu.dot_dimension_numbers<[1], [0], [0], [1], [0, 0, 1, 1], [], []>} : vector<16x32xbf16>, vector<32x64xbf16>, vector<16x64xf32> -> vector<16x64xf32>
    %7 = arith.addf %3, %6 : vector<16x64xf32>
    %c0_6 = arith.constant 0 : index
    %c0_7 = arith.constant 0 : index
    %8 = vector.load %arg7[%c0_6, %c0_7] : memref<16x64xf32, #tpu.memory_space<vmem>>, vector<16x64xf32>
    tpu.vector_store %arg7[%c0_6, %c0_7], %7 {strides = array<i32>} : memref<16x64xf32, #tpu.memory_space<vmem>>, vector<16x64xf32>,
    %c0_i32_8 = arith.constant 0 : i32
    %9 = arith.cmpi eq, %arg2, %c0_i32_8 : i32
    %10 = arith.extui %9 : i1 to i32
    %c0_i32_9 = arith.constant 0 : i32
    %11 = arith.cmpi ne, %10, %c0_i32_9 : i32
    scf.if %11 {
      %c0_10 = arith.constant 0 : index
      %c0_11 = arith.constant 0 : index
      %12 = vector.load %arg7[%c0_10, %c0_11] : memref<16x64xf32, #tpu.memory_space<vmem>>, vector<16x64xf32>
      %c0_12 = arith.constant 0 : index
      %c0_13 = arith.constant 0 : index
      %13 = vector.load %arg5[%c0_12, %c0_13] : memref<1x64xf32, #tpu.memory_space<vmem>>, vector<1x64xf32>
      %14 = vector.broadcast %13 : vector<1x64xf32> to vector<16x64xf32>
      %15 = arith.addf %12, %14 : vector<16x64xf32>
      %cst_14 = arith.constant 0.000000e+00 : f32
      %16 = vector.broadcast %cst_14 : f32 to vector<16x64xf32>
      %17 = arith.maximumf %15, %16 : vector<16x64xf32>
      %18 = arith.truncf %17 : vector<16x64xf32> to vector<16x64xbf16>
      %c0_15 = arith.constant 0 : index
      %c0_16 = arith.constant 0 : index
      %19 = vector.load %arg6[%c0_15, %c0_16] : memref<16x64xbf16, #tpu.memory_space<vmem>>, vector<16x64xbf16>
      tpu.vector_store %arg6[%c0_15, %c0_16], %18 {strides = array<i32>} : memref<16x64xbf16, #tpu.memory_space<vmem>>, vector<16x64xbf16>,
    } else {
    }
    return
  }
  func.func @transform_0(%arg0: i32, %arg1: i32, %arg2: i32) -> (i32, i32) {
    %c0_i32 = arith.constant 0 : i32
    return %arg0, %arg2 : i32, i32
  }
  func.func @transform_1(%arg0: i32, %arg1: i32, %arg2: i32) -> (i32, i32) {
    %c0_i32 = arith.constant 0 : i32
    return %arg2, %arg1 : i32, i32
  }
  func.func @transform_2(%arg0: i32, %arg1: i32, %arg2: i32) -> (i32, i32) {
    %c0_i32 = arith.constant 0 : i32
    %c0_i32_0 = arith.constant 0 : i32
    return %c0_i32, %arg1 : i32, i32
  }
  func.func @transform_3(%arg0: i32, %arg1: i32, %arg2: i32) -> (i32, i32) {
    %c0_i32 = arith.constant 0 : i32
    return %arg0, %arg1 : i32, i32
  }
}

module attributes {stable_mosaic.version = 11 : i64} {
  func.func @_linear_kernel(%arg0: i32, %arg1: i32, %arg2: i32, %arg3: memref<16x32xbf16, #tpu.memory_space<vmem>>, %arg4: memref<32x128xbf16, #tpu.memory_space<vmem>>, %arg5: memref<1x128xf32, #tpu.memory_space<vmem>>, %arg6: memref<16x128xf32, #tpu.memory_space<vmem>>, %arg7: memref<16x128xf32, #tpu.memory_space<vmem>>) attributes {dimension_semantics = [#tpu.dimension_semantics<parallel>, #tpu.dimension_semantics<parallel>, #tpu.dimension_semantics<arbitrary>], iteration_bounds = array<i64: 1, 1, 1>, scalar_prefetch = 0 : i64, scratch_operands = 1 : i64, tpu.core_type = #tpu.core_type<tc>, window_params = [{transform_indices = @transform_0, window_bounds = array<i64: 16, 32>}, {transform_indices = @transform_1, window_bounds = array<i64: 32, 128>}, {transform_indices = @transform_2, window_bounds = array<i64: 1, 128>}, {transform_indices = @transform_3, window_bounds = array<i64: 16, 128>}]} {
    %c0_i32 = arith.constant 0 : i32
    %0 = arith.cmpi eq, %arg2, %c0_i32 : i32
    %1 = arith.extui %0 : i1 to i32
    %c0_i32_0 = arith.constant 0 : i32
    %2 = arith.cmpi ne, %1, %c0_i32_0 : i32
    scf.if %2 {
      %cst_10 = arith.constant 0.000000e+00 : f32
      %12 = vector.broadcast %cst_10 : f32 to vector<16x128xf32>
      %c0_11 = arith.constant 0 : index
      %c0_12 = arith.constant 0 : index
      %13 = vector.load %arg7[%c0_11, %c0_12] : memref<16x128xf32, #tpu.memory_space<vmem>>, vector<16x128xf32>
      tpu.vector_store %arg7[%c0_11, %c0_12], %12 {strides = array<i32>} : memref<16x128xf32, #tpu.memory_space<vmem>>, vector<16x128xf32>,
    } else {
    }
    %c0 = arith.constant 0 : index
    %c0_1 = arith.constant 0 : index
    %3 = vector.load %arg7[%c0, %c0_1] : memref<16x128xf32, #tpu.memory_space<vmem>>, vector<16x128xf32>
    %c0_2 = arith.constant 0 : index
    %c0_3 = arith.constant 0 : index
    %4 = vector.load %arg3[%c0_2, %c0_3] : memref<16x32xbf16, #tpu.memory_space<vmem>>, vector<16x32xbf16>
    %c0_4 = arith.constant 0 : index
    %c0_5 = arith.constant 0 : index
    %5 = vector.load %arg4[%c0_4, %c0_5] : memref<32x128xbf16, #tpu.memory_space<vmem>>, vector<32x128xbf16>
    %cst = arith.constant dense<0.000000e+00> : vector<16x128xf32>
    %6 = tpu.matmul %4, %5, %cst {dimension_numbers = #tpu.dot_dimension_numbers<[1], [0], [0], [1], [0, 0, 1, 1], [], []>} : vector<16x32xbf16>, vector<32x128xbf16>, vector<16x128xf32> -> vector<16x128xf32>
    %7 = arith.addf %3, %6 : vector<16x128xf32>
    %c0_6 = arith.constant 0 : index
    %c0_7 = arith.constant 0 : index
    %8 = vector.load %arg7[%c0_6, %c0_7] : memref<16x128xf32, #tpu.memory_space<vmem>>, vector<16x128xf32>
    tpu.vector_store %arg7[%c0_6, %c0_7], %7 {strides = array<i32>} : memref<16x128xf32, #tpu.memory_space<vmem>>, vector<16x128xf32>,
    %c0_i32_8 = arith.constant 0 : i32
    %9 = arith.cmpi eq, %arg2, %c0_i32_8 : i32
    %10 = arith.extui %9 : i1 to i32
    %c0_i32_9 = arith.constant 0 : i32
    %11 = arith.cmpi ne, %10, %c0_i32_9 : i32
    scf.if %11 {
      %c0_10 = arith.constant 0 : index
      %c0_11 = arith.constant 0 : index
      %12 = vector.load %arg7[%c0_10, %c0_11] : memref<16x128xf32, #tpu.memory_space<vmem>>, vector<16x128xf32>
      %c0_12 = arith.constant 0 : index
      %c0_13 = arith.constant 0 : index
      %13 = vector.load %arg5[%c0_12, %c0_13] : memref<1x128xf32, #tpu.memory_space<vmem>>, vector<1x128xf32>
      %14 = vector.broadcast %13 : vector<1x128xf32> to vector<16x128xf32>
      %15 = arith.addf %12, %14 : vector<16x128xf32>
      %c0_14 = arith.constant 0 : index
      %c0_15 = arith.constant 0 : index
      %16 = vector.load %arg6[%c0_14, %c0_15] : memref<16x128xf32, #tpu.memory_space<vmem>>, vector<16x128xf32>
      tpu.vector_store %arg6[%c0_14, %c0_15], %15 {strides = array<i32>} : memref<16x128xf32, #tpu.memory_space<vmem>>, vector<16x128xf32>,
    } else {
    }
    return
  }
  func.func @transform_0(%arg0: i32, %arg1: i32, %arg2: i32) -> (i32, i32) {
    %c0_i32 = arith.constant 0 : i32
    return %arg0, %arg2 : i32, i32
  }
  func.func @transform_1(%arg0: i32, %arg1: i32, %arg2: i32) -> (i32, i32) {
    %c0_i32 = arith.constant 0 : i32
    return %arg2, %arg1 : i32, i32
  }
  func.func @transform_2(%arg0: i32, %arg1: i32, %arg2: i32) -> (i32, i32) {
    %c0_i32 = arith.constant 0 : i32
    %c0_i32_0 = arith.constant 0 : i32
    return %c0_i32, %arg1 : i32, i32
  }
  func.func @transform_3(%arg0: i32, %arg1: i32, %arg2: i32) -> (i32, i32) {
    %c0_i32 = arith.constant 0 : i32
    return %arg0, %arg1 : i32, i32
  }
}

module attributes {stable_mosaic.version = 11 : i64} {
  func.func @_linear_res_ln_kernel(%arg0: i32, %arg1: i32, %arg2: memref<16x64xbf16, #tpu.memory_space<vmem>>, %arg3: memref<64x32xbf16, #tpu.memory_space<vmem>>, %arg4: memref<1x32xf32, #tpu.memory_space<vmem>>, %arg5: memref<16x32xbf16, #tpu.memory_space<vmem>>, %arg6: memref<1x32xf32, #tpu.memory_space<vmem>>, %arg7: memref<1x32xf32, #tpu.memory_space<vmem>>, %arg8: memref<16x32xbf16, #tpu.memory_space<vmem>>, %arg9: memref<16x32xf32, #tpu.memory_space<vmem>>) attributes {dimension_semantics = [#tpu.dimension_semantics<parallel>, #tpu.dimension_semantics<arbitrary>], iteration_bounds = array<i64: 1, 1>, scalar_prefetch = 0 : i64, scratch_operands = 1 : i64, tpu.core_type = #tpu.core_type<tc>, window_params = [{transform_indices = @transform_0, window_bounds = array<i64: 16, 64>}, {transform_indices = @transform_1, window_bounds = array<i64: 64, 32>}, {pipeline_mode = #tpu.pipeline_mode<synchronous>, transform_indices = @transform_2, window_bounds = array<i64: 1, 32>}, {transform_indices = @transform_3, window_bounds = array<i64: 16, 32>}, {pipeline_mode = #tpu.pipeline_mode<synchronous>, transform_indices = @transform_4, window_bounds = array<i64: 1, 32>}, {pipeline_mode = #tpu.pipeline_mode<synchronous>, transform_indices = @transform_5, window_bounds = array<i64: 1, 32>}, {transform_indices = @transform_6, window_bounds = array<i64: 16, 32>}]} {
    %c0_i32 = arith.constant 0 : i32
    %0 = arith.cmpi eq, %arg1, %c0_i32 : i32
    %1 = arith.extui %0 : i1 to i32
    %c0_i32_0 = arith.constant 0 : i32
    %2 = arith.cmpi ne, %1, %c0_i32_0 : i32
    scf.if %2 {
      %cst_10 = arith.constant 0.000000e+00 : f32
      %12 = vector.broadcast %cst_10 : f32 to vector<16x32xf32>
      %c0_11 = arith.constant 0 : index
      %c0_12 = arith.constant 0 : index
      %13 = vector.load %arg9[%c0_11, %c0_12] : memref<16x32xf32, #tpu.memory_space<vmem>>, vector<16x32xf32>
      tpu.vector_store %arg9[%c0_11, %c0_12], %12 {strides = array<i32>} : memref<16x32xf32, #tpu.memory_space<vmem>>, vector<16x32xf32>,
    } else {
    }
    %c0 = arith.constant 0 : index
    %c0_1 = arith.constant 0 : index
    %3 = vector.load %arg9[%c0, %c0_1] : memref<16x32xf32, #tpu.memory_space<vmem>>, vector<16x32xf32>
    %c0_2 = arith.constant 0 : index
    %c0_3 = arith.constant 0 : index
    %4 = vector.load %arg2[%c0_2, %c0_3] : memref<16x64xbf16, #tpu.memory_space<vmem>>, vector<16x64xbf16>
    %c0_4 = arith.constant 0 : index
    %c0_5 = arith.constant 0 : index
    %5 = vector.load %arg3[%c0_4, %c0_5] : memref<64x32xbf16, #tpu.memory_space<vmem>>, vector<64x32xbf16>
    %cst = arith.constant dense<0.000000e+00> : vector<16x32xf32>
    %6 = tpu.matmul %4, %5, %cst {dimension_numbers = #tpu.dot_dimension_numbers<[1], [0], [0], [1], [0, 0, 1, 1], [], []>} : vector<16x64xbf16>, vector<64x32xbf16>, vector<16x32xf32> -> vector<16x32xf32>
    %7 = arith.addf %3, %6 : vector<16x32xf32>
    %c0_6 = arith.constant 0 : index
    %c0_7 = arith.constant 0 : index
    %8 = vector.load %arg9[%c0_6, %c0_7] : memref<16x32xf32, #tpu.memory_space<vmem>>, vector<16x32xf32>
    tpu.vector_store %arg9[%c0_6, %c0_7], %7 {strides = array<i32>} : memref<16x32xf32, #tpu.memory_space<vmem>>, vector<16x32xf32>,
    %c0_i32_8 = arith.constant 0 : i32
    %9 = arith.cmpi eq, %arg1, %c0_i32_8 : i32
    %10 = arith.extui %9 : i1 to i32
    %c0_i32_9 = arith.constant 0 : i32
    %11 = arith.cmpi ne, %10, %c0_i32_9 : i32
    scf.if %11 {
      %c0_10 = arith.constant 0 : index
      %c0_11 = arith.constant 0 : index
      %12 = vector.load %arg9[%c0_10, %c0_11] : memref<16x32xf32, #tpu.memory_space<vmem>>, vector<16x32xf32>
      %c0_12 = arith.constant 0 : index
      %c0_13 = arith.constant 0 : index
      %13 = vector.load %arg4[%c0_12, %c0_13] : memref<1x32xf32, #tpu.memory_space<vmem>>, vector<1x32xf32>
      %14 = vector.broadcast %13 : vector<1x32xf32> to vector<16x32xf32>
      %15 = arith.addf %12, %14 : vector<16x32xf32>
      %c0_14 = arith.constant 0 : index
      %c0_15 = arith.constant 0 : index
      %16 = vector.load %arg5[%c0_14, %c0_15] : memref<16x32xbf16, #tpu.memory_space<vmem>>, vector<16x32xbf16>
      %17 = arith.extf %16 : vector<16x32xbf16> to vector<16x32xf32>
      %18 = arith.addf %15, %17 : vector<16x32xf32>
      %cst_16 = arith.constant dense<0.000000e+00> : vector<16xf32>
      %19 = vector.multi_reduction <add>, %18, %cst_16 [1] : vector<16x32xf32> to vector<16xf32>
      %20 = vector.shape_cast %19 : vector<16xf32> to vector<16x1xf32>
      %cst_17 = arith.constant 3.200000e+01 : f32
      %21 = vector.broadcast %cst_17 : f32 to vector<16x1xf32>
      %22 = arith.divf %20, %21 : vector<16x1xf32>
      %23 = arith.mulf %18, %18 : vector<16x32xf32>
      %cst_18 = arith.constant dense<0.000000e+00> : vector<16xf32>
      %24 = vector.multi_reduction <add>, %23, %cst_18 [1] : vector<16x32xf32> to vector<16xf32>
      %25 = vector.shape_cast %24 : vector<16xf32> to vector<16x1xf32>
      %cst_19 = arith.constant 3.200000e+01 : f32
      %26 = vector.broadcast %cst_19 : f32 to vector<16x1xf32>
      %27 = arith.divf %25, %26 : vector<16x1xf32>
      %28 = arith.mulf %22, %22 : vector<16x1xf32>
      %29 = arith.subf %27, %28 : vector<16x1xf32>
      %30 = vector.broadcast %22 : vector<16x1xf32> to vector<16x32xf32>
      %31 = arith.subf %18, %30 : vector<16x32xf32>
      %cst_20 = arith.constant 9.99999974E-6 : f32
      %32 = vector.broadcast %cst_20 : f32 to vector<16x1xf32>
      %33 = arith.addf %29, %32 : vector<16x1xf32>
      %34 = math.rsqrt %33 : vector<16x1xf32>
      %35 = vector.broadcast %34 : vector<16x1xf32> to vector<16x32xf32>
      %36 = arith.mulf %31, %35 : vector<16x32xf32>
      %c0_21 = arith.constant 0 : index
      %c0_22 = arith.constant 0 : index
      %37 = vector.load %arg6[%c0_21, %c0_22] : memref<1x32xf32, #tpu.memory_space<vmem>>, vector<1x32xf32>
      %38 = vector.broadcast %37 : vector<1x32xf32> to vector<16x32xf32>
      %39 = arith.mulf %36, %38 : vector<16x32xf32>
      %c0_23 = arith.constant 0 : index
      %c0_24 = arith.constant 0 : index
      %40 = vector.load %arg7[%c0_23, %c0_24] : memref<1x32xf32, #tpu.memory_space<vmem>>, vector<1x32xf32>
      %41 = vector.broadcast %40 : vector<1x32xf32> to vector<16x32xf32>
      %42 = arith.addf %39, %41 : vector<16x32xf32>
      %43 = arith.truncf %42 : vector<16x32xf32> to vector<16x32xbf16>
      %c0_25 = arith.constant 0 : index
      %c0_26 = arith.constant 0 : index
      %44 = vector.load %arg8[%c0_25, %c0_26] : memref<16x32xbf16, #tpu.memory_space<vmem>>, vector<16x32xbf16>
      tpu.vector_store %arg8[%c0_25, %c0_26], %43 {strides = array<i32>} : memref<16x32xbf16, #tpu.memory_space<vmem>>, vector<16x32xbf16>,
    } else {
    }
    return
  }
  func.func @transform_0(%arg0: i32, %arg1: i32) -> (i32, i32) {
    %c0_i32 = arith.constant 0 : i32
    return %arg0, %arg1 : i32, i32
  }
  func.func @transform_1(%arg0: i32, %arg1: i32) -> (i32, i32) {
    %c0_i32 = arith.constant 0 : i32
    %c0_i32_0 = arith.constant 0 : i32
    return %arg1, %c0_i32 : i32, i32
  }
  func.func @transform_2(%arg0: i32, %arg1: i32) -> (i32, i32) {
    %c0_i32 = arith.constant 0 : i32
    %c0_i32_0 = arith.constant 0 : i32
    %c0_i32_1 = arith.constant 0 : i32
    return %c0_i32, %c0_i32_0 : i32, i32
  }
  func.func @transform_3(%arg0: i32, %arg1: i32) -> (i32, i32) {
    %c0_i32 = arith.constant 0 : i32
    %c0_i32_0 = arith.constant 0 : i32
    return %arg0, %c0_i32 : i32, i32
  }
  func.func @transform_4(%arg0: i32, %arg1: i32) -> (i32, i32) {
    %c0_i32 = arith.constant 0 : i32
    %c0_i32_0 = arith.constant 0 : i32
    %c0_i32_1 = arith.constant 0 : i32
    return %c0_i32, %c0_i32_0 : i32, i32
  }
  func.func @transform_5(%arg0: i32, %arg1: i32) -> (i32, i32) {
    %c0_i32 = arith.constant 0 : i32
    %c0_i32_0 = arith.constant 0 : i32
    %c0_i32_1 = arith.constant 0 : i32
    return %c0_i32, %c0_i32_0 : i32, i32
  }
  func.func @transform_6(%arg0: i32, %arg1: i32) -> (i32, i32) {
    %c0_i32 = arith.constant 0 : i32
    %c0_i32_0 = arith.constant 0 : i32
    return %arg0, %c0_i32 : i32, i32
  }
}

</mosaic_0001>

<llo_original>
// kernel: gpt_decoder_forward.20
$region0: #{gpt_decoder_forward.20}
  #allocation0 [shape = 'u32[]', space=smem, size = 0x4, offset = 0x4, fixed_abs, tag = 'smem constant byte address 0x4 - core index']
  #allocation1 [shape = 'u32[144,128]{1,0:T(1,128)}', space=vmem, size = 0x12000, scoped, tag = 'internal scratch']
  %s0 = inlined_call_operand.vmem [shape: bf16[2,8,96], index: 0, kind: input, shape index: {}]
  %s1 = inlined_call_operand.vmem [shape: bf16[2,8,32], index: 1, kind: output, shape index: {}]
  %s2 = sld [smem:[#allocation0]]
  $region37: #{gpt_decoder_forward.20} parent=0
    _
  %s4 = ssub.s32 1, %s2
  %s5 = scalar_select 0, %s4, %s2
  loop: start=0, step=1, limit=4
  $region2: #{gpt_decoder_forward.20} parent=0 // loop_pre_header
    _
  $region3: #{gpt_decoder_forward.20} parent=0 // loop_header
    %s7 = sphi 0, %s11
    %p8 = scmp.ge.s32.totalorder %s7, 4
    %s17 = sphi 0, %s19
    %s20 = sphi 0, %s17
    %s21 = sphi 0, %s20
    %s37 = sphi 0, %s21
    %s43 = sphi 0, %s45
    %s46 = sphi 0, %s43
    %s47 = sphi 0, %s46
    %s63 = sphi 0, %s47
  $region4: #{gpt_decoder_forward.20} parent=0 // loop_header_branch
    %10 = sbr.rel (%p8) target = $region8
  $region5: #{gpt_decoder_forward.20} parent=0 // loop_body
    %s12 = ssub.s32 %s7, 1
    %s13 = ssub.s32 %s7, 2
    %s14 = sadd.s32 %s7, 1
    %s15 = ssub.s32 %s7, %s14
    %p16 = scmp.eq.s32.totalorder %s15, 0
    %s18 = sadd.s32 %s17, 1
    %s19 = scalar_select %p16, %s17, %s18
    %p22 = pneg %p16
    %p23 = scmp.eq.s32.totalorder %s7, 1
    %p24 = por %p22, %p23
    %p25 = scmp.ne.s32.totalorder %s17, %s20
    %p26 = scmp.eq.s32.totalorder %s7, 0
    %p27 = por %p25, %p26
    %p28 = scmp.ne.s32.totalorder %s17, %s20
    %p29 = scmp.eq.s32.totalorder %s12, 1
    %p30 = por %p28, %p29
    %p31 = scmp.ne.s32.totalorder %s20, %s21
    %p32 = scmp.eq.s32.totalorder %s12, 0
    %p33 = por %p31, %p32
    %p34 = scmp.ne.s32.totalorder %s20, %s21
    %p35 = scmp.eq.s32.totalorder %s13, 1
    %p36 = por %p34, %p35
    %p38 = scmp.ne.s32.totalorder %s21, %s37
    %p39 = scmp.eq.s32.totalorder %s13, 0
    %p40 = por %p38, %p39
    %s41 = ssub.s32 %s7, %s14
    %p42 = scmp.eq.s32.totalorder %s41, 0
    %s44 = sadd.s32 %s43, 1
    %s45 = scalar_select %p42, %s43, %s44
    %p48 = pneg %p42
    %p49 = scmp.eq.s32.totalorder %s7, 1
    %p50 = por %p48, %p49
    %p51 = scmp.ne.s32.totalorder %s43, %s46
    %p52 = scmp.eq.s32.totalorder %s7, 0
    %p53 = por %p51, %p52
    %p54 = scmp.ne.s32.totalorder %s43, %s46
    %p55 = scmp.eq.s32.totalorder %s12, 1
    %p56 = por %p54, %p55
    %p57 = scmp.ne.s32.totalorder %s46, %s47
    %p58 = scmp.eq.s32.totalorder %s12, 0
    %p59 = por %p57, %p58
    %p60 = scmp.ne.s32.totalorder %s46, %s47
    %p61 = scmp.eq.s32.totalorder %s13, 1
    %p62 = por %p60, %p61
    %p64 = scmp.ne.s32.totalorder %s47, %s63
    %p65 = scmp.eq.s32.totalorder %s13, 0
    %p66 = por %p64, %p65
    %p67 = scmp.le.s32.totalorder 1, %s7
    %p68 = scmp.lt.s32.totalorder %s7, 3
    %p69 = pnand %p67, %p68
    %p70 = pneg %p69
    // Predicated region
    $region9: #{gpt_decoder_forward.20} parent=5 // pred_check
      _
    $region10: #{gpt_decoder_forward.20} parent=5 // pred_check_branch
      %72 = sbr.rel (%p69) target = $region12
    $region11: #{gpt_decoder_forward.20} parent=5 // pred_region
      %s73 = ssub.s32 %s7, 1
    $region12: #{gpt_decoder_forward.20} parent=5 // pred_fallthru
      _
    %p74 = scmp.lt.s32.totalorder %s7, 2
    // Predicated region
    $region13: #{gpt_decoder_forward.20} parent=5 // pred_check
      %p75 = pneg %p74
    $region14: #{gpt_decoder_forward.20} parent=5 // pred_check_branch
      %77 = sbr.rel (%p75) target = $region16
    $region15: #{gpt_decoder_forward.20} parent=5 // pred_region
      // Predicated region
      $region17: #{gpt_decoder_forward.20} parent=15 // pred_check
        %p78 = pneg %p27
      $region18: #{gpt_decoder_forward.20} parent=15 // pred_check_branch
        %80 = sbr.rel (%p78) target = $region20
      $region19: #{gpt_decoder_forward.20} parent=15 // pred_region
        %p81 = scmp.lt.s32.totalorder %s7, 1
        %s82 = scalar_select %p81, %s7, 1
        %s83 = smul.addr %s82, 4
        %s84 = scalar_lea.vmem %s0, %s83
      $region20: #{gpt_decoder_forward.20} parent=15 // pred_fallthru
        _
    $region16: #{gpt_decoder_forward.20} parent=5 // pred_fallthru
      _
    %p85 = scmp.le.s32.totalorder 1, %s7
    %p86 = scmp.lt.s32.totalorder %s7, 3
    %p87 = pnand %p85, %p86
    %p88 = pneg %p87
    // Predicated region
    $region21: #{gpt_decoder_forward.20} parent=5 // pred_check
      _
    $region22: #{gpt_decoder_forward.20} parent=5 // pred_check_branch
      %90 = sbr.rel (%p87) target = $region24
    $region23: #{gpt_decoder_forward.20} parent=5 // pred_region
      %s91 = ssub.s32 %s7, 1
      %p92 = scmp.lt.s32.totalorder %s12, 1
      %s93 = scalar_select %p92, %s12, 1
      %s94 = smul.addr %s93, 4
      %s95 = scalar_lea.vmem %s0, %s94
      %p96 = pneg %p33
      %p97 = pneg %p30
      %p98 = pneg %p59
      %p99 = pneg %p56
      %p100 = scmp.lt.s32.totalorder %s12, 1
      %s101 = scalar_select %p100, %s12, 1
      %s102 = smul.addr %s101, 4
      %s103 = scalar_lea.vmem %s1, %s102
      %p104 = scmp.lt.s32.totalorder %s12, 1
      %s105 = scalar_select %p104, %s12, 1
      %s106 = smul.addr %s105, 4
      %s107 = scalar_lea.vmem %s0, %s106
      %p108 = scmp.lt.s32.totalorder %s12, 1
      %s109 = scalar_select %p108, %s12, 1
      %s110 = smul.addr %s109, 4
      %s111 = scalar_lea.vmem %s1, %s110
      %v113 = vld [vmem:[%s107] sm:$0xf]
      %v114 = vlaneseq
      %v115 = vshrl.u32 %v114, 7
      %v116 = vlaneseq
      %v117 = vand.u32 %v116, 127
      %vm118 = vcmp.ge.s32.totalorder %v115, %v117
      %v119 = vunpack.c.l.bf16 %v113
      %v120 = vmul.f32 %v119, 0.35355338
      %122 = vrot.lane.b32.xlu0 %v119, 96
      %v123 = vpop.permute.xlu0 %122
      %vm124 = vcmask 64512
      %v126 = vsel %vm124, %v120, 0
      %v128 = vsel %vm124, %v123, 0
      %130 = vmatprep.subr.mxu0 0.0
      %131 = vmatpush1.xpose.msra.mxu0 0.0
      %132 = vmatprep.subr.mxu0 0.0
      %133 = vmatpush1.xpose.msra.mxu0 0.0
      %134 = vmatprep.subr.mxu0 0.0
      %135 = vmatpush1.xpose.msra.mxu0 0.0
      %136 = vmatprep.subr.mxu0 0.0
      %137 = vmatpush1.xpose.msra.mxu0 0.0
      %138 = vmatprep.subr.mxu0 0.0
      %139 = vmatpush1.xpose.msra.mxu0 0.0
      %140 = vmatprep.subr.mxu0 0.0
      %141 = vmatpush1.xpose.msra.mxu0 0.0
      %142 = vmatprep.subr.mxu0 0.0
      %143 = vmatpush1.xpose.msra.mxu0 0.0
      %144 = vmatprep.subr.mxu0 0.0
      %145 = vmatpush1.xpose.msra.mxu0 0.0
      %146 = vmatprep.subr.mxu0 0.0
      %147 = vmatpush1.xpose.msra.mxu0 0.0
      %148 = vmatprep.subr.mxu0 0.0
      %149 = vmatpush1.xpose.msra.mxu0 0.0
      %150 = vmatprep.subr.mxu0 0.0
      %151 = vmatpush1.xpose.msra.mxu0 0.0
      %152 = vmatprep.subr.mxu0 0.0
      %153 = vmatpush1.xpose.msra.mxu0 0.0
      %154 = vmatprep.subr.mxu0 0.0
      %155 = vmatpush1.xpose.msra.mxu0 0.0
      %156 = vmatprep.subr.mxu0 0.0
      %157 = vmatpush1.xpose.msra.mxu0 0.0
      %158 = vmatprep.subr.mxu0 0.0
      %159 = vmatpush1.xpose.msra.mxu0 0.0
      %160 = vmatprep.subr.mxu0 0.0
      %161 = vmatpush1.xpose.msra.mxu0 %v128
      %162 = vmatprep.subr.mxu0 0.0
      %163 = vmatpush2.xpose.msra.mxu0 0.0
      %164 = vmatprep.subr.mxu0 0.0
      %165 = vmatpush2.xpose.msra.mxu0 0.0
      %166 = vmatprep.subr.mxu0 0.0
      %167 = vmatpush2.xpose.msra.mxu0 0.0
      %168 = vmatprep.subr.mxu0 0.0
      %169 = vmatpush2.xpose.msra.mxu0 0.0
      %170 = vmatprep.subr.mxu0 0.0
      %171 = vmatpush2.xpose.msra.mxu0 0.0
      %172 = vmatprep.subr.mxu0 0.0
      %173 = vmatpush2.xpose.msra.mxu0 0.0
      %174 = vmatprep.subr.mxu0 0.0
      %175 = vmatpush2.xpose.msra.mxu0 0.0
      %176 = vmatprep.subr.mxu0 0.0
      %177 = vmatpush2.xpose.msra.mxu0 0.0
      %178 = vmatprep.subr.mxu0 0.0
      %179 = vmatpush2.xpose.msra.mxu0 0.0
      %180 = vmatprep.subr.mxu0 0.0
      %181 = vmatpush2.xpose.msra.mxu0 0.0
      %182 = vmatprep.subr.mxu0 0.0
      %183 = vmatpush2.xpose.msra.mxu0 0.0
      %184 = vmatprep.subr.mxu0 0.0
      %185 = vmatpush2.xpose.msra.mxu0 0.0
      %186 = vmatprep.subr.mxu0 0.0
      %187 = vmatpush2.xpose.msra.mxu0 0.0
      %188 = vmatprep.subr.mxu0 0.0
      %189 = vmatpush2.xpose.msra.mxu0 0.0
      %190 = vmatprep.subr.mxu0 0.0
      %191 = vmatpush2.xpose.msra.mxu0 0.0
      %192 = vmatprep.subr.mxu0 0.0
      %193 = vmatpush2.xpose.msra.mxu0 0.0
      %194 = vmatprep.mubr.f32.mxu0 0.0
      %195 = vmatmul.mubr.f32.gmra.mxu0 %v126
      %v196 = vpop.f32.mrf.mxu0
      %v197 = vadd.f32 0.0, %v196
      %v198 = vpop.f32.mrf.mxu0
      %199 = vdwg.mxu0
      %v200 = vsel %vm118, %v197, -1e+09
      %v201 = vsel %vm124, %v200, -inf
      %202 = vmax.xlane.f32.xlu0 %v201
      %v203 = vpop.xlane.xlu0 %202
      %v204 = vsub.f32 %v200, %v203
      %v205 = vmul.f32 %v204, 1.442695
      %v206 = vpow.pop %v205
      %v207 = vsel %vm124, %v206, 0.0
      %208 = vadd.xlane.f32.xlu0 %v207
      %v209 = vpop.xlane.xlu0 %208
      %v210 = vrcp.pop %v209
      %v211 = vmul.f32 %v206, %v210
      %v212 = vpack.c.bf16 %v211, %v211
      %v214 = vunpack.c.l.b16 %v113
      %v215 = vpack.c.b16 %v214, %v214
      %216 = vrot.lane.b32.xlu0 %v215, 64
      %v217 = vpop.permute.xlu0 %216
      %v219 = vsel %vm124, %v212, 0
      %vm221 = vcmask 1043456
      %v223 = vsel %vm221, %v217, 0
      %225 = vmatprep.subr.bf16.mxu0 0
      %226 = vmatpush1.bf16.msra.mxu0 0
      %227 = vmatprep.subr.bf16.mxu0 0
      %228 = vmatpush1.bf16.msra.mxu0 0
      %229 = vmatprep.subr.bf16.mxu0 0
      %230 = vmatpush1.bf16.msra.mxu0 0
      %231 = vmatprep.subr.bf16.mxu0 0
      %232 = vmatpush1.bf16.msra.mxu0 0
      %233 = vmatprep.subr.bf16.mxu0 0
      %234 = vmatpush1.bf16.msra.mxu0 0
      %235 = vmatprep.subr.bf16.mxu0 0
      %236 = vmatpush1.bf16.msra.mxu0 0
      %237 = vmatprep.subr.bf16.mxu0 0
      %238 = vmatpush1.bf16.msra.mxu0 0
      %239 = vmatprep.subr.bf16.mxu0 0
      %240 = vmatpush1.bf16.msra.mxu0 %v223
      %241 = vmatprep.subr.bf16.mxu0 0
      %242 = vmatpush2.bf16.msra.mxu0 0
      %243 = vmatprep.subr.bf16.mxu0 0
      %244 = vmatpush2.bf16.msra.mxu0 0
      %245 = vmatprep.subr.bf16.mxu0 0
      %246 = vmatpush2.bf16.msra.mxu0 0
      %247 = vmatprep.subr.bf16.mxu0 0
      %248 = vmatpush2.bf16.msra.mxu0 0
      %249 = vmatprep.subr.bf16.mxu0 0
      %250 = vmatpush2.bf16.msra.mxu0 0
      %251 = vmatprep.subr.bf16.mxu0 0
      %252 = vmatpush2.bf16.msra.mxu0 0
      %253 = vmatprep.subr.bf16.mxu0 0
      %254 = vmatpush2.bf16.msra.mxu0 0
      %255 = vmatprep.subr.bf16.mxu0 0
      %256 = vmatpush2.bf16.msra.mxu0 0
      %257 = vmatprep.mubr.bf16.mxu0 0
      %258 = vmatmul.mubr.bf16.gmra.mxu0 %v219
      %v259 = vpop.f32.mrf.mxu0
      %v260 = vadd.f32 0.0, %v259
      %v261 = vpop.f32.mrf.mxu0
      %v262 = vpop.f32.mrf.mxu0
      %v263 = vpop.f32.mrf.mxu0
      %264 = vdwg.mxu0
      %265 = vrot.lane.b32.xlu0 %v120, 120
      %v266 = vpop.permute.xlu0 %265
      %267 = vrot.lane.b32.xlu0 %v119, 88
      %v268 = vpop.permute.xlu0 %267
      %v269 = vsel %vm124, %v266, 0
      %v271 = vsel %vm124, %v268, 0
      %273 = vmatprep.subr.mxu0 0.0
      %274 = vmatpush1.xpose.msra.mxu0 0.0
      %275 = vmatprep.subr.mxu0 0.0
      %276 = vmatpush1.xpose.msra.mxu0 0.0
      %277 = vmatprep.subr.mxu0 0.0
      %278 = vmatpush1.xpose.msra.mxu0 0.0
      %279 = vmatprep.subr.mxu0 0.0
      %280 = vmatpush1.xpose.msra.mxu0 0.0
      %281 = vmatprep.subr.mxu0 0.0
      %282 = vmatpush1.xpose.msra.mxu0 0.0
      %283 = vmatprep.subr.mxu0 0.0
      %284 = vmatpush1.xpose.msra.mxu0 0.0
      %285 = vmatprep.subr.mxu0 0.0
      %286 = vmatpush1.xpose.msra.mxu0 0.0
      %287 = vmatprep.subr.mxu0 0.0
      %288 = vmatpush1.xpose.msra.mxu0 0.0
      %289 = vmatprep.subr.mxu0 0.0
      %290 = vmatpush1.xpose.msra.mxu0 0.0
      %291 = vmatprep.subr.mxu0 0.0
      %292 = vmatpush1.xpose.msra.mxu0 0.0
      %293 = vmatprep.subr.mxu0 0.0
      %294 = vmatpush1.xpose.msra.mxu0 0.0
      %295 = vmatprep.subr.mxu0 0.0
      %296 = vmatpush1.xpose.msra.mxu0 0.0
      %297 = vmatprep.subr.mxu0 0.0
      %298 = vmatpush1.xpose.msra.mxu0 0.0
      %299 = vmatprep.subr.mxu0 0.0
      %300 = vmatpush1.xpose.msra.mxu0 0.0
      %301 = vmatprep.subr.mxu0 0.0
      %302 = vmatpush1.xpose.msra.mxu0 0.0
      %303 = vmatprep.subr.mxu0 0.0
      %304 = vmatpush1.xpose.msra.mxu0 %v271
      %305 = vmatprep.subr.mxu0 0.0
      %306 = vmatpush2.xpose.msra.mxu0 0.0
      %307 = vmatprep.subr.mxu0 0.0
      %308 = vmatpush2.xpose.msra.mxu0 0.0
      %309 = vmatprep.subr.mxu0 0.0
      %310 = vmatpush2.xpose.msra.mxu0 0.0
      %311 = vmatprep.subr.mxu0 0.0
      %312 = vmatpush2.xpose.msra.mxu0 0.0
      %313 = vmatprep.subr.mxu0 0.0
      %314 = vmatpush2.xpose.msra.mxu0 0.0
      %315 = vmatprep.subr.mxu0 0.0
      %316 = vmatpush2.xpose.msra.mxu0 0.0
      %317 = vmatprep.subr.mxu0 0.0
      %318 = vmatpush2.xpose.msra.mxu0 0.0
      %319 = vmatprep.subr.mxu0 0.0
      %320 = vmatpush2.xpose.msra.mxu0 0.0
      %321 = vmatprep.subr.mxu0 0.0
      %322 = vmatpush2.xpose.msra.mxu0 0.0
      %323 = vmatprep.subr.mxu0 0.0
      %324 = vmatpush2.xpose.msra.mxu0 0.0
      %325 = vmatprep.subr.mxu0 0.0
      %326 = vmatpush2.xpose.msra.mxu0 0.0
      %327 = vmatprep.subr.mxu0 0.0
      %328 = vmatpush2.xpose.msra.mxu0 0.0
      %329 = vmatprep.subr.mxu0 0.0
      %330 = vmatpush2.xpose.msra.mxu0 0.0
      %331 = vmatprep.subr.mxu0 0.0
      %332 = vmatpush2.xpose.msra.mxu0 0.0
      %333 = vmatprep.subr.mxu0 0.0
      %334 = vmatpush2.xpose.msra.mxu0 0.0
      %335 = vmatprep.subr.mxu0 0.0
      %336 = vmatpush2.xpose.msra.mxu0 0.0
      %337 = vmatprep.mubr.f32.mxu0 0.0
      %338 = vmatmul.mubr.f32.gmra.mxu0 %v269
      %v339 = vpop.f32.mrf.mxu0
      %v340 = vadd.f32 0.0, %v339
      %v341 = vpop.f32.mrf.mxu0
      %342 = vdwg.mxu0
      %v343 = vsel %vm118, %v340, -1e+09
      %v344 = vsel %vm124, %v343, -inf
      %345 = vmax.xlane.f32.xlu0 %v344
      %v346 = vpop.xlane.xlu0 %345
      %v347 = vsub.f32 %v343, %v346
      %v348 = vmul.f32 %v347, 1.442695
      %v349 = vpow.pop %v348
      %v350 = vsel %vm124, %v349, 0.0
      %351 = vadd.xlane.f32.xlu0 %v350
      %v352 = vpop.xlane.xlu0 %351
      %v353 = vrcp.pop %v352
      %v354 = vmul.f32 %v349, %v353
      %v355 = vpack.c.bf16 %v354, %v354
      %356 = vrot.lane.b32.xlu0 %v215, 56
      %v357 = vpop.permute.xlu0 %356
      %v359 = vsel %vm124, %v355, 0
      %v362 = vsel %vm221, %v357, 0
      %364 = vmatprep.subr.bf16.mxu0 0
      %365 = vmatpush1.bf16.msra.mxu0 0
      %366 = vmatprep.subr.bf16.mxu0 0
      %367 = vmatpush1.bf16.msra.mxu0 0
      %368 = vmatprep.subr.bf16.mxu0 0
      %369 = vmatpush1.bf16.msra.mxu0 0
      %370 = vmatprep.subr.bf16.mxu0 0
      %371 = vmatpush1.bf16.msra.mxu0 0
      %372 = vmatprep.subr.bf16.mxu0 0
      %373 = vmatpush1.bf16.msra.mxu0 0
      %374 = vmatprep.subr.bf16.mxu0 0
      %375 = vmatpush1.bf16.msra.mxu0 0
      %376 = vmatprep.subr.bf16.mxu0 0
      %377 = vmatpush1.bf16.msra.mxu0 0
      %378 = vmatprep.subr.bf16.mxu0 0
      %379 = vmatpush1.bf16.msra.mxu0 %v362
      %380 = vmatprep.subr.bf16.mxu0 0
      %381 = vmatpush2.bf16.msra.mxu0 0
      %382 = vmatprep.subr.bf16.mxu0 0
      %383 = vmatpush2.bf16.msra.mxu0 0
      %384 = vmatprep.subr.bf16.mxu0 0
      %385 = vmatpush2.bf16.msra.mxu0 0
      %386 = vmatprep.subr.bf16.mxu0 0
      %387 = vmatpush2.bf16.msra.mxu0 0
      %388 = vmatprep.subr.bf16.mxu0 0
      %389 = vmatpush2.bf16.msra.mxu0 0
      %390 = vmatprep.subr.bf16.mxu0 0
      %391 = vmatpush2.bf16.msra.mxu0 0
      %392 = vmatprep.subr.bf16.mxu0 0
      %393 = vmatpush2.bf16.msra.mxu0 0
      %394 = vmatprep.subr.bf16.mxu0 0
      %395 = vmatpush2.bf16.msra.mxu0 0
      %396 = vmatprep.mubr.bf16.mxu0 0
      %397 = vmatmul.mubr.bf16.gmra.mxu0 %v359
      %v398 = vpop.f32.mrf.mxu0
      %v399 = vadd.f32 0.0, %v398
      %v400 = vpop.f32.mrf.mxu0
      %v401 = vpop.f32.mrf.mxu0
      %v402 = vpop.f32.mrf.mxu0
      %403 = vdwg.mxu0
      %404 = vrot.lane.b32.xlu0 %v120, 112
      %v405 = vpop.permute.xlu0 %404
      %406 = vrot.lane.b32.xlu0 %v119, 80
      %v407 = vpop.permute.xlu0 %406
      %v408 = vsel %vm124, %v405, 0
      %v410 = vsel %vm124, %v407, 0
      %412 = vmatprep.subr.mxu0 0.0
      %413 = vmatpush1.xpose.msra.mxu0 0.0
      %414 = vmatprep.subr.mxu0 0.0
      %415 = vmatpush1.xpose.msra.mxu0 0.0
      %416 = vmatprep.subr.mxu0 0.0
      %417 = vmatpush1.xpose.msra.mxu0 0.0
      %418 = vmatprep.subr.mxu0 0.0
      %419 = vmatpush1.xpose.msra.mxu0 0.0
      %420 = vmatprep.subr.mxu0 0.0
      %421 = vmatpush1.xpose.msra.mxu0 0.0
      %422 = vmatprep.subr.mxu0 0.0
      %423 = vmatpush1.xpose.msra.mxu0 0.0
      %424 = vmatprep.subr.mxu0 0.0
      %425 = vmatpush1.xpose.msra.mxu0 0.0
      %426 = vmatprep.subr.mxu0 0.0
      %427 = vmatpush1.xpose.msra.mxu0 0.0
      %428 = vmatprep.subr.mxu0 0.0
      %429 = vmatpush1.xpose.msra.mxu0 0.0
      %430 = vmatprep.subr.mxu0 0.0
      %431 = vmatpush1.xpose.msra.mxu0 0.0
      %432 = vmatprep.subr.mxu0 0.0
      %433 = vmatpush1.xpose.msra.mxu0 0.0
      %434 = vmatprep.subr.mxu0 0.0
      %435 = vmatpush1.xpose.msra.mxu0 0.0
      %436 = vmatprep.subr.mxu0 0.0
      %437 = vmatpush1.xpose.msra.mxu0 0.0
      %438 = vmatprep.subr.mxu0 0.0
      %439 = vmatpush1.xpose.msra.mxu0 0.0
      %440 = vmatprep.subr.mxu0 0.0
      %441 = vmatpush1.xpose.msra.mxu0 0.0
      %442 = vmatprep.subr.mxu0 0.0
      %443 = vmatpush1.xpose.msra.mxu0 %v410
      %444 = vmatprep.subr.mxu0 0.0
      %445 = vmatpush2.xpose.msra.mxu0 0.0
      %446 = vmatprep.subr.mxu0 0.0
      %447 = vmatpush2.xpose.msra.mxu0 0.0
      %448 = vmatprep.subr.mxu0 0.0
      %449 = vmatpush2.xpose.msra.mxu0 0.0
      %450 = vmatprep.subr.mxu0 0.0
      %451 = vmatpush2.xpose.msra.mxu0 0.0
      %452 = vmatprep.subr.mxu0 0.0
      %453 = vmatpush2.xpose.msra.mxu0 0.0
      %454 = vmatprep.subr.mxu0 0.0
      %455 = vmatpush2.xpose.msra.mxu0 0.0
      %456 = vmatprep.subr.mxu0 0.0
      %457 = vmatpush2.xpose.msra.mxu0 0.0
      %458 = vmatprep.subr.mxu0 0.0
      %459 = vmatpush2.xpose.msra.mxu0 0.0
      %460 = vmatprep.subr.mxu0 0.0
      %461 = vmatpush2.xpose.msra.mxu0 0.0
      %462 = vmatprep.subr.mxu0 0.0
      %463 = vmatpush2.xpose.msra.mxu0 0.0
      %464 = vmatprep.subr.mxu0 0.0
      %465 = vmatpush2.xpose.msra.mxu0 0.0
      %466 = vmatprep.subr.mxu0 0.0
      %467 = vmatpush2.xpose.msra.mxu0 0.0
      %468 = vmatprep.subr.mxu0 0.0
      %469 = vmatpush2.xpose.msra.mxu0 0.0
      %470 = vmatprep.subr.mxu0 0.0
      %471 = vmatpush2.xpose.msra.mxu0 0.0
      %472 = vmatprep.subr.mxu0 0.0
      %473 = vmatpush2.xpose.msra.mxu0 0.0
      %474 = vmatprep.subr.mxu0 0.0
      %475 = vmatpush2.xpose.msra.mxu0 0.0
      %476 = vmatprep.mubr.f32.mxu0 0.0
      %477 = vmatmul.mubr.f32.gmra.mxu0 %v408
      %v478 = vpop.f32.mrf.mxu0
      %v479 = vadd.f32 0.0, %v478
      %v480 = vpop.f32.mrf.mxu0
      %481 = vdwg.mxu0
      %v482 = vsel %vm118, %v479, -1e+09
      %v483 = vsel %vm124, %v482, -inf
      %484 = vmax.xlane.f32.xlu0 %v483
      %v485 = vpop.xlane.xlu0 %484
      %v486 = vsub.f32 %v482, %v485
      %v487 = vmul.f32 %v486, 1.442695
      %v488 = vpow.pop %v487
      %v489 = vsel %vm124, %v488, 0.0
      %490 = vadd.xlane.f32.xlu0 %v489
      %v491 = vpop.xlane.xlu0 %490
      %v492 = vrcp.pop %v491
      %v493 = vmul.f32 %v488, %v492
      %v494 = vpack.c.bf16 %v493, %v493
      %495 = vrot.lane.b32.xlu0 %v215, 48
      %v496 = vpop.permute.xlu0 %495
      %v498 = vsel %vm124, %v494, 0
      %v501 = vsel %vm221, %v496, 0
      %503 = vmatprep.subr.bf16.mxu0 0
      %504 = vmatpush1.bf16.msra.mxu0 0
      %505 = vmatprep.subr.bf16.mxu0 0
      %506 = vmatpush1.bf16.msra.mxu0 0
      %507 = vmatprep.subr.bf16.mxu0 0
      %508 = vmatpush1.bf16.msra.mxu0 0
      %509 = vmatprep.subr.bf16.mxu0 0
      %510 = vmatpush1.bf16.msra.mxu0 0
      %511 = vmatprep.subr.bf16.mxu0 0
      %512 = vmatpush1.bf16.msra.mxu0 0
      %513 = vmatprep.subr.bf16.mxu0 0
      %514 = vmatpush1.bf16.msra.mxu0 0
      %515 = vmatprep.subr.bf16.mxu0 0
      %516 = vmatpush1.bf16.msra.mxu0 0
      %517 = vmatprep.subr.bf16.mxu0 0
      %518 = vmatpush1.bf16.msra.mxu0 %v501
      %519 = vmatprep.subr.bf16.mxu0 0
      %520 = vmatpush2.bf16.msra.mxu0 0
      %521 = vmatprep.subr.bf16.mxu0 0
      %522 = vmatpush2.bf16.msra.mxu0 0
      %523 = vmatprep.subr.bf16.mxu0 0
      %524 = vmatpush2.bf16.msra.mxu0 0
      %525 = vmatprep.subr.bf16.mxu0 0
      %526 = vmatpush2.bf16.msra.mxu0 0
      %527 = vmatprep.subr.bf16.mxu0 0
      %528 = vmatpush2.bf16.msra.mxu0 0
      %529 = vmatprep.subr.bf16.mxu0 0
      %530 = vmatpush2.bf16.msra.mxu0 0
      %531 = vmatprep.subr.bf16.mxu0 0
      %532 = vmatpush2.bf16.msra.mxu0 0
      %533 = vmatprep.subr.bf16.mxu0 0
      %534 = vmatpush2.bf16.msra.mxu0 0
      %535 = vmatprep.mubr.bf16.mxu0 0
      %536 = vmatmul.mubr.bf16.gmra.mxu0 %v498
      %v537 = vpop.f32.mrf.mxu0
      %v538 = vadd.f32 0.0, %v537
      %v539 = vpop.f32.mrf.mxu0
      %v540 = vpop.f32.mrf.mxu0
      %v541 = vpop.f32.mrf.mxu0
      %542 = vdwg.mxu0
      %543 = vrot.lane.b32.xlu0 %v120, 104
      %v544 = vpop.permute.xlu0 %543
      %545 = vrot.lane.b32.xlu0 %v119, 72
      %v546 = vpop.permute.xlu0 %545
      %v547 = vsel %vm124, %v544, 0
      %v549 = vsel %vm124, %v546, 0
      %551 = vmatprep.subr.mxu0 0.0
      %552 = vmatpush1.xpose.msra.mxu0 0.0
      %553 = vmatprep.subr.mxu0 0.0
      %554 = vmatpush1.xpose.msra.mxu0 0.0
      %555 = vmatprep.subr.mxu0 0.0
      %556 = vmatpush1.xpose.msra.mxu0 0.0
      %557 = vmatprep.subr.mxu0 0.0
      %558 = vmatpush1.xpose.msra.mxu0 0.0
      %559 = vmatprep.subr.mxu0 0.0
      %560 = vmatpush1.xpose.msra.mxu0 0.0
      %561 = vmatprep.subr.mxu0 0.0
      %562 = vmatpush1.xpose.msra.mxu0 0.0
      %563 = vmatprep.subr.mxu0 0.0
      %564 = vmatpush1.xpose.msra.mxu0 0.0
      %565 = vmatprep.subr.mxu0 0.0
      %566 = vmatpush1.xpose.msra.mxu0 0.0
      %567 = vmatprep.subr.mxu0 0.0
      %568 = vmatpush1.xpose.msra.mxu0 0.0
      %569 = vmatprep.subr.mxu0 0.0
      %570 = vmatpush1.xpose.msra.mxu0 0.0
      %571 = vmatprep.subr.mxu0 0.0
      %572 = vmatpush1.xpose.msra.mxu0 0.0
      %573 = vmatprep.subr.mxu0 0.0
      %574 = vmatpush1.xpose.msra.mxu0 0.0
      %575 = vmatprep.subr.mxu0 0.0
      %576 = vmatpush1.xpose.msra.mxu0 0.0
      %577 = vmatprep.subr.mxu0 0.0
      %578 = vmatpush1.xpose.msra.mxu0 0.0
      %579 = vmatprep.subr.mxu0 0.0
      %580 = vmatpush1.xpose.msra.mxu0 0.0
      %581 = vmatprep.subr.mxu0 0.0
      %582 = vmatpush1.xpose.msra.mxu0 %v549
      %583 = vmatprep.subr.mxu0 0.0
      %584 = vmatpush2.xpose.msra.mxu0 0.0
      %585 = vmatprep.subr.mxu0 0.0
      %586 = vmatpush2.xpose.msra.mxu0 0.0
      %587 = vmatprep.subr.mxu0 0.0
      %588 = vmatpush2.xpose.msra.mxu0 0.0
      %589 = vmatprep.subr.mxu0 0.0
      %590 = vmatpush2.xpose.msra.mxu0 0.0
      %591 = vmatprep.subr.mxu0 0.0
      %592 = vmatpush2.xpose.msra.mxu0 0.0
      %593 = vmatprep.subr.mxu0 0.0
      %594 = vmatpush2.xpose.msra.mxu0 0.0
      %595 = vmatprep.subr.mxu0 0.0
      %596 = vmatpush2.xpose.msra.mxu0 0.0
      %597 = vmatprep.subr.mxu0 0.0
      %598 = vmatpush2.xpose.msra.mxu0 0.0
      %599 = vmatprep.subr.mxu0 0.0
      %600 = vmatpush2.xpose.msra.mxu0 0.0
      %601 = vmatprep.subr.mxu0 0.0
      %602 = vmatpush2.xpose.msra.mxu0 0.0
      %603 = vmatprep.subr.mxu0 0.0
      %604 = vmatpush2.xpose.msra.mxu0 0.0
      %605 = vmatprep.subr.mxu0 0.0
      %606 = vmatpush2.xpose.msra.mxu0 0.0
      %607 = vmatprep.subr.mxu0 0.0
      %608 = vmatpush2.xpose.msra.mxu0 0.0
      %609 = vmatprep.subr.mxu0 0.0
      %610 = vmatpush2.xpose.msra.mxu0 0.0
      %611 = vmatprep.subr.mxu0 0.0
      %612 = vmatpush2.xpose.msra.mxu0 0.0
      %613 = vmatprep.subr.mxu0 0.0
      %614 = vmatpush2.xpose.msra.mxu0 0.0
      %615 = vmatprep.mubr.f32.mxu0 0.0
      %616 = vmatmul.mubr.f32.gmra.mxu0 %v547
      %v617 = vpop.f32.mrf.mxu0
      %v618 = vadd.f32 0.0, %v617
      %v619 = vpop.f32.mrf.mxu0
      %620 = vdwg.mxu0
      %v621 = vsel %vm118, %v618, -1e+09
      %v622 = vsel %vm124, %v621, -inf
      %623 = vmax.xlane.f32.xlu0 %v622
      %v624 = vpop.xlane.xlu0 %623
      %v625 = vsub.f32 %v621, %v624
      %v626 = vmul.f32 %v625, 1.442695
      %v627 = vpow.pop %v626
      %v628 = vsel %vm124, %v627, 0.0
      %629 = vadd.xlane.f32.xlu0 %v628
      %v630 = vpop.xlane.xlu0 %629
      %v631 = vrcp.pop %v630
      %v632 = vmul.f32 %v627, %v631
      %v633 = vpack.c.bf16 %v632, %v632
      %634 = vrot.lane.b32.xlu0 %v215, 40
      %v635 = vpop.permute.xlu0 %634
      %v637 = vsel %vm124, %v633, 0
      %v640 = vsel %vm221, %v635, 0
      %642 = vmatprep.subr.bf16.mxu0 0
      %643 = vmatpush1.bf16.msra.mxu0 0
      %644 = vmatprep.subr.bf16.mxu0 0
      %645 = vmatpush1.bf16.msra.mxu0 0
      %646 = vmatprep.subr.bf16.mxu0 0
      %647 = vmatpush1.bf16.msra.mxu0 0
      %648 = vmatprep.subr.bf16.mxu0 0
      %649 = vmatpush1.bf16.msra.mxu0 0
      %650 = vmatprep.subr.bf16.mxu0 0
      %651 = vmatpush1.bf16.msra.mxu0 0
      %652 = vmatprep.subr.bf16.mxu0 0
      %653 = vmatpush1.bf16.msra.mxu0 0
      %654 = vmatprep.subr.bf16.mxu0 0
      %655 = vmatpush1.bf16.msra.mxu0 0
      %656 = vmatprep.subr.bf16.mxu0 0
      %657 = vmatpush1.bf16.msra.mxu0 %v640
      %658 = vmatprep.subr.bf16.mxu0 0
      %659 = vmatpush2.bf16.msra.mxu0 0
      %660 = vmatprep.subr.bf16.mxu0 0
      %661 = vmatpush2.bf16.msra.mxu0 0
      %662 = vmatprep.subr.bf16.mxu0 0
      %663 = vmatpush2.bf16.msra.mxu0 0
      %664 = vmatprep.subr.bf16.mxu0 0
      %665 = vmatpush2.bf16.msra.mxu0 0
      %666 = vmatprep.subr.bf16.mxu0 0
      %667 = vmatpush2.bf16.msra.mxu0 0
      %668 = vmatprep.subr.bf16.mxu0 0
      %669 = vmatpush2.bf16.msra.mxu0 0
      %670 = vmatprep.subr.bf16.mxu0 0
      %671 = vmatpush2.bf16.msra.mxu0 0
      %672 = vmatprep.subr.bf16.mxu0 0
      %673 = vmatpush2.bf16.msra.mxu0 0
      %674 = vmatprep.mubr.bf16.mxu0 0
      %675 = vmatmul.mubr.bf16.gmra.mxu0 %v637
      %v676 = vpop.f32.mrf.mxu0
      %v677 = vadd.f32 0.0, %v676
      %v678 = vpop.f32.mrf.mxu0
      %v679 = vpop.f32.mrf.mxu0
      %v680 = vpop.f32.mrf.mxu0
      %681 = vdwg.mxu0
      %683 = vrot.lane.b32.xlu0 %v399, 8
      %v684 = vpop.permute.xlu0 %683
      %687 = vrot.lane.b32.xlu0 %v538, 16
      %v688 = vpop.permute.xlu0 %687
      %691 = vrot.lane.b32.xlu0 %v677, 24
      %v692 = vpop.permute.xlu0 %691
      %v694 = vsel %vm124, %v260, %v684
      %vm695 = vcmask 130048
      %v696 = vsel %vm695, %v694, %v688
      %vm697 = vcmask 195584
      %v698 = vsel %vm697, %v696, %v692
      %v699 = vpack.c.bf16 %v698, %v698
      %vm700 = vcmask 257024
      %701 = vst.msk [vmem:[%s111] sm:$0xf] %vm700, %v699
      %p702 = scmp.lt.s32.totalorder %s12, 1
      %s703 = scalar_select %p702, %s12, 1
      %s704 = smul.addr %s703, 4
      %s705 = scalar_lea.vmem %s1, %s704
      // Predicated region
      $region25: #{gpt_decoder_forward.20} parent=23 // pred_check
        %p706 = pneg %p56
      $region26: #{gpt_decoder_forward.20} parent=23 // pred_check_branch
        %708 = sbr.rel (%p706) target = $region28
      $region27: #{gpt_decoder_forward.20} parent=23 // pred_region
        _
      $region28: #{gpt_decoder_forward.20} parent=23 // pred_fallthru
        _
    $region24: #{gpt_decoder_forward.20} parent=5 // pred_fallthru
      _
    %p709 = scmp.le.s32.totalorder 2, %s7
    // Predicated region
    $region29: #{gpt_decoder_forward.20} parent=5 // pred_check
      %p710 = pneg %p709
    $region30: #{gpt_decoder_forward.20} parent=5 // pred_check_branch
      %712 = sbr.rel (%p710) target = $region32
    $region31: #{gpt_decoder_forward.20} parent=5 // pred_region
      %s713 = ssub.s32 %s7, 2
      // Predicated region
      $region33: #{gpt_decoder_forward.20} parent=31 // pred_check
        %p714 = pneg %p62
      $region34: #{gpt_decoder_forward.20} parent=31 // pred_check_branch
        %716 = sbr.rel (%p714) target = $region36
      $region35: #{gpt_decoder_forward.20} parent=31 // pred_region
        %p717 = scmp.lt.s32.totalorder %s13, 1
        %s718 = scalar_select %p717, %s13, 1
        %s719 = smul.addr %s718, 4
        %s720 = scalar_lea.vmem %s1, %s719
      $region36: #{gpt_decoder_forward.20} parent=31 // pred_fallthru
        _
    $region32: #{gpt_decoder_forward.20} parent=5 // pred_fallthru
      _
  $region6: #{gpt_decoder_forward.20} parent=0 // loop_footer
    %s11 = sadd.s32 1, %s7
  $region7: #{gpt_decoder_forward.20} parent=0 // loop_footer_branch
    %6 = sbr.rel target = $region3
  $region8: #{gpt_decoder_forward.20} parent=0 // loop_exit
    _

// kernel: gpt_decoder_forward.22
$region0: #{gpt_decoder_forward.22}
  #allocation0 [shape = 'u32[]', space=smem, size = 0x4, offset = 0x4, fixed_abs, tag = 'smem constant byte address 0x4 - core index']
  #allocation1 [shape = 'u32[144,128]{1,0:T(1,128)}', space=vmem, size = 0x12000, scoped, tag = 'internal scratch']
  #allocation2 [shape = 'f32[16,32]{1,0:T(8,128)}', space=vmem, size = 0x2000, scoped, tag = 'scratch operand']
  %s0 = inlined_call_operand.vmem [shape: bf16[16,32], index: 0, kind: input, shape index: {}]
  %s1 = inlined_call_operand.vmem [shape: bf16[32,32], index: 1, kind: input, shape index: {}]
  %s2 = inlined_call_operand.vmem [shape: f32[1,32], index: 2, kind: input, shape index: {}]
  %s3 = inlined_call_operand.vmem [shape: bf16[16,32], index: 3, kind: output, shape index: {}]
  %s4 = sld [smem:[#allocation0]]
  $region30: #{gpt_decoder_forward.22} parent=0
    _
  %s6 = ssub.s32 1, %s4
  %s7 = scalar_select 0, %s6, %s4
  // Predicated region
  $region2: #{gpt_decoder_forward.22} parent=0 // pred_check
    _
  $region3: #{gpt_decoder_forward.22} parent=0 // pred_check_branch
    %9 = sbr.rel (0) target = $region5
  $region4: #{gpt_decoder_forward.22} parent=0 // pred_region
    _
  $region5: #{gpt_decoder_forward.22} parent=0 // pred_fallthru
    _
  // Predicated region
  $region6: #{gpt_decoder_forward.22} parent=0 // pred_check
    _
  $region7: #{gpt_decoder_forward.22} parent=0 // pred_check_branch
    %11 = sbr.rel (0) target = $region9
  $region8: #{gpt_decoder_forward.22} parent=0 // pred_region
    _
  $region9: #{gpt_decoder_forward.22} parent=0 // pred_fallthru
    _
  // Predicated region
  $region10: #{gpt_decoder_forward.22} parent=0 // pred_check
    _
  $region11: #{gpt_decoder_forward.22} parent=0 // pred_check_branch
    %13 = sbr.rel (0) target = $region13
  $region12: #{gpt_decoder_forward.22} parent=0 // pred_region
    _
  $region13: #{gpt_decoder_forward.22} parent=0 // pred_fallthru
    _
  %p15 = scmp.eq.s32.totalorder 0, 0
  // Predicated region
  $region14: #{gpt_decoder_forward.22} parent=0 // pred_check
    %p16 = pneg %p15
  $region15: #{gpt_decoder_forward.22} parent=0 // pred_check_branch
    %18 = sbr.rel (%p16) target = $region17
  $region16: #{gpt_decoder_forward.22} parent=0 // pred_region
    %vm19 = vcmask 261120
    %20 = vst.msk [vmem:[#allocation2] sm:$0xff] %vm19, 0.0
    %21 = vst.msk [vmem:[#allocation2 + $0x8] sm:$0xff] %vm19, 0.0
  $region17: #{gpt_decoder_forward.22} parent=0 // pred_fallthru
    _
  %v22 = vld [vmem:[#allocation2] sm:$0xff]
  %v23 = vld [vmem:[#allocation2 + $0x8] sm:$0xff]
  %v24 = vld [vmem:[%s0] sm:$0xf]
  %v25 = vld [vmem:[%s0 + $0x4] sm:$0xf]
  %v26 = vld [vmem:[%s1] sm:$0xf]
  %v27 = vld [vmem:[%s1 + $0x4] sm:$0xf]
  %v28 = vld [vmem:[%s1 + $0x8] sm:$0xf]
  %v29 = vld [vmem:[%s1 + $0xc] sm:$0xf]
  %v32 = vunpack.c.l.b16 %v24
  %v33 = vunpack.c.l.b16 %v25
  %v34 = vpack.c.b16 %v33, %v32
  %v39 = vunpack.c.l.b16 %v26
  %v40 = vunpack.c.l.b16 %v27
  %v41 = vunpack.c.l.b16 %v28
  %v42 = vunpack.c.l.b16 %v29
  %v43 = vpack.c.b16 %v40, %v39
  %v44 = vpack.c.b16 %v42, %v41
  %vm47 = vcmask 261120
  %v49 = vsel %vm47, %v34, 0
  %51 = vmatprep.subr.bf16.mxu0 0
  %52 = vmatpush1.bf16.msra.mxu0 0
  %53 = vmatprep.subr.bf16.mxu0 0
  %54 = vmatpush1.bf16.msra.mxu0 0
  %55 = vmatprep.subr.bf16.mxu0 0
  %56 = vmatpush1.bf16.msra.mxu0 0
  %57 = vmatprep.subr.bf16.mxu0 0
  %58 = vmatpush1.bf16.msra.mxu0 0
  %59 = vmatprep.subr.bf16.mxu0 0
  %60 = vmatpush1.bf16.msra.mxu0 0
  %61 = vmatprep.subr.bf16.mxu0 0
  %62 = vmatpush1.bf16.msra.mxu0 0
  %63 = vmatprep.subr.bf16.mxu0 0
  %64 = vmatpush1.bf16.msra.mxu0 %v44
  %65 = vmatprep.subr.bf16.mxu0 0
  %66 = vmatpush1.bf16.msra.mxu0 %v43
  %67 = vmatprep.subr.bf16.mxu0 0
  %68 = vmatpush2.bf16.msra.mxu0 0
  %69 = vmatprep.subr.bf16.mxu0 0
  %70 = vmatpush2.bf16.msra.mxu0 0
  %71 = vmatprep.subr.bf16.mxu0 0
  %72 = vmatpush2.bf16.msra.mxu0 0
  %73 = vmatprep.subr.bf16.mxu0 0
  %74 = vmatpush2.bf16.msra.mxu0 0
  %75 = vmatprep.subr.bf16.mxu0 0
  %76 = vmatpush2.bf16.msra.mxu0 0
  %77 = vmatprep.subr.bf16.mxu0 0
  %78 = vmatpush2.bf16.msra.mxu0 0
  %79 = vmatprep.subr.bf16.mxu0 0
  %80 = vmatpush2.bf16.msra.mxu0 0
  %81 = vmatprep.subr.bf16.mxu0 0
  %82 = vmatpush2.bf16.msra.mxu0 0
  %83 = vmatprep.mubr.bf16.mxu0 0
  %84 = vmatmul.mubr.bf16.gmra.mxu0 %v49
  %v85 = vpop.f32.mrf.mxu0
  %v86 = vadd.f32 0.0, %v85
  %v87 = vpop.f32.mrf.mxu0
  %v88 = vpop.f32.mrf.mxu0
  %v89 = vadd.f32 0.0, %v88
  %v90 = vpop.f32.mrf.mxu0
  %91 = vdwg.mxu0
  %v92 = vadd.f32 %v22, %v86
  %v93 = vadd.f32 %v23, %v89
  %94 = vst.msk [vmem:[#allocation2] sm:$0xff] %vm47, %v92
  %95 = vst.msk [vmem:[#allocation2 + $0x8] sm:$0xff] %vm47, %v93
  // Predicated region
  $region18: #{gpt_decoder_forward.22} parent=0 // pred_check
    %p96 = pneg %p15
  $region19: #{gpt_decoder_forward.22} parent=0 // pred_check_branch
    %98 = sbr.rel (%p96) target = $region21
  $region20: #{gpt_decoder_forward.22} parent=0 // pred_region
    %v99 = vld [vmem:[#allocation2] sm:$0xff]
    %v100 = vld [vmem:[#allocation2 + $0x8] sm:$0xff]
    %v101 = vld [vmem:[%s2] sm:$0x1]
    %v103 = vlaneseq
    %v104 = vshrl.u32 %v103, 7
    %v105 = vsub.s32 0, %v104
    %v106 = vrot.slane %v101, %v105
    %v108 = vadd.f32 %v99, %v106
    %v109 = vadd.f32 %v100, %v106
    %v110 = vpack.c.bf16 %v109, %v108
    %v112 = vunpack.c.l.b16 %v110
    %v113 = vunpack.c.h.b16 %v110
    %v114 = vpack.c.b16 %v112, %v112
    %v115 = vpack.c.b16 %v113, %v113
    %vm118 = vcmask 257024
    %119 = vst.msk [vmem:[%s3] sm:$0xf] %vm118, %v114
    %120 = vst.msk [vmem:[%s3 + $0x4] sm:$0xf] %vm118, %v115
  $region21: #{gpt_decoder_forward.22} parent=0 // pred_fallthru
    _
  // Predicated region
  $region22: #{gpt_decoder_forward.22} parent=0 // pred_check
    _
  $region23: #{gpt_decoder_forward.22} parent=0 // pred_check_branch
    %122 = sbr.rel (0) target = $region25
  $region24: #{gpt_decoder_forward.22} parent=0 // pred_region
    _
  $region25: #{gpt_decoder_forward.22} parent=0 // pred_fallthru
    _
  // Predicated region
  $region26: #{gpt_decoder_forward.22} parent=0 // pred_check
    _
  $region27: #{gpt_decoder_forward.22} parent=0 // pred_check_branch
    %124 = sbr.rel (0) target = $region29
  $region28: #{gpt_decoder_forward.22} parent=0 // pred_region
    _
  $region29: #{gpt_decoder_forward.22} parent=0 // pred_fallthru
    _

// kernel: gpt_decoder_forward.21
$region0: #{gpt_decoder_forward.21}
  #allocation0 [shape = 'u32[]', space=smem, size = 0x4, offset = 0x4, fixed_abs, tag = 'smem constant byte address 0x4 - core index']
  #allocation1 [shape = 'u32[144,128]{1,0:T(1,128)}', space=vmem, size = 0x12000, scoped, tag = 'internal scratch']
  #allocation2 [shape = 'f32[16,32]{1,0:T(8,128)}', space=vmem, size = 0x2000, scoped, tag = 'scratch operand']
  %s0 = inlined_call_operand.vmem [shape: bf16[16,32], index: 0, kind: input, shape index: {}]
  %s1 = inlined_call_operand.vmem [shape: bf16[32,32], index: 1, kind: input, shape index: {}]
  %s2 = inlined_call_operand.vmem [shape: f32[1,32], index: 2, kind: input, shape index: {}]
  %s3 = inlined_call_operand.vmem [shape: bf16[16,32], index: 3, kind: input, shape index: {}]
  %s4 = inlined_call_operand.vmem [shape: f32[1,32], index: 4, kind: input, shape index: {}]
  %s5 = inlined_call_operand.vmem [shape: f32[1,32], index: 5, kind: input, shape index: {}]
  %s6 = inlined_call_operand.vmem [shape: bf16[16,32], index: 6, kind: output, shape index: {}]
  %s7 = sld [smem:[#allocation0]]
  $region42: #{gpt_decoder_forward.21} parent=0
    _
  %s9 = ssub.s32 1, %s7
  %s10 = scalar_select 0, %s9, %s7
  // Predicated region
  $region2: #{gpt_decoder_forward.21} parent=0 // pred_check
    _
  $region3: #{gpt_decoder_forward.21} parent=0 // pred_check_branch
    %12 = sbr.rel (0) target = $region5
  $region4: #{gpt_decoder_forward.21} parent=0 // pred_region
    _
  $region5: #{gpt_decoder_forward.21} parent=0 // pred_fallthru
    _
  // Predicated region
  $region6: #{gpt_decoder_forward.21} parent=0 // pred_check
    _
  $region7: #{gpt_decoder_forward.21} parent=0 // pred_check_branch
    %14 = sbr.rel (0) target = $region9
  $region8: #{gpt_decoder_forward.21} parent=0 // pred_region
    _
  $region9: #{gpt_decoder_forward.21} parent=0 // pred_fallthru
    _
  // Predicated region
  $region10: #{gpt_decoder_forward.21} parent=0 // pred_check
    _
  $region11: #{gpt_decoder_forward.21} parent=0 // pred_check_branch
    %16 = sbr.rel (0) target = $region13
  $region12: #{gpt_decoder_forward.21} parent=0 // pred_region
    _
  $region13: #{gpt_decoder_forward.21} parent=0 // pred_fallthru
    _
  // Predicated region
  $region14: #{gpt_decoder_forward.21} parent=0 // pred_check
    _
  $region15: #{gpt_decoder_forward.21} parent=0 // pred_check_branch
    %18 = sbr.rel (0) target = $region17
  $region16: #{gpt_decoder_forward.21} parent=0 // pred_region
    _
  $region17: #{gpt_decoder_forward.21} parent=0 // pred_fallthru
    _
  // Predicated region
  $region18: #{gpt_decoder_forward.21} parent=0 // pred_check
    _
  $region19: #{gpt_decoder_forward.21} parent=0 // pred_check_branch
    %20 = sbr.rel (0) target = $region21
  $region20: #{gpt_decoder_forward.21} parent=0 // pred_region
    _
  $region21: #{gpt_decoder_forward.21} parent=0 // pred_fallthru
    _
  // Predicated region
  $region22: #{gpt_decoder_forward.21} parent=0 // pred_check
    _
  $region23: #{gpt_decoder_forward.21} parent=0 // pred_check_branch
    %22 = sbr.rel (0) target = $region25
  $region24: #{gpt_decoder_forward.21} parent=0 // pred_region
    _
  $region25: #{gpt_decoder_forward.21} parent=0 // pred_fallthru
    _
  %p24 = scmp.eq.s32.totalorder 0, 0
  // Predicated region
  $region26: #{gpt_decoder_forward.21} parent=0 // pred_check
    %p25 = pneg %p24
  $region27: #{gpt_decoder_forward.21} parent=0 // pred_check_branch
    %27 = sbr.rel (%p25) target = $region29
  $region28: #{gpt_decoder_forward.21} parent=0 // pred_region
    %vm28 = vcmask 261120
    %29 = vst.msk [vmem:[#allocation2] sm:$0xff] %vm28, 0.0
    %30 = vst.msk [vmem:[#allocation2 + $0x8] sm:$0xff] %vm28, 0.0
  $region29: #{gpt_decoder_forward.21} parent=0 // pred_fallthru
    _
  %v31 = vld [vmem:[#allocation2] sm:$0xff]
  %v32 = vld [vmem:[#allocation2 + $0x8] sm:$0xff]
  %v33 = vld [vmem:[%s0] sm:$0xf]
  %v34 = vld [vmem:[%s0 + $0x4] sm:$0xf]
  %v35 = vld [vmem:[%s1] sm:$0xf]
  %v36 = vld [vmem:[%s1 + $0x4] sm:$0xf]
  %v37 = vld [vmem:[%s1 + $0x8] sm:$0xf]
  %v38 = vld [vmem:[%s1 + $0xc] sm:$0xf]
  %v41 = vunpack.c.l.b16 %v33
  %v42 = vunpack.c.l.b16 %v34
  %v43 = vpack.c.b16 %v42, %v41
  %v48 = vunpack.c.l.b16 %v35
  %v49 = vunpack.c.l.b16 %v36
  %v50 = vunpack.c.l.b16 %v37
  %v51 = vunpack.c.l.b16 %v38
  %v52 = vpack.c.b16 %v49, %v48
  %v53 = vpack.c.b16 %v51, %v50
  %vm56 = vcmask 261120
  %v58 = vsel %vm56, %v43, 0
  %60 = vmatprep.subr.bf16.mxu0 0
  %61 = vmatpush1.bf16.msra.mxu0 0
  %62 = vmatprep.subr.bf16.mxu0 0
  %63 = vmatpush1.bf16.msra.mxu0 0
  %64 = vmatprep.subr.bf16.mxu0 0
  %65 = vmatpush1.bf16.msra.mxu0 0
  %66 = vmatprep.subr.bf16.mxu0 0
  %67 = vmatpush1.bf16.msra.mxu0 0
  %68 = vmatprep.subr.bf16.mxu0 0
  %69 = vmatpush1.bf16.msra.mxu0 0
  %70 = vmatprep.subr.bf16.mxu0 0
  %71 = vmatpush1.bf16.msra.mxu0 0
  %72 = vmatprep.subr.bf16.mxu0 0
  %73 = vmatpush1.bf16.msra.mxu0 %v53
  %74 = vmatprep.subr.bf16.mxu0 0
  %75 = vmatpush1.bf16.msra.mxu0 %v52
  %76 = vmatprep.subr.bf16.mxu0 0
  %77 = vmatpush2.bf16.msra.mxu0 0
  %78 = vmatprep.subr.bf16.mxu0 0
  %79 = vmatpush2.bf16.msra.mxu0 0
  %80 = vmatprep.subr.bf16.mxu0 0
  %81 = vmatpush2.bf16.msra.mxu0 0
  %82 = vmatprep.subr.bf16.mxu0 0
  %83 = vmatpush2.bf16.msra.mxu0 0
  %84 = vmatprep.subr.bf16.mxu0 0
  %85 = vmatpush2.bf16.msra.mxu0 0
  %86 = vmatprep.subr.bf16.mxu0 0
  %87 = vmatpush2.bf16.msra.mxu0 0
  %88 = vmatprep.subr.bf16.mxu0 0
  %89 = vmatpush2.bf16.msra.mxu0 0
  %90 = vmatprep.subr.bf16.mxu0 0
  %91 = vmatpush2.bf16.msra.mxu0 0
  %92 = vmatprep.mubr.bf16.mxu0 0
  %93 = vmatmul.mubr.bf16.gmra.mxu0 %v58
  %v94 = vpop.f32.mrf.mxu0
  %v95 = vadd.f32 0.0, %v94
  %v96 = vpop.f32.mrf.mxu0
  %v97 = vpop.f32.mrf.mxu0
  %v98 = vadd.f32 0.0, %v97
  %v99 = vpop.f32.mrf.mxu0
  %100 = vdwg.mxu0
  %v101 = vadd.f32 %v31, %v95
  %v102 = vadd.f32 %v32, %v98
  %103 = vst.msk [vmem:[#allocation2] sm:$0xff] %vm56, %v101
  %104 = vst.msk [vmem:[#allocation2 + $0x8] sm:$0xff] %vm56, %v102
  // Predicated region
  $region30: #{gpt_decoder_forward.21} parent=0 // pred_check
    %p105 = pneg %p24
  $region31: #{gpt_decoder_forward.21} parent=0 // pred_check_branch
    %107 = sbr.rel (%p105) target = $region33
  $region32: #{gpt_decoder_forward.21} parent=0 // pred_region
    %v108 = vld [vmem:[#allocation2] sm:$0xff]
    %v109 = vld [vmem:[#allocation2 + $0x8] sm:$0xff]
    %v110 = vld [vmem:[%s2] sm:$0x1]
    %v112 = vlaneseq
    %v113 = vshrl.u32 %v112, 7
    %v114 = vsub.s32 0, %v113
    %v115 = vrot.slane %v110, %v114
    %v117 = vadd.f32 %v108, %v115
    %v118 = vadd.f32 %v109, %v115
    %v119 = vld [vmem:[%s3] sm:$0xf]
    %v120 = vld [vmem:[%s3 + $0x4] sm:$0xf]
    %v121 = vunpack.c.l.bf16 %v119
    %v122 = vunpack.c.l.bf16 %v120
    %v123 = vadd.f32 %v117, %v121
    %v124 = vadd.f32 %v118, %v122
    %v125 = vsel %vm56, %v123, 0.0
    %126 = vadd.xlane.f32.xlu0 %v125
    %v127 = vpop.xlane.xlu0 %126
    %v128 = vsel %vm56, %v124, 0.0
    %129 = vadd.xlane.f32.xlu0 %v128
    %v130 = vpop.xlane.xlu0 %129
    %v131 = vrcp.pop 32.0
    %v132 = vmul.f32 %v127, %v131
    %v133 = vmul.f32 %v130, %v131
    %v134 = vmul.f32 %v123, %v123
    %v135 = vmul.f32 %v124, %v124
    %v136 = vsel %vm56, %v134, 0.0
    %137 = vadd.xlane.f32.xlu0 %v136
    %v138 = vpop.xlane.xlu0 %137
    %v139 = vsel %vm56, %v135, 0.0
    %140 = vadd.xlane.f32.xlu0 %v139
    %v141 = vpop.xlane.xlu0 %140
    %v142 = vmul.f32 %v138, %v131
    %v143 = vmul.f32 %v141, %v131
    %v144 = vmul.f32 %v132, %v132
    %v145 = vmul.f32 %v133, %v133
    %v146 = vsub.f32 %v142, %v144
    %v147 = vsub.f32 %v143, %v145
    %v148 = vsub.f32 %v123, %v132
    %v149 = vsub.f32 %v124, %v133
    %v150 = vadd.f32 %v146, 1e-05
    %v151 = vadd.f32 %v147, 1e-05
    %v152 = vrsqrt.pop %v150
    %v153 = vrsqrt.pop %v151
    %v154 = vmul.f32 %v148, %v152
    %v155 = vmul.f32 %v149, %v153
    %v156 = vld [vmem:[%s4] sm:$0x1]
    %v158 = vlaneseq
    %v159 = vshrl.u32 %v158, 7
    %v160 = vsub.s32 0, %v159
    %v161 = vrot.slane %v156, %v160
    %v163 = vmul.f32 %v154, %v161
    %v164 = vmul.f32 %v155, %v161
    %v165 = vld [vmem:[%s5] sm:$0x1]
    %v167 = vlaneseq
    %v168 = vshrl.u32 %v167, 7
    %v169 = vsub.s32 0, %v168
    %v170 = vrot.slane %v165, %v169
    %v172 = vadd.f32 %v163, %v170
    %v173 = vadd.f32 %v164, %v170
    %v174 = vpack.c.bf16 %v173, %v172
    %v176 = vunpack.c.l.b16 %v174
    %v177 = vunpack.c.h.b16 %v174
    %v178 = vpack.c.b16 %v176, %v176
    %v179 = vpack.c.b16 %v177, %v177
    %vm182 = vcmask 257024
    %183 = vst.msk [vmem:[%s6] sm:$0xf] %vm182, %v178
    %184 = vst.msk [vmem:[%s6 + $0x4] sm:$0xf] %vm182, %v179
  $region33: #{gpt_decoder_forward.21} parent=0 // pred_fallthru
    _
  // Predicated region
  $region34: #{gpt_decoder_forward.21} parent=0 // pred_check
    _
  $region35: #{gpt_decoder_forward.21} parent=0 // pred_check_branch
    %186 = sbr.rel (0) target = $region37
  $region36: #{gpt_decoder_forward.21} parent=0 // pred_region
    _
  $region37: #{gpt_decoder_forward.21} parent=0 // pred_fallthru
    _
  // Predicated region
  $region38: #{gpt_decoder_forward.21} parent=0 // pred_check
    _
  $region39: #{gpt_decoder_forward.21} parent=0 // pred_check_branch
    %188 = sbr.rel (0) target = $region41
  $region40: #{gpt_decoder_forward.21} parent=0 // pred_region
    _
  $region41: #{gpt_decoder_forward.21} parent=0 // pred_fallthru
    _

// kernel: gpt_decoder_forward.19
$region0: #{gpt_decoder_forward.19}
  #allocation0 [shape = 'u32[]', space=smem, size = 0x4, offset = 0x4, fixed_abs, tag = 'smem constant byte address 0x4 - core index']
  #allocation1 [shape = 'u32[144,128]{1,0:T(1,128)}', space=vmem, size = 0x12000, scoped, tag = 'internal scratch']
  #allocation2 [shape = 'f32[16,96]{1,0:T(8,128)}', space=vmem, size = 0x2000, scoped, tag = 'scratch operand']
  %s0 = inlined_call_operand.vmem [shape: bf16[16,32], index: 0, kind: input, shape index: {}]
  %s1 = inlined_call_operand.vmem [shape: bf16[32,96], index: 1, kind: input, shape index: {}]
  %s2 = inlined_call_operand.vmem [shape: f32[1,96], index: 2, kind: input, shape index: {}]
  %s3 = inlined_call_operand.vmem [shape: bf16[16,96], index: 3, kind: output, shape index: {}]
  %s4 = sld [smem:[#allocation0]]
  $region30: #{gpt_decoder_forward.19} parent=0
    _
  %s6 = ssub.s32 1, %s4
  %s7 = scalar_select 0, %s6, %s4
  // Predicated region
  $region2: #{gpt_decoder_forward.19} parent=0 // pred_check
    _
  $region3: #{gpt_decoder_forward.19} parent=0 // pred_check_branch
    %9 = sbr.rel (0) target = $region5
  $region4: #{gpt_decoder_forward.19} parent=0 // pred_region
    _
  $region5: #{gpt_decoder_forward.19} parent=0 // pred_fallthru
    _
  // Predicated region
  $region6: #{gpt_decoder_forward.19} parent=0 // pred_check
    _
  $region7: #{gpt_decoder_forward.19} parent=0 // pred_check_branch
    %11 = sbr.rel (0) target = $region9
  $region8: #{gpt_decoder_forward.19} parent=0 // pred_region
    _
  $region9: #{gpt_decoder_forward.19} parent=0 // pred_fallthru
    _
  // Predicated region
  $region10: #{gpt_decoder_forward.19} parent=0 // pred_check
    _
  $region11: #{gpt_decoder_forward.19} parent=0 // pred_check_branch
    %13 = sbr.rel (0) target = $region13
  $region12: #{gpt_decoder_forward.19} parent=0 // pred_region
    _
  $region13: #{gpt_decoder_forward.19} parent=0 // pred_fallthru
    _
  %p15 = scmp.eq.s32.totalorder 0, 0
  // Predicated region
  $region14: #{gpt_decoder_forward.19} parent=0 // pred_check
    %p16 = pneg %p15
  $region15: #{gpt_decoder_forward.19} parent=0 // pred_check_branch
    %18 = sbr.rel (%p16) target = $region17
  $region16: #{gpt_decoder_forward.19} parent=0 // pred_region
    %vm19 = vcmask 785408
    %20 = vst.msk [vmem:[#allocation2] sm:$0xff] %vm19, 0.0
    %21 = vst.msk [vmem:[#allocation2 + $0x8] sm:$0xff] %vm19, 0.0
  $region17: #{gpt_decoder_forward.19} parent=0 // pred_fallthru
    _
  %v22 = vld [vmem:[#allocation2] sm:$0xff]
  %v23 = vld [vmem:[#allocation2 + $0x8] sm:$0xff]
  %v24 = vld [vmem:[%s0] sm:$0xf]
  %v25 = vld [vmem:[%s0 + $0x4] sm:$0xf]
  %v26 = vld [vmem:[%s1] sm:$0xf]
  %v27 = vld [vmem:[%s1 + $0x4] sm:$0xf]
  %v28 = vld [vmem:[%s1 + $0x8] sm:$0xf]
  %v29 = vld [vmem:[%s1 + $0xc] sm:$0xf]
  %v32 = vunpack.c.l.b16 %v24
  %v33 = vunpack.c.l.b16 %v25
  %v34 = vpack.c.b16 %v33, %v32
  %v39 = vunpack.c.l.b16 %v26
  %v40 = vunpack.c.l.b16 %v27
  %v41 = vunpack.c.l.b16 %v28
  %v42 = vunpack.c.l.b16 %v29
  %v43 = vpack.c.b16 %v40, %v39
  %v44 = vpack.c.b16 %v42, %v41
  %vm47 = vcmask 261120
  %v49 = vsel %vm47, %v34, 0
  %51 = vmatprep.subr.bf16.mxu0 0
  %52 = vmatpush1.bf16.msra.mxu0 0
  %53 = vmatprep.subr.bf16.mxu0 0
  %54 = vmatpush1.bf16.msra.mxu0 0
  %55 = vmatprep.subr.bf16.mxu0 0
  %56 = vmatpush1.bf16.msra.mxu0 0
  %57 = vmatprep.subr.bf16.mxu0 0
  %58 = vmatpush1.bf16.msra.mxu0 0
  %59 = vmatprep.subr.bf16.mxu0 0
  %60 = vmatpush1.bf16.msra.mxu0 0
  %61 = vmatprep.subr.bf16.mxu0 0
  %62 = vmatpush1.bf16.msra.mxu0 0
  %63 = vmatprep.subr.bf16.mxu0 0
  %64 = vmatpush1.bf16.msra.mxu0 %v44
  %65 = vmatprep.subr.bf16.mxu0 0
  %66 = vmatpush1.bf16.msra.mxu0 %v43
  %67 = vmatprep.subr.bf16.mxu0 0
  %68 = vmatpush2.bf16.msra.mxu0 0
  %69 = vmatprep.subr.bf16.mxu0 0
  %70 = vmatpush2.bf16.msra.mxu0 0
  %71 = vmatprep.subr.bf16.mxu0 0
  %72 = vmatpush2.bf16.msra.mxu0 0
  %73 = vmatprep.subr.bf16.mxu0 0
  %74 = vmatpush2.bf16.msra.mxu0 0
  %75 = vmatprep.subr.bf16.mxu0 0
  %76 = vmatpush2.bf16.msra.mxu0 0
  %77 = vmatprep.subr.bf16.mxu0 0
  %78 = vmatpush2.bf16.msra.mxu0 0
  %79 = vmatprep.subr.bf16.mxu0 0
  %80 = vmatpush2.bf16.msra.mxu0 0
  %81 = vmatprep.subr.bf16.mxu0 0
  %82 = vmatpush2.bf16.msra.mxu0 0
  %83 = vmatprep.mubr.bf16.mxu0 0
  %84 = vmatmul.mubr.bf16.gmra.mxu0 %v49
  %v85 = vpop.f32.mrf.mxu0
  %v86 = vadd.f32 0.0, %v85
  %v87 = vpop.f32.mrf.mxu0
  %v88 = vpop.f32.mrf.mxu0
  %v89 = vadd.f32 0.0, %v88
  %v90 = vpop.f32.mrf.mxu0
  %91 = vdwg.mxu0
  %v92 = vadd.f32 %v22, %v86
  %v93 = vadd.f32 %v23, %v89
  %vm94 = vcmask 785408
  %95 = vst.msk [vmem:[#allocation2] sm:$0xff] %vm94, %v92
  %96 = vst.msk [vmem:[#allocation2 + $0x8] sm:$0xff] %vm94, %v93
  // Predicated region
  $region18: #{gpt_decoder_forward.19} parent=0 // pred_check
    %p97 = pneg %p15
  $region19: #{gpt_decoder_forward.19} parent=0 // pred_check_branch
    %99 = sbr.rel (%p97) target = $region21
  $region20: #{gpt_decoder_forward.19} parent=0 // pred_region
    %v100 = vld [vmem:[#allocation2] sm:$0xff]
    %v101 = vld [vmem:[#allocation2 + $0x8] sm:$0xff]
    %v102 = vld [vmem:[%s2] sm:$0x1]
    %v104 = vlaneseq
    %v105 = vshrl.u32 %v104, 7
    %v106 = vsub.s32 0, %v105
    %v107 = vrot.slane %v102, %v106
    %v109 = vadd.f32 %v100, %v107
    %v110 = vadd.f32 %v101, %v107
    %v111 = vpack.c.bf16 %v110, %v109
    %v113 = vunpack.c.l.b16 %v111
    %v114 = vunpack.c.h.b16 %v111
    %v115 = vpack.c.b16 %v113, %v113
    %v116 = vpack.c.b16 %v114, %v114
    %vm119 = vcmask 781312
    %120 = vst.msk [vmem:[%s3] sm:$0xf] %vm119, %v115
    %121 = vst.msk [vmem:[%s3 + $0x4] sm:$0xf] %vm119, %v116
  $region21: #{gpt_decoder_forward.19} parent=0 // pred_fallthru
    _
  // Predicated region
  $region22: #{gpt_decoder_forward.19} parent=0 // pred_check
    _
  $region23: #{gpt_decoder_forward.19} parent=0 // pred_check_branch
    %123 = sbr.rel (0) target = $region25
  $region24: #{gpt_decoder_forward.19} parent=0 // pred_region
    _
  $region25: #{gpt_decoder_forward.19} parent=0 // pred_fallthru
    _
  // Predicated region
  $region26: #{gpt_decoder_forward.19} parent=0 // pred_check
    _
  $region27: #{gpt_decoder_forward.19} parent=0 // pred_check_branch
    %125 = sbr.rel (0) target = $region29
  $region28: #{gpt_decoder_forward.19} parent=0 // pred_region
    _
  $region29: #{gpt_decoder_forward.19} parent=0 // pred_fallthru
    _

// kernel: gpt_decoder_forward.23
$region0: #{gpt_decoder_forward.23}
  #allocation0 [shape = 'u32[]', space=smem, size = 0x4, offset = 0x4, fixed_abs, tag = 'smem constant byte address 0x4 - core index']
  #allocation1 [shape = 'u32[144,128]{1,0:T(1,128)}', space=vmem, size = 0x12000, scoped, tag = 'internal scratch']
  #allocation2 [shape = 'f32[20,64]{1,0:T(8,128)}', space=vmem, size = 0x3000, scoped, tag = 'scratch operand']
  %s0 = inlined_call_operand.vmem [shape: bf16[20,32], index: 0, kind: input, shape index: {}]
  %s1 = inlined_call_operand.vmem [shape: bf16[32,64], index: 1, kind: input, shape index: {}]
  %s2 = inlined_call_operand.vmem [shape: f32[1,64], index: 2, kind: input, shape index: {}]
  %s3 = inlined_call_operand.vmem [shape: bf16[20,64], index: 3, kind: output, shape index: {}]
  %s4 = sld [smem:[#allocation0]]
  $region30: #{gpt_decoder_forward.23} parent=0
    _
  %s6 = ssub.s32 1, %s4
  %s7 = scalar_select 0, %s6, %s4
  // Predicated region
  $region2: #{gpt_decoder_forward.23} parent=0 // pred_check
    _
  $region3: #{gpt_decoder_forward.23} parent=0 // pred_check_branch
    %9 = sbr.rel (0) target = $region5
  $region4: #{gpt_decoder_forward.23} parent=0 // pred_region
    _
  $region5: #{gpt_decoder_forward.23} parent=0 // pred_fallthru
    _
  // Predicated region
  $region6: #{gpt_decoder_forward.23} parent=0 // pred_check
    _
  $region7: #{gpt_decoder_forward.23} parent=0 // pred_check_branch
    %11 = sbr.rel (0) target = $region9
  $region8: #{gpt_decoder_forward.23} parent=0 // pred_region
    _
  $region9: #{gpt_decoder_forward.23} parent=0 // pred_fallthru
    _
  // Predicated region
  $region10: #{gpt_decoder_forward.23} parent=0 // pred_check
    _
  $region11: #{gpt_decoder_forward.23} parent=0 // pred_check_branch
    %13 = sbr.rel (0) target = $region13
  $region12: #{gpt_decoder_forward.23} parent=0 // pred_region
    _
  $region13: #{gpt_decoder_forward.23} parent=0 // pred_fallthru
    _
  %p15 = scmp.eq.s32.totalorder 0, 0
  // Predicated region
  $region14: #{gpt_decoder_forward.23} parent=0 // pred_check
    %p16 = pneg %p15
  $region15: #{gpt_decoder_forward.23} parent=0 // pred_check_branch
    %18 = sbr.rel (%p16) target = $region17
  $region16: #{gpt_decoder_forward.23} parent=0 // pred_region
    %vm19 = vcmask 523264
    %20 = vst.msk [vmem:[#allocation2] sm:$0xff] %vm19, 0.0
    %21 = vst.msk [vmem:[#allocation2 + $0x8] sm:$0xff] %vm19, 0.0
    %vm22 = vcmask 519168
    %23 = vst.msk [vmem:[#allocation2 + $0x10] sm:$0xf] %vm22, 0.0
  $region17: #{gpt_decoder_forward.23} parent=0 // pred_fallthru
    _
  %v24 = vld [vmem:[#allocation2] sm:$0xff]
  %v25 = vld [vmem:[#allocation2 + $0x8] sm:$0xff]
  %v26 = vld [vmem:[#allocation2 + $0x10] sm:$0xf]
  %v27 = vld [vmem:[%s0] sm:$0xf]
  %v28 = vld [vmem:[%s0 + $0x4] sm:$0xf]
  %v29 = vld [vmem:[%s0 + $0x8] sm:$0x3]
  %v30 = vld [vmem:[%s1] sm:$0xf]
  %v31 = vld [vmem:[%s1 + $0x4] sm:$0xf]
  %v32 = vld [vmem:[%s1 + $0x8] sm:$0xf]
  %v33 = vld [vmem:[%s1 + $0xc] sm:$0xf]
  %v37 = vunpack.c.l.b16 %v27
  %v38 = vunpack.c.l.b16 %v28
  %v39 = vunpack.c.l.b16 %v29
  %v40 = vpack.c.b16 %v38, %v37
  %v41 = vpack.c.b16 %v39, %v39
  %v46 = vunpack.c.l.b16 %v30
  %v47 = vunpack.c.l.b16 %v31
  %v48 = vunpack.c.l.b16 %v32
  %v49 = vunpack.c.l.b16 %v33
  %v50 = vpack.c.b16 %v47, %v46
  %v51 = vpack.c.b16 %v49, %v48
  %vm54 = vcmask 261120
  %v56 = vsel %vm54, %v40, 0
  %v59 = vsel %vm54, %v41, 0
  %61 = vmatprep.subr.bf16.mxu0 0
  %62 = vmatpush1.bf16.msra.mxu0 0
  %63 = vmatprep.subr.bf16.mxu0 0
  %64 = vmatpush1.bf16.msra.mxu0 0
  %65 = vmatprep.subr.bf16.mxu0 0
  %66 = vmatpush1.bf16.msra.mxu0 0
  %67 = vmatprep.subr.bf16.mxu0 0
  %68 = vmatpush1.bf16.msra.mxu0 0
  %69 = vmatprep.subr.bf16.mxu0 0
  %70 = vmatpush1.bf16.msra.mxu0 0
  %71 = vmatprep.subr.bf16.mxu0 0
  %72 = vmatpush1.bf16.msra.mxu0 0
  %73 = vmatprep.subr.bf16.mxu0 0
  %74 = vmatpush1.bf16.msra.mxu0 %v51
  %75 = vmatprep.subr.bf16.mxu0 0
  %76 = vmatpush1.bf16.msra.mxu0 %v50
  %77 = vmatprep.subr.bf16.mxu0 0
  %78 = vmatpush2.bf16.msra.mxu0 0
  %79 = vmatprep.subr.bf16.mxu0 0
  %80 = vmatpush2.bf16.msra.mxu0 0
  %81 = vmatprep.subr.bf16.mxu0 0
  %82 = vmatpush2.bf16.msra.mxu0 0
  %83 = vmatprep.subr.bf16.mxu0 0
  %84 = vmatpush2.bf16.msra.mxu0 0
  %85 = vmatprep.subr.bf16.mxu0 0
  %86 = vmatpush2.bf16.msra.mxu0 0
  %87 = vmatprep.subr.bf16.mxu0 0
  %88 = vmatpush2.bf16.msra.mxu0 0
  %89 = vmatprep.subr.bf16.mxu0 0
  %90 = vmatpush2.bf16.msra.mxu0 0
  %91 = vmatprep.subr.bf16.mxu0 0
  %92 = vmatpush2.bf16.msra.mxu0 0
  %93 = vmatprep.mubr.bf16.mxu0 0
  %94 = vmatmul.mubr.bf16.gmra.mxu0 %v56
  %v95 = vpop.f32.mrf.mxu0
  %v96 = vadd.f32 0.0, %v95
  %v97 = vpop.f32.mrf.mxu0
  %v98 = vpop.f32.mrf.mxu0
  %v99 = vadd.f32 0.0, %v98
  %v100 = vpop.f32.mrf.mxu0
  %101 = vmatprep.mubr.bf16.mxu0 0
  %102 = vmatmul.mubr.bf16.gmra.mxu0 %v59
  %v103 = vpop.f32.mrf.mxu0
  %v104 = vadd.f32 0.0, %v103
  %v105 = vpop.f32.mrf.mxu0
  %v106 = vpop.f32.mrf.mxu0
  %v107 = vpop.f32.mrf.mxu0
  %108 = vdwg.mxu0
  %v109 = vadd.f32 %v24, %v96
  %v110 = vadd.f32 %v25, %v99
  %v111 = vadd.f32 %v26, %v104
  %vm112 = vcmask 523264
  %113 = vst.msk [vmem:[#allocation2] sm:$0xff] %vm112, %v109
  %114 = vst.msk [vmem:[#allocation2 + $0x8] sm:$0xff] %vm112, %v110
  %vm115 = vcmask 519168
  %116 = vst.msk [vmem:[#allocation2 + $0x10] sm:$0xf] %vm115, %v111
  // Predicated region
  $region18: #{gpt_decoder_forward.23} parent=0 // pred_check
    %p117 = pneg %p15
  $region19: #{gpt_decoder_forward.23} parent=0 // pred_check_branch
    %119 = sbr.rel (%p117) target = $region21
  $region20: #{gpt_decoder_forward.23} parent=0 // pred_region
    %v120 = vld [vmem:[#allocation2] sm:$0xff]
    %v121 = vld [vmem:[#allocation2 + $0x8] sm:$0xff]
    %v122 = vld [vmem:[#allocation2 + $0x10] sm:$0xf]
    %v123 = vld [vmem:[%s2] sm:$0x1]
    %v125 = vlaneseq
    %v126 = vshrl.u32 %v125, 7
    %v127 = vsub.s32 0, %v126
    %v128 = vrot.slane %v123, %v127
    %v130 = vadd.f32 %v120, %v128
    %v131 = vadd.f32 %v121, %v128
    %v132 = vadd.f32 %v122, %v128
    %v133 = vpack.c.bf16 %v131, %v130
    %v134 = vpack.c.bf16 %v132, %v132
    %v137 = vunpack.c.l.b16 %v133
    %v138 = vunpack.c.h.b16 %v133
    %v139 = vunpack.c.l.b16 %v134
    %v140 = vpack.c.b16 %v137, %v137
    %v141 = vpack.c.b16 %v138, %v138
    %v142 = vpack.c.b16 %v139, %v139
    %146 = vst.msk [vmem:[%s3] sm:$0xf] %vm115, %v140
    %147 = vst.msk [vmem:[%s3 + $0x4] sm:$0xf] %vm115, %v141
    %vm148 = vcmask 517120
    %149 = vst.msk [vmem:[%s3 + $0x8] sm:$0x3] %vm148, %v142
  $region21: #{gpt_decoder_forward.23} parent=0 // pred_fallthru
    _
  // Predicated region
  $region22: #{gpt_decoder_forward.23} parent=0 // pred_check
    _
  $region23: #{gpt_decoder_forward.23} parent=0 // pred_check_branch
    %151 = sbr.rel (0) target = $region25
  $region24: #{gpt_decoder_forward.23} parent=0 // pred_region
    _
  $region25: #{gpt_decoder_forward.23} parent=0 // pred_fallthru
    _
  // Predicated region
  $region26: #{gpt_decoder_forward.23} parent=0 // pred_check
    _
  $region27: #{gpt_decoder_forward.23} parent=0 // pred_check_branch
    %153 = sbr.rel (0) target = $region29
  $region28: #{gpt_decoder_forward.23} parent=0 // pred_region
    _
  $region29: #{gpt_decoder_forward.23} parent=0 // pred_fallthru
    _

// kernel: gpt_decoder_forward.26
$region0: #{gpt_decoder_forward.26}
  #allocation0 [shape = 'u32[]', space=smem, size = 0x4, offset = 0x4, fixed_abs, tag = 'smem constant byte address 0x4 - core index']
  #allocation1 [shape = 'u32[144,128]{1,0:T(1,128)}', space=vmem, size = 0x12000, scoped, tag = 'internal scratch']
  #allocation2 [shape = 'f32[16,64]{1,0:T(8,128)}', space=vmem, size = 0x2000, scoped, tag = 'scratch operand']
  %s0 = inlined_call_operand.vmem [shape: bf16[16,32], index: 0, kind: input, shape index: {}]
  %s1 = inlined_call_operand.vmem [shape: bf16[32,64], index: 1, kind: input, shape index: {}]
  %s2 = inlined_call_operand.vmem [shape: f32[1,64], index: 2, kind: input, shape index: {}]
  %s3 = inlined_call_operand.vmem [shape: bf16[16,64], index: 3, kind: output, shape index: {}]
  %s4 = sld [smem:[#allocation0]]
  $region30: #{gpt_decoder_forward.26} parent=0
    _
  %s6 = ssub.s32 1, %s4
  %s7 = scalar_select 0, %s6, %s4
  // Predicated region
  $region2: #{gpt_decoder_forward.26} parent=0 // pred_check
    _
  $region3: #{gpt_decoder_forward.26} parent=0 // pred_check_branch
    %9 = sbr.rel (0) target = $region5
  $region4: #{gpt_decoder_forward.26} parent=0 // pred_region
    _
  $region5: #{gpt_decoder_forward.26} parent=0 // pred_fallthru
    _
  // Predicated region
  $region6: #{gpt_decoder_forward.26} parent=0 // pred_check
    _
  $region7: #{gpt_decoder_forward.26} parent=0 // pred_check_branch
    %11 = sbr.rel (0) target = $region9
  $region8: #{gpt_decoder_forward.26} parent=0 // pred_region
    _
  $region9: #{gpt_decoder_forward.26} parent=0 // pred_fallthru
    _
  // Predicated region
  $region10: #{gpt_decoder_forward.26} parent=0 // pred_check
    _
  $region11: #{gpt_decoder_forward.26} parent=0 // pred_check_branch
    %13 = sbr.rel (0) target = $region13
  $region12: #{gpt_decoder_forward.26} parent=0 // pred_region
    _
  $region13: #{gpt_decoder_forward.26} parent=0 // pred_fallthru
    _
  %p15 = scmp.eq.s32.totalorder 0, 0
  // Predicated region
  $region14: #{gpt_decoder_forward.26} parent=0 // pred_check
    %p16 = pneg %p15
  $region15: #{gpt_decoder_forward.26} parent=0 // pred_check_branch
    %18 = sbr.rel (%p16) target = $region17
  $region16: #{gpt_decoder_forward.26} parent=0 // pred_region
    %vm19 = vcmask 523264
    %20 = vst.msk [vmem:[#allocation2] sm:$0xff] %vm19, 0.0
    %21 = vst.msk [vmem:[#allocation2 + $0x8] sm:$0xff] %vm19, 0.0
  $region17: #{gpt_decoder_forward.26} parent=0 // pred_fallthru
    _
  %v22 = vld [vmem:[#allocation2] sm:$0xff]
  %v23 = vld [vmem:[#allocation2 + $0x8] sm:$0xff]
  %v24 = vld [vmem:[%s0] sm:$0xf]
  %v25 = vld [vmem:[%s0 + $0x4] sm:$0xf]
  %v26 = vld [vmem:[%s1] sm:$0xf]
  %v27 = vld [vmem:[%s1 + $0x4] sm:$0xf]
  %v28 = vld [vmem:[%s1 + $0x8] sm:$0xf]
  %v29 = vld [vmem:[%s1 + $0xc] sm:$0xf]
  %v32 = vunpack.c.l.b16 %v24
  %v33 = vunpack.c.l.b16 %v25
  %v34 = vpack.c.b16 %v33, %v32
  %v39 = vunpack.c.l.b16 %v26
  %v40 = vunpack.c.l.b16 %v27
  %v41 = vunpack.c.l.b16 %v28
  %v42 = vunpack.c.l.b16 %v29
  %v43 = vpack.c.b16 %v40, %v39
  %v44 = vpack.c.b16 %v42, %v41
  %vm47 = vcmask 261120
  %v49 = vsel %vm47, %v34, 0
  %51 = vmatprep.subr.bf16.mxu0 0
  %52 = vmatpush1.bf16.msra.mxu0 0
  %53 = vmatprep.subr.bf16.mxu0 0
  %54 = vmatpush1.bf16.msra.mxu0 0
  %55 = vmatprep.subr.bf16.mxu0 0
  %56 = vmatpush1.bf16.msra.mxu0 0
  %57 = vmatprep.subr.bf16.mxu0 0
  %58 = vmatpush1.bf16.msra.mxu0 0
  %59 = vmatprep.subr.bf16.mxu0 0
  %60 = vmatpush1.bf16.msra.mxu0 0
  %61 = vmatprep.subr.bf16.mxu0 0
  %62 = vmatpush1.bf16.msra.mxu0 0
  %63 = vmatprep.subr.bf16.mxu0 0
  %64 = vmatpush1.bf16.msra.mxu0 %v44
  %65 = vmatprep.subr.bf16.mxu0 0
  %66 = vmatpush1.bf16.msra.mxu0 %v43
  %67 = vmatprep.subr.bf16.mxu0 0
  %68 = vmatpush2.bf16.msra.mxu0 0
  %69 = vmatprep.subr.bf16.mxu0 0
  %70 = vmatpush2.bf16.msra.mxu0 0
  %71 = vmatprep.subr.bf16.mxu0 0
  %72 = vmatpush2.bf16.msra.mxu0 0
  %73 = vmatprep.subr.bf16.mxu0 0
  %74 = vmatpush2.bf16.msra.mxu0 0
  %75 = vmatprep.subr.bf16.mxu0 0
  %76 = vmatpush2.bf16.msra.mxu0 0
  %77 = vmatprep.subr.bf16.mxu0 0
  %78 = vmatpush2.bf16.msra.mxu0 0
  %79 = vmatprep.subr.bf16.mxu0 0
  %80 = vmatpush2.bf16.msra.mxu0 0
  %81 = vmatprep.subr.bf16.mxu0 0
  %82 = vmatpush2.bf16.msra.mxu0 0
  %83 = vmatprep.mubr.bf16.mxu0 0
  %84 = vmatmul.mubr.bf16.gmra.mxu0 %v49
  %v85 = vpop.f32.mrf.mxu0
  %v86 = vadd.f32 0.0, %v85
  %v87 = vpop.f32.mrf.mxu0
  %v88 = vpop.f32.mrf.mxu0
  %v89 = vadd.f32 0.0, %v88
  %v90 = vpop.f32.mrf.mxu0
  %91 = vdwg.mxu0
  %v92 = vadd.f32 %v22, %v86
  %v93 = vadd.f32 %v23, %v89
  %vm94 = vcmask 523264
  %95 = vst.msk [vmem:[#allocation2] sm:$0xff] %vm94, %v92
  %96 = vst.msk [vmem:[#allocation2 + $0x8] sm:$0xff] %vm94, %v93
  // Predicated region
  $region18: #{gpt_decoder_forward.26} parent=0 // pred_check
    %p97 = pneg %p15
  $region19: #{gpt_decoder_forward.26} parent=0 // pred_check_branch
    %99 = sbr.rel (%p97) target = $region21
  $region20: #{gpt_decoder_forward.26} parent=0 // pred_region
    %v100 = vld [vmem:[#allocation2] sm:$0xff]
    %v101 = vld [vmem:[#allocation2 + $0x8] sm:$0xff]
    %v102 = vld [vmem:[%s2] sm:$0x1]
    %v104 = vlaneseq
    %v105 = vshrl.u32 %v104, 7
    %v106 = vsub.s32 0, %v105
    %v107 = vrot.slane %v102, %v106
    %v109 = vadd.f32 %v100, %v107
    %v110 = vadd.f32 %v101, %v107
    %v111 = vmax.f32 %v109, 0.0
    %v112 = vmax.f32 %v110, 0.0
    %v113 = vpack.c.bf16 %v112, %v111
    %v115 = vunpack.c.l.b16 %v113
    %v116 = vunpack.c.h.b16 %v113
    %v117 = vpack.c.b16 %v115, %v115
    %v118 = vpack.c.b16 %v116, %v116
    %vm121 = vcmask 519168
    %122 = vst.msk [vmem:[%s3] sm:$0xf] %vm121, %v117
    %123 = vst.msk [vmem:[%s3 + $0x4] sm:$0xf] %vm121, %v118
  $region21: #{gpt_decoder_forward.26} parent=0 // pred_fallthru
    _
  // Predicated region
  $region22: #{gpt_decoder_forward.26} parent=0 // pred_check
    _
  $region23: #{gpt_decoder_forward.26} parent=0 // pred_check_branch
    %125 = sbr.rel (0) target = $region25
  $region24: #{gpt_decoder_forward.26} parent=0 // pred_region
    _
  $region25: #{gpt_decoder_forward.26} parent=0 // pred_fallthru
    _
  // Predicated region
  $region26: #{gpt_decoder_forward.26} parent=0 // pred_check
    _
  $region27: #{gpt_decoder_forward.26} parent=0 // pred_check_branch
    %127 = sbr.rel (0) target = $region29
  $region28: #{gpt_decoder_forward.26} parent=0 // pred_region
    _
  $region29: #{gpt_decoder_forward.26} parent=0 // pred_fallthru
    _

// kernel: gpt_decoder_forward.24
$region0: #{gpt_decoder_forward.24}
  #allocation0 [shape = 'u32[]', space=smem, size = 0x4, offset = 0x4, fixed_abs, tag = 'smem constant byte address 0x4 - core index']
  #allocation1 [shape = 'u32[144,128]{1,0:T(1,128)}', space=vmem, size = 0x12000, scoped, tag = 'internal scratch']
  %s0 = inlined_call_operand.vmem [shape: bf16[2,8,32], index: 0, kind: input, shape index: {}]
  %s1 = inlined_call_operand.vmem [shape: bf16[2,10,64], index: 1, kind: input, shape index: {}]
  %s2 = inlined_call_operand.vmem [shape: bf16[2,8,32], index: 2, kind: output, shape index: {}]
  %s3 = sld [smem:[#allocation0]]
  $region41: #{gpt_decoder_forward.24} parent=0
    _
  %s5 = ssub.s32 1, %s3
  %s6 = scalar_select 0, %s5, %s3
  loop: start=0, step=1, limit=4
  $region2: #{gpt_decoder_forward.24} parent=0 // loop_pre_header
    _
  $region3: #{gpt_decoder_forward.24} parent=0 // loop_header
    %s8 = sphi 0, %s12
    %p9 = scmp.ge.s32.totalorder %s8, 4
    %s18 = sphi 0, %s20
    %s21 = sphi 0, %s18
    %s22 = sphi 0, %s21
    %s38 = sphi 0, %s22
    %s44 = sphi 0, %s46
    %s47 = sphi 0, %s44
    %s48 = sphi 0, %s47
    %s64 = sphi 0, %s48
    %s70 = sphi 0, %s72
    %s73 = sphi 0, %s70
    %s74 = sphi 0, %s73
    %s90 = sphi 0, %s74
  $region4: #{gpt_decoder_forward.24} parent=0 // loop_header_branch
    %11 = sbr.rel (%p9) target = $region8
  $region5: #{gpt_decoder_forward.24} parent=0 // loop_body
    %s13 = ssub.s32 %s8, 1
    %s14 = ssub.s32 %s8, 2
    %s15 = sadd.s32 %s8, 1
    %s16 = ssub.s32 %s8, %s15
    %p17 = scmp.eq.s32.totalorder %s16, 0
    %s19 = sadd.s32 %s18, 1
    %s20 = scalar_select %p17, %s18, %s19
    %p23 = pneg %p17
    %p24 = scmp.eq.s32.totalorder %s8, 1
    %p25 = por %p23, %p24
    %p26 = scmp.ne.s32.totalorder %s18, %s21
    %p27 = scmp.eq.s32.totalorder %s8, 0
    %p28 = por %p26, %p27
    %p29 = scmp.ne.s32.totalorder %s18, %s21
    %p30 = scmp.eq.s32.totalorder %s13, 1
    %p31 = por %p29, %p30
    %p32 = scmp.ne.s32.totalorder %s21, %s22
    %p33 = scmp.eq.s32.totalorder %s13, 0
    %p34 = por %p32, %p33
    %p35 = scmp.ne.s32.totalorder %s21, %s22
    %p36 = scmp.eq.s32.totalorder %s14, 1
    %p37 = por %p35, %p36
    %p39 = scmp.ne.s32.totalorder %s22, %s38
    %p40 = scmp.eq.s32.totalorder %s14, 0
    %p41 = por %p39, %p40
    %s42 = ssub.s32 %s8, %s15
    %p43 = scmp.eq.s32.totalorder %s42, 0
    %s45 = sadd.s32 %s44, 1
    %s46 = scalar_select %p43, %s44, %s45
    %p49 = pneg %p43
    %p50 = scmp.eq.s32.totalorder %s8, 1
    %p51 = por %p49, %p50
    %p52 = scmp.ne.s32.totalorder %s44, %s47
    %p53 = scmp.eq.s32.totalorder %s8, 0
    %p54 = por %p52, %p53
    %p55 = scmp.ne.s32.totalorder %s44, %s47
    %p56 = scmp.eq.s32.totalorder %s13, 1
    %p57 = por %p55, %p56
    %p58 = scmp.ne.s32.totalorder %s47, %s48
    %p59 = scmp.eq.s32.totalorder %s13, 0
    %p60 = por %p58, %p59
    %p61 = scmp.ne.s32.totalorder %s47, %s48
    %p62 = scmp.eq.s32.totalorder %s14, 1
    %p63 = por %p61, %p62
    %p65 = scmp.ne.s32.totalorder %s48, %s64
    %p66 = scmp.eq.s32.totalorder %s14, 0
    %p67 = por %p65, %p66
    %s68 = ssub.s32 %s8, %s15
    %p69 = scmp.eq.s32.totalorder %s68, 0
    %s71 = sadd.s32 %s70, 1
    %s72 = scalar_select %p69, %s70, %s71
    %p75 = pneg %p69
    %p76 = scmp.eq.s32.totalorder %s8, 1
    %p77 = por %p75, %p76
    %p78 = scmp.ne.s32.totalorder %s70, %s73
    %p79 = scmp.eq.s32.totalorder %s8, 0
    %p80 = por %p78, %p79
    %p81 = scmp.ne.s32.totalorder %s70, %s73
    %p82 = scmp.eq.s32.totalorder %s13, 1
    %p83 = por %p81, %p82
    %p84 = scmp.ne.s32.totalorder %s73, %s74
    %p85 = scmp.eq.s32.totalorder %s13, 0
    %p86 = por %p84, %p85
    %p87 = scmp.ne.s32.totalorder %s73, %s74
    %p88 = scmp.eq.s32.totalorder %s14, 1
    %p89 = por %p87, %p88
    %p91 = scmp.ne.s32.totalorder %s74, %s90
    %p92 = scmp.eq.s32.totalorder %s14, 0
    %p93 = por %p91, %p92
    %p94 = scmp.le.s32.totalorder 1, %s8
    %p95 = scmp.lt.s32.totalorder %s8, 3
    %p96 = pnand %p94, %p95
    %p97 = pneg %p96
    // Predicated region
    $region9: #{gpt_decoder_forward.24} parent=5 // pred_check
      _
    $region10: #{gpt_decoder_forward.24} parent=5 // pred_check_branch
      %99 = sbr.rel (%p96) target = $region12
    $region11: #{gpt_decoder_forward.24} parent=5 // pred_region
      %s100 = ssub.s32 %s8, 1
    $region12: #{gpt_decoder_forward.24} parent=5 // pred_fallthru
      _
    %p101 = scmp.lt.s32.totalorder %s8, 2
    // Predicated region
    $region13: #{gpt_decoder_forward.24} parent=5 // pred_check
      %p102 = pneg %p101
    $region14: #{gpt_decoder_forward.24} parent=5 // pred_check_branch
      %104 = sbr.rel (%p102) target = $region16
    $region15: #{gpt_decoder_forward.24} parent=5 // pred_region
      // Predicated region
      $region17: #{gpt_decoder_forward.24} parent=15 // pred_check
        %p105 = pneg %p28
      $region18: #{gpt_decoder_forward.24} parent=15 // pred_check_branch
        %107 = sbr.rel (%p105) target = $region20
      $region19: #{gpt_decoder_forward.24} parent=15 // pred_region
        %p108 = scmp.lt.s32.totalorder %s8, 1
        %s109 = scalar_select %p108, %s8, 1
        %s110 = smul.addr %s109, 4
        %s111 = scalar_lea.vmem %s0, %s110
      $region20: #{gpt_decoder_forward.24} parent=15 // pred_fallthru
        _
      // Predicated region
      $region21: #{gpt_decoder_forward.24} parent=15 // pred_check
        %p112 = pneg %p54
      $region22: #{gpt_decoder_forward.24} parent=15 // pred_check_branch
        %114 = sbr.rel (%p112) target = $region24
      $region23: #{gpt_decoder_forward.24} parent=15 // pred_region
        %p115 = scmp.lt.s32.totalorder %s8, 1
        %s116 = scalar_select %p115, %s8, 1
        %s117 = smul.addr %s116, 2
        %s118 = smul.addr %s117, 4
        %s119 = scalar_lea.vmem %s1, %s118
      $region24: #{gpt_decoder_forward.24} parent=15 // pred_fallthru
        _
    $region16: #{gpt_decoder_forward.24} parent=5 // pred_fallthru
      _
    %p120 = scmp.le.s32.totalorder 1, %s8
    %p121 = scmp.lt.s32.totalorder %s8, 3
    %p122 = pnand %p120, %p121
    %p123 = pneg %p122
    // Predicated region
    $region25: #{gpt_decoder_forward.24} parent=5 // pred_check
      _
    $region26: #{gpt_decoder_forward.24} parent=5 // pred_check_branch
      %125 = sbr.rel (%p122) target = $region28
    $region27: #{gpt_decoder_forward.24} parent=5 // pred_region
      %s126 = ssub.s32 %s8, 1
      %p127 = scmp.lt.s32.totalorder %s13, 1
      %s128 = scalar_select %p127, %s13, 1
      %s129 = smul.addr %s128, 4
      %s130 = scalar_lea.vmem %s0, %s129
      %p131 = pneg %p34
      %p132 = pneg %p31
      %p133 = scmp.lt.s32.totalorder %s13, 1
      %s134 = scalar_select %p133, %s13, 1
      %s135 = smul.addr %s134, 2
      %s136 = smul.addr %s135, 4
      %s137 = scalar_lea.vmem %s1, %s136
      %p138 = pneg %p60
      %p139 = pneg %p57
      %p140 = pneg %p86
      %p141 = pneg %p83
      %p142 = scmp.lt.s32.totalorder %s13, 1
      %s143 = scalar_select %p142, %s13, 1
      %s144 = smul.addr %s143, 4
      %s145 = scalar_lea.vmem %s2, %s144
      %p146 = scmp.lt.s32.totalorder %s13, 1
      %s147 = scalar_select %p146, %s13, 1
      %s148 = smul.addr %s147, 4
      %s149 = scalar_lea.vmem %s0, %s148
      %p150 = scmp.lt.s32.totalorder %s13, 1
      %s151 = scalar_select %p150, %s13, 1
      %s152 = smul.addr %s151, 2
      %s153 = smul.addr %s152, 4
      %s154 = scalar_lea.vmem %s1, %s153
      %p155 = scmp.lt.s32.totalorder %s13, 1
      %s156 = scalar_select %p155, %s13, 1
      %s157 = smul.addr %s156, 4
      %s158 = scalar_lea.vmem %s2, %s157
      %v160 = vld [vmem:[%s149] sm:$0xf]
      %v161 = vld [vmem:[%s154] sm:$0xf]
      %v162 = vld [vmem:[%s154 + $0x4] sm:$0x1]
      %v163 = vunpack.c.l.bf16 %v160
      %v164 = vmul.f32 %v163, 0.35355338
      %v165 = vunpack.c.l.bf16 %v161
      %v166 = vunpack.c.l.bf16 %v162
      %vm167 = vcmask 64512
      %v169 = vsel %vm167, %v164, 0
      %v172 = vsel %vm167, %v165, 0
      %v175 = vsel %vm167, %v166, 0
      %177 = vmatprep.subr.mxu0 0.0
      %178 = vmatpush1.xpose.msra.mxu0 0.0
      %179 = vmatprep.subr.mxu0 0.0
      %180 = vmatpush1.xpose.msra.mxu0 0.0
      %181 = vmatprep.subr.mxu0 0.0
      %182 = vmatpush1.xpose.msra.mxu0 0.0
      %183 = vmatprep.subr.mxu0 0.0
      %184 = vmatpush1.xpose.msra.mxu0 0.0
      %185 = vmatprep.subr.mxu0 0.0
      %186 = vmatpush1.xpose.msra.mxu0 0.0
      %187 = vmatprep.subr.mxu0 0.0
      %188 = vmatpush1.xpose.msra.mxu0 0.0
      %189 = vmatprep.subr.mxu0 0.0
      %190 = vmatpush1.xpose.msra.mxu0 0.0
      %191 = vmatprep.subr.mxu0 0.0
      %192 = vmatpush1.xpose.msra.mxu0 0.0
      %193 = vmatprep.subr.mxu0 0.0
      %194 = vmatpush1.xpose.msra.mxu0 0.0
      %195 = vmatprep.subr.mxu0 0.0
      %196 = vmatpush1.xpose.msra.mxu0 0.0
      %197 = vmatprep.subr.mxu0 0.0
      %198 = vmatpush1.xpose.msra.mxu0 0.0
      %199 = vmatprep.subr.mxu0 0.0
      %200 = vmatpush1.xpose.msra.mxu0 0.0
      %201 = vmatprep.subr.mxu0 0.0
      %202 = vmatpush1.xpose.msra.mxu0 0.0
      %203 = vmatprep.subr.mxu0 0.0
      %204 = vmatpush1.xpose.msra.mxu0 0.0
      %205 = vmatprep.subr.mxu0 0.0
      %206 = vmatpush1.xpose.msra.mxu0 %v175
      %207 = vmatprep.subr.mxu0 0.0
      %208 = vmatpush1.xpose.msra.mxu0 %v172
      %209 = vmatprep.subr.mxu0 0.0
      %210 = vmatpush2.xpose.msra.mxu0 0.0
      %211 = vmatprep.subr.mxu0 0.0
      %212 = vmatpush2.xpose.msra.mxu0 0.0
      %213 = vmatprep.subr.mxu0 0.0
      %214 = vmatpush2.xpose.msra.mxu0 0.0
      %215 = vmatprep.subr.mxu0 0.0
      %216 = vmatpush2.xpose.msra.mxu0 0.0
      %217 = vmatprep.subr.mxu0 0.0
      %218 = vmatpush2.xpose.msra.mxu0 0.0
      %219 = vmatprep.subr.mxu0 0.0
      %220 = vmatpush2.xpose.msra.mxu0 0.0
      %221 = vmatprep.subr.mxu0 0.0
      %222 = vmatpush2.xpose.msra.mxu0 0.0
      %223 = vmatprep.subr.mxu0 0.0
      %224 = vmatpush2.xpose.msra.mxu0 0.0
      %225 = vmatprep.subr.mxu0 0.0
      %226 = vmatpush2.xpose.msra.mxu0 0.0
      %227 = vmatprep.subr.mxu0 0.0
      %228 = vmatpush2.xpose.msra.mxu0 0.0
      %229 = vmatprep.subr.mxu0 0.0
      %230 = vmatpush2.xpose.msra.mxu0 0.0
      %231 = vmatprep.subr.mxu0 0.0
      %232 = vmatpush2.xpose.msra.mxu0 0.0
      %233 = vmatprep.subr.mxu0 0.0
      %234 = vmatpush2.xpose.msra.mxu0 0.0
      %235 = vmatprep.subr.mxu0 0.0
      %236 = vmatpush2.xpose.msra.mxu0 0.0
      %237 = vmatprep.subr.mxu0 0.0
      %238 = vmatpush2.xpose.msra.mxu0 0.0
      %239 = vmatprep.subr.mxu0 0.0
      %240 = vmatpush2.xpose.msra.mxu0 0.0
      %241 = vmatprep.mubr.f32.mxu0 0.0
      %242 = vmatmul.mubr.f32.gmra.mxu0 %v169
      %v243 = vpop.f32.mrf.mxu0
      %v244 = vadd.f32 0.0, %v243
      %v245 = vpop.f32.mrf.mxu0
      %246 = vdwg.mxu0
      %vm247 = vcmask 80896
      %v248 = vsel %vm247, %v244, -inf
      %249 = vmax.xlane.f32.xlu0 %v248
      %v250 = vpop.xlane.xlu0 %249
      %v251 = vsub.f32 %v244, %v250
      %v252 = vmul.f32 %v251, 1.442695
      %v253 = vpow.pop %v252
      %v254 = vsel %vm247, %v253, 0.0
      %255 = vadd.xlane.f32.xlu0 %v254
      %v256 = vpop.xlane.xlu0 %255
      %v257 = vrcp.pop %v256
      %v258 = vmul.f32 %v253, %v257
      %v259 = vpack.c.bf16 %v258, %v258
      %v262 = vunpack.c.l.b16 %v161
      %v263 = vunpack.c.l.b16 %v162
      %v264 = vpack.c.b16 %v263, %v262
      %265 = vrot.lane.b32.xlu0 %v264, 96
      %v266 = vpop.permute.xlu0 %265
      %v268 = vsel %vm247, %v259, 0
      %vm270 = vcmask 1044480
      %v272 = vsel %vm270, %v266, 0
      %274 = vmatprep.subr.bf16.mxu0 0
      %275 = vmatpush1.bf16.msra.mxu0 0
      %276 = vmatprep.subr.bf16.mxu0 0
      %277 = vmatpush1.bf16.msra.mxu0 0
      %278 = vmatprep.subr.bf16.mxu0 0
      %279 = vmatpush1.bf16.msra.mxu0 0
      %280 = vmatprep.subr.bf16.mxu0 0
      %281 = vmatpush1.bf16.msra.mxu0 0
      %282 = vmatprep.subr.bf16.mxu0 0
      %283 = vmatpush1.bf16.msra.mxu0 0
      %284 = vmatprep.subr.bf16.mxu0 0
      %285 = vmatpush1.bf16.msra.mxu0 0
      %286 = vmatprep.subr.bf16.mxu0 0
      %287 = vmatpush1.bf16.msra.mxu0 0
      %288 = vmatprep.subr.bf16.mxu0 0
      %289 = vmatpush1.bf16.msra.mxu0 %v272
      %290 = vmatprep.subr.bf16.mxu0 0
      %291 = vmatpush2.bf16.msra.mxu0 0
      %292 = vmatprep.subr.bf16.mxu0 0
      %293 = vmatpush2.bf16.msra.mxu0 0
      %294 = vmatprep.subr.bf16.mxu0 0
      %295 = vmatpush2.bf16.msra.mxu0 0
      %296 = vmatprep.subr.bf16.mxu0 0
      %297 = vmatpush2.bf16.msra.mxu0 0
      %298 = vmatprep.subr.bf16.mxu0 0
      %299 = vmatpush2.bf16.msra.mxu0 0
      %300 = vmatprep.subr.bf16.mxu0 0
      %301 = vmatpush2.bf16.msra.mxu0 0
      %302 = vmatprep.subr.bf16.mxu0 0
      %303 = vmatpush2.bf16.msra.mxu0 0
      %304 = vmatprep.subr.bf16.mxu0 0
      %305 = vmatpush2.bf16.msra.mxu0 0
      %306 = vmatprep.mubr.bf16.mxu0 0
      %307 = vmatmul.mubr.bf16.gmra.mxu0 %v268
      %v308 = vpop.f32.mrf.mxu0
      %v309 = vadd.f32 0.0, %v308
      %v310 = vpop.f32.mrf.mxu0
      %v311 = vpop.f32.mrf.mxu0
      %v312 = vpop.f32.mrf.mxu0
      %313 = vdwg.mxu0
      %314 = vrot.lane.b32.xlu0 %v164, 120
      %v315 = vpop.permute.xlu0 %314
      %316 = vrot.lane.b32.xlu0 %v165, 120
      %v317 = vpop.permute.xlu0 %316
      %318 = vrot.lane.b32.xlu0 %v166, 120
      %v319 = vpop.permute.xlu0 %318
      %v320 = vsel %vm167, %v315, 0
      %v322 = vsel %vm167, %v317, 0
      %v324 = vsel %vm167, %v319, 0
      %326 = vmatprep.subr.mxu0 0.0
      %327 = vmatpush1.xpose.msra.mxu0 0.0
      %328 = vmatprep.subr.mxu0 0.0
      %329 = vmatpush1.xpose.msra.mxu0 0.0
      %330 = vmatprep.subr.mxu0 0.0
      %331 = vmatpush1.xpose.msra.mxu0 0.0
      %332 = vmatprep.subr.mxu0 0.0
      %333 = vmatpush1.xpose.msra.mxu0 0.0
      %334 = vmatprep.subr.mxu0 0.0
      %335 = vmatpush1.xpose.msra.mxu0 0.0
      %336 = vmatprep.subr.mxu0 0.0
      %337 = vmatpush1.xpose.msra.mxu0 0.0
      %338 = vmatprep.subr.mxu0 0.0
      %339 = vmatpush1.xpose.msra.mxu0 0.0
      %340 = vmatprep.subr.mxu0 0.0
      %341 = vmatpush1.xpose.msra.mxu0 0.0
      %342 = vmatprep.subr.mxu0 0.0
      %343 = vmatpush1.xpose.msra.mxu0 0.0
      %344 = vmatprep.subr.mxu0 0.0
      %345 = vmatpush1.xpose.msra.mxu0 0.0
      %346 = vmatprep.subr.mxu0 0.0
      %347 = vmatpush1.xpose.msra.mxu0 0.0
      %348 = vmatprep.subr.mxu0 0.0
      %349 = vmatpush1.xpose.msra.mxu0 0.0
      %350 = vmatprep.subr.mxu0 0.0
      %351 = vmatpush1.xpose.msra.mxu0 0.0
      %352 = vmatprep.subr.mxu0 0.0
      %353 = vmatpush1.xpose.msra.mxu0 0.0
      %354 = vmatprep.subr.mxu0 0.0
      %355 = vmatpush1.xpose.msra.mxu0 %v324
      %356 = vmatprep.subr.mxu0 0.0
      %357 = vmatpush1.xpose.msra.mxu0 %v322
      %358 = vmatprep.subr.mxu0 0.0
      %359 = vmatpush2.xpose.msra.mxu0 0.0
      %360 = vmatprep.subr.mxu0 0.0
      %361 = vmatpush2.xpose.msra.mxu0 0.0
      %362 = vmatprep.subr.mxu0 0.0
      %363 = vmatpush2.xpose.msra.mxu0 0.0
      %364 = vmatprep.subr.mxu0 0.0
      %365 = vmatpush2.xpose.msra.mxu0 0.0
      %366 = vmatprep.subr.mxu0 0.0
      %367 = vmatpush2.xpose.msra.mxu0 0.0
      %368 = vmatprep.subr.mxu0 0.0
      %369 = vmatpush2.xpose.msra.mxu0 0.0
      %370 = vmatprep.subr.mxu0 0.0
      %371 = vmatpush2.xpose.msra.mxu0 0.0
      %372 = vmatprep.subr.mxu0 0.0
      %373 = vmatpush2.xpose.msra.mxu0 0.0
      %374 = vmatprep.subr.mxu0 0.0
      %375 = vmatpush2.xpose.msra.mxu0 0.0
      %376 = vmatprep.subr.mxu0 0.0
      %377 = vmatpush2.xpose.msra.mxu0 0.0
      %378 = vmatprep.subr.mxu0 0.0
      %379 = vmatpush2.xpose.msra.mxu0 0.0
      %380 = vmatprep.subr.mxu0 0.0
      %381 = vmatpush2.xpose.msra.mxu0 0.0
      %382 = vmatprep.subr.mxu0 0.0
      %383 = vmatpush2.xpose.msra.mxu0 0.0
      %384 = vmatprep.subr.mxu0 0.0
      %385 = vmatpush2.xpose.msra.mxu0 0.0
      %386 = vmatprep.subr.mxu0 0.0
      %387 = vmatpush2.xpose.msra.mxu0 0.0
      %388 = vmatprep.subr.mxu0 0.0
      %389 = vmatpush2.xpose.msra.mxu0 0.0
      %390 = vmatprep.mubr.f32.mxu0 0.0
      %391 = vmatmul.mubr.f32.gmra.mxu0 %v320
      %v392 = vpop.f32.mrf.mxu0
      %v393 = vadd.f32 0.0, %v392
      %v394 = vpop.f32.mrf.mxu0
      %395 = vdwg.mxu0
      %v396 = vsel %vm247, %v393, -inf
      %397 = vmax.xlane.f32.xlu0 %v396
      %v398 = vpop.xlane.xlu0 %397
      %v399 = vsub.f32 %v393, %v398
      %v400 = vmul.f32 %v399, 1.442695
      %v401 = vpow.pop %v400
      %v402 = vsel %vm247, %v401, 0.0
      %403 = vadd.xlane.f32.xlu0 %v402
      %v404 = vpop.xlane.xlu0 %403
      %v405 = vrcp.pop %v404
      %v406 = vmul.f32 %v401, %v405
      %v407 = vpack.c.bf16 %v406, %v406
      %408 = vrot.lane.b32.xlu0 %v264, 88
      %v409 = vpop.permute.xlu0 %408
      %v411 = vsel %vm247, %v407, 0
      %v414 = vsel %vm270, %v409, 0
      %416 = vmatprep.subr.bf16.mxu0 0
      %417 = vmatpush1.bf16.msra.mxu0 0
      %418 = vmatprep.subr.bf16.mxu0 0
      %419 = vmatpush1.bf16.msra.mxu0 0
      %420 = vmatprep.subr.bf16.mxu0 0
      %421 = vmatpush1.bf16.msra.mxu0 0
      %422 = vmatprep.subr.bf16.mxu0 0
      %423 = vmatpush1.bf16.msra.mxu0 0
      %424 = vmatprep.subr.bf16.mxu0 0
      %425 = vmatpush1.bf16.msra.mxu0 0
      %426 = vmatprep.subr.bf16.mxu0 0
      %427 = vmatpush1.bf16.msra.mxu0 0
      %428 = vmatprep.subr.bf16.mxu0 0
      %429 = vmatpush1.bf16.msra.mxu0 0
      %430 = vmatprep.subr.bf16.mxu0 0
      %431 = vmatpush1.bf16.msra.mxu0 %v414
      %432 = vmatprep.subr.bf16.mxu0 0
      %433 = vmatpush2.bf16.msra.mxu0 0
      %434 = vmatprep.subr.bf16.mxu0 0
      %435 = vmatpush2.bf16.msra.mxu0 0
      %436 = vmatprep.subr.bf16.mxu0 0
      %437 = vmatpush2.bf16.msra.mxu0 0
      %438 = vmatprep.subr.bf16.mxu0 0
      %439 = vmatpush2.bf16.msra.mxu0 0
      %440 = vmatprep.subr.bf16.mxu0 0
      %441 = vmatpush2.bf16.msra.mxu0 0
      %442 = vmatprep.subr.bf16.mxu0 0
      %443 = vmatpush2.bf16.msra.mxu0 0
      %444 = vmatprep.subr.bf16.mxu0 0
      %445 = vmatpush2.bf16.msra.mxu0 0
      %446 = vmatprep.subr.bf16.mxu0 0
      %447 = vmatpush2.bf16.msra.mxu0 0
      %448 = vmatprep.mubr.bf16.mxu0 0
      %449 = vmatmul.mubr.bf16.gmra.mxu0 %v411
      %v450 = vpop.f32.mrf.mxu0
      %v451 = vadd.f32 0.0, %v450
      %v452 = vpop.f32.mrf.mxu0
      %v453 = vpop.f32.mrf.mxu0
      %v454 = vpop.f32.mrf.mxu0
      %455 = vdwg.mxu0
      %456 = vrot.lane.b32.xlu0 %v164, 112
      %v457 = vpop.permute.xlu0 %456
      %458 = vrot.lane.b32.xlu0 %v165, 112
      %v459 = vpop.permute.xlu0 %458
      %460 = vrot.lane.b32.xlu0 %v166, 112
      %v461 = vpop.permute.xlu0 %460
      %v462 = vsel %vm167, %v457, 0
      %v464 = vsel %vm167, %v459, 0
      %v466 = vsel %vm167, %v461, 0
      %468 = vmatprep.subr.mxu0 0.0
      %469 = vmatpush1.xpose.msra.mxu0 0.0
      %470 = vmatprep.subr.mxu0 0.0
      %471 = vmatpush1.xpose.msra.mxu0 0.0
      %472 = vmatprep.subr.mxu0 0.0
      %473 = vmatpush1.xpose.msra.mxu0 0.0
      %474 = vmatprep.subr.mxu0 0.0
      %475 = vmatpush1.xpose.msra.mxu0 0.0
      %476 = vmatprep.subr.mxu0 0.0
      %477 = vmatpush1.xpose.msra.mxu0 0.0
      %478 = vmatprep.subr.mxu0 0.0
      %479 = vmatpush1.xpose.msra.mxu0 0.0
      %480 = vmatprep.subr.mxu0 0.0
      %481 = vmatpush1.xpose.msra.mxu0 0.0
      %482 = vmatprep.subr.mxu0 0.0
      %483 = vmatpush1.xpose.msra.mxu0 0.0
      %484 = vmatprep.subr.mxu0 0.0
      %485 = vmatpush1.xpose.msra.mxu0 0.0
      %486 = vmatprep.subr.mxu0 0.0
      %487 = vmatpush1.xpose.msra.mxu0 0.0
      %488 = vmatprep.subr.mxu0 0.0
      %489 = vmatpush1.xpose.msra.mxu0 0.0
      %490 = vmatprep.subr.mxu0 0.0
      %491 = vmatpush1.xpose.msra.mxu0 0.0
      %492 = vmatprep.subr.mxu0 0.0
      %493 = vmatpush1.xpose.msra.mxu0 0.0
      %494 = vmatprep.subr.mxu0 0.0
      %495 = vmatpush1.xpose.msra.mxu0 0.0
      %496 = vmatprep.subr.mxu0 0.0
      %497 = vmatpush1.xpose.msra.mxu0 %v466
      %498 = vmatprep.subr.mxu0 0.0
      %499 = vmatpush1.xpose.msra.mxu0 %v464
      %500 = vmatprep.subr.mxu0 0.0
      %501 = vmatpush2.xpose.msra.mxu0 0.0
      %502 = vmatprep.subr.mxu0 0.0
      %503 = vmatpush2.xpose.msra.mxu0 0.0
      %504 = vmatprep.subr.mxu0 0.0
      %505 = vmatpush2.xpose.msra.mxu0 0.0
      %506 = vmatprep.subr.mxu0 0.0
      %507 = vmatpush2.xpose.msra.mxu0 0.0
      %508 = vmatprep.subr.mxu0 0.0
      %509 = vmatpush2.xpose.msra.mxu0 0.0
      %510 = vmatprep.subr.mxu0 0.0
      %511 = vmatpush2.xpose.msra.mxu0 0.0
      %512 = vmatprep.subr.mxu0 0.0
      %513 = vmatpush2.xpose.msra.mxu0 0.0
      %514 = vmatprep.subr.mxu0 0.0
      %515 = vmatpush2.xpose.msra.mxu0 0.0
      %516 = vmatprep.subr.mxu0 0.0
      %517 = vmatpush2.xpose.msra.mxu0 0.0
      %518 = vmatprep.subr.mxu0 0.0
      %519 = vmatpush2.xpose.msra.mxu0 0.0
      %520 = vmatprep.subr.mxu0 0.0
      %521 = vmatpush2.xpose.msra.mxu0 0.0
      %522 = vmatprep.subr.mxu0 0.0
      %523 = vmatpush2.xpose.msra.mxu0 0.0
      %524 = vmatprep.subr.mxu0 0.0
      %525 = vmatpush2.xpose.msra.mxu0 0.0
      %526 = vmatprep.subr.mxu0 0.0
      %527 = vmatpush2.xpose.msra.mxu0 0.0
      %528 = vmatprep.subr.mxu0 0.0
      %529 = vmatpush2.xpose.msra.mxu0 0.0
      %530 = vmatprep.subr.mxu0 0.0
      %531 = vmatpush2.xpose.msra.mxu0 0.0
      %532 = vmatprep.mubr.f32.mxu0 0.0
      %533 = vmatmul.mubr.f32.gmra.mxu0 %v462
      %v534 = vpop.f32.mrf.mxu0
      %v535 = vadd.f32 0.0, %v534
      %v536 = vpop.f32.mrf.mxu0
      %537 = vdwg.mxu0
      %v538 = vsel %vm247, %v535, -inf
      %539 = vmax.xlane.f32.xlu0 %v538
      %v540 = vpop.xlane.xlu0 %539
      %v541 = vsub.f32 %v535, %v540
      %v542 = vmul.f32 %v541, 1.442695
      %v543 = vpow.pop %v542
      %v544 = vsel %vm247, %v543, 0.0
      %545 = vadd.xlane.f32.xlu0 %v544
      %v546 = vpop.xlane.xlu0 %545
      %v547 = vrcp.pop %v546
      %v548 = vmul.f32 %v543, %v547
      %v549 = vpack.c.bf16 %v548, %v548
      %550 = vrot.lane.b32.xlu0 %v264, 80
      %v551 = vpop.permute.xlu0 %550
      %v553 = vsel %vm247, %v549, 0
      %v556 = vsel %vm270, %v551, 0
      %558 = vmatprep.subr.bf16.mxu0 0
      %559 = vmatpush1.bf16.msra.mxu0 0
      %560 = vmatprep.subr.bf16.mxu0 0
      %561 = vmatpush1.bf16.msra.mxu0 0
      %562 = vmatprep.subr.bf16.mxu0 0
      %563 = vmatpush1.bf16.msra.mxu0 0
      %564 = vmatprep.subr.bf16.mxu0 0
      %565 = vmatpush1.bf16.msra.mxu0 0
      %566 = vmatprep.subr.bf16.mxu0 0
      %567 = vmatpush1.bf16.msra.mxu0 0
      %568 = vmatprep.subr.bf16.mxu0 0
      %569 = vmatpush1.bf16.msra.mxu0 0
      %570 = vmatprep.subr.bf16.mxu0 0
      %571 = vmatpush1.bf16.msra.mxu0 0
      %572 = vmatprep.subr.bf16.mxu0 0
      %573 = vmatpush1.bf16.msra.mxu0 %v556
      %574 = vmatprep.subr.bf16.mxu0 0
      %575 = vmatpush2.bf16.msra.mxu0 0
      %576 = vmatprep.subr.bf16.mxu0 0
      %577 = vmatpush2.bf16.msra.mxu0 0
      %578 = vmatprep.subr.bf16.mxu0 0
      %579 = vmatpush2.bf16.msra.mxu0 0
      %580 = vmatprep.subr.bf16.mxu0 0
      %581 = vmatpush2.bf16.msra.mxu0 0
      %582 = vmatprep.subr.bf16.mxu0 0
      %583 = vmatpush2.bf16.msra.mxu0 0
      %584 = vmatprep.subr.bf16.mxu0 0
      %585 = vmatpush2.bf16.msra.mxu0 0
      %586 = vmatprep.subr.bf16.mxu0 0
      %587 = vmatpush2.bf16.msra.mxu0 0
      %588 = vmatprep.subr.bf16.mxu0 0
      %589 = vmatpush2.bf16.msra.mxu0 0
      %590 = vmatprep.mubr.bf16.mxu0 0
      %591 = vmatmul.mubr.bf16.gmra.mxu0 %v553
      %v592 = vpop.f32.mrf.mxu0
      %v593 = vadd.f32 0.0, %v592
      %v594 = vpop.f32.mrf.mxu0
      %v595 = vpop.f32.mrf.mxu0
      %v596 = vpop.f32.mrf.mxu0
      %597 = vdwg.mxu0
      %598 = vrot.lane.b32.xlu0 %v164, 104
      %v599 = vpop.permute.xlu0 %598
      %600 = vrot.lane.b32.xlu0 %v165, 104
      %v601 = vpop.permute.xlu0 %600
      %602 = vrot.lane.b32.xlu0 %v166, 104
      %v603 = vpop.permute.xlu0 %602
      %v604 = vsel %vm167, %v599, 0
      %v606 = vsel %vm167, %v601, 0
      %v608 = vsel %vm167, %v603, 0
      %610 = vmatprep.subr.mxu0 0.0
      %611 = vmatpush1.xpose.msra.mxu0 0.0
      %612 = vmatprep.subr.mxu0 0.0
      %613 = vmatpush1.xpose.msra.mxu0 0.0
      %614 = vmatprep.subr.mxu0 0.0
      %615 = vmatpush1.xpose.msra.mxu0 0.0
      %616 = vmatprep.subr.mxu0 0.0
      %617 = vmatpush1.xpose.msra.mxu0 0.0
      %618 = vmatprep.subr.mxu0 0.0
      %619 = vmatpush1.xpose.msra.mxu0 0.0
      %620 = vmatprep.subr.mxu0 0.0
      %621 = vmatpush1.xpose.msra.mxu0 0.0
      %622 = vmatprep.subr.mxu0 0.0
      %623 = vmatpush1.xpose.msra.mxu0 0.0
      %624 = vmatprep.subr.mxu0 0.0
      %625 = vmatpush1.xpose.msra.mxu0 0.0
      %626 = vmatprep.subr.mxu0 0.0
      %627 = vmatpush1.xpose.msra.mxu0 0.0
      %628 = vmatprep.subr.mxu0 0.0
      %629 = vmatpush1.xpose.msra.mxu0 0.0
      %630 = vmatprep.subr.mxu0 0.0
      %631 = vmatpush1.xpose.msra.mxu0 0.0
      %632 = vmatprep.subr.mxu0 0.0
      %633 = vmatpush1.xpose.msra.mxu0 0.0
      %634 = vmatprep.subr.mxu0 0.0
      %635 = vmatpush1.xpose.msra.mxu0 0.0
      %636 = vmatprep.subr.mxu0 0.0
      %637 = vmatpush1.xpose.msra.mxu0 0.0
      %638 = vmatprep.subr.mxu0 0.0
      %639 = vmatpush1.xpose.msra.mxu0 %v608
      %640 = vmatprep.subr.mxu0 0.0
      %641 = vmatpush1.xpose.msra.mxu0 %v606
      %642 = vmatprep.subr.mxu0 0.0
      %643 = vmatpush2.xpose.msra.mxu0 0.0
      %644 = vmatprep.subr.mxu0 0.0
      %645 = vmatpush2.xpose.msra.mxu0 0.0
      %646 = vmatprep.subr.mxu0 0.0
      %647 = vmatpush2.xpose.msra.mxu0 0.0
      %648 = vmatprep.subr.mxu0 0.0
      %649 = vmatpush2.xpose.msra.mxu0 0.0
      %650 = vmatprep.subr.mxu0 0.0
      %651 = vmatpush2.xpose.msra.mxu0 0.0
      %652 = vmatprep.subr.mxu0 0.0
      %653 = vmatpush2.xpose.msra.mxu0 0.0
      %654 = vmatprep.subr.mxu0 0.0
      %655 = vmatpush2.xpose.msra.mxu0 0.0
      %656 = vmatprep.subr.mxu0 0.0
      %657 = vmatpush2.xpose.msra.mxu0 0.0
      %658 = vmatprep.subr.mxu0 0.0
      %659 = vmatpush2.xpose.msra.mxu0 0.0
      %660 = vmatprep.subr.mxu0 0.0
      %661 = vmatpush2.xpose.msra.mxu0 0.0
      %662 = vmatprep.subr.mxu0 0.0
      %663 = vmatpush2.xpose.msra.mxu0 0.0
      %664 = vmatprep.subr.mxu0 0.0
      %665 = vmatpush2.xpose.msra.mxu0 0.0
      %666 = vmatprep.subr.mxu0 0.0
      %667 = vmatpush2.xpose.msra.mxu0 0.0
      %668 = vmatprep.subr.mxu0 0.0
      %669 = vmatpush2.xpose.msra.mxu0 0.0
      %670 = vmatprep.subr.mxu0 0.0
      %671 = vmatpush2.xpose.msra.mxu0 0.0
      %672 = vmatprep.subr.mxu0 0.0
      %673 = vmatpush2.xpose.msra.mxu0 0.0
      %674 = vmatprep.mubr.f32.mxu0 0.0
      %675 = vmatmul.mubr.f32.gmra.mxu0 %v604
      %v676 = vpop.f32.mrf.mxu0
      %v677 = vadd.f32 0.0, %v676
      %v678 = vpop.f32.mrf.mxu0
      %679 = vdwg.mxu0
      %v680 = vsel %vm247, %v677, -inf
      %681 = vmax.xlane.f32.xlu0 %v680
      %v682 = vpop.xlane.xlu0 %681
      %v683 = vsub.f32 %v677, %v682
      %v684 = vmul.f32 %v683, 1.442695
      %v685 = vpow.pop %v684
      %v686 = vsel %vm247, %v685, 0.0
      %687 = vadd.xlane.f32.xlu0 %v686
      %v688 = vpop.xlane.xlu0 %687
      %v689 = vrcp.pop %v688
      %v690 = vmul.f32 %v685, %v689
      %v691 = vpack.c.bf16 %v690, %v690
      %692 = vrot.lane.b32.xlu0 %v264, 72
      %v693 = vpop.permute.xlu0 %692
      %v695 = vsel %vm247, %v691, 0
      %v698 = vsel %vm270, %v693, 0
      %700 = vmatprep.subr.bf16.mxu0 0
      %701 = vmatpush1.bf16.msra.mxu0 0
      %702 = vmatprep.subr.bf16.mxu0 0
      %703 = vmatpush1.bf16.msra.mxu0 0
      %704 = vmatprep.subr.bf16.mxu0 0
      %705 = vmatpush1.bf16.msra.mxu0 0
      %706 = vmatprep.subr.bf16.mxu0 0
      %707 = vmatpush1.bf16.msra.mxu0 0
      %708 = vmatprep.subr.bf16.mxu0 0
      %709 = vmatpush1.bf16.msra.mxu0 0
      %710 = vmatprep.subr.bf16.mxu0 0
      %711 = vmatpush1.bf16.msra.mxu0 0
      %712 = vmatprep.subr.bf16.mxu0 0
      %713 = vmatpush1.bf16.msra.mxu0 0
      %714 = vmatprep.subr.bf16.mxu0 0
      %715 = vmatpush1.bf16.msra.mxu0 %v698
      %716 = vmatprep.subr.bf16.mxu0 0
      %717 = vmatpush2.bf16.msra.mxu0 0
      %718 = vmatprep.subr.bf16.mxu0 0
      %719 = vmatpush2.bf16.msra.mxu0 0
      %720 = vmatprep.subr.bf16.mxu0 0
      %721 = vmatpush2.bf16.msra.mxu0 0
      %722 = vmatprep.subr.bf16.mxu0 0
      %723 = vmatpush2.bf16.msra.mxu0 0
      %724 = vmatprep.subr.bf16.mxu0 0
      %725 = vmatpush2.bf16.msra.mxu0 0
      %726 = vmatprep.subr.bf16.mxu0 0
      %727 = vmatpush2.bf16.msra.mxu0 0
      %728 = vmatprep.subr.bf16.mxu0 0
      %729 = vmatpush2.bf16.msra.mxu0 0
      %730 = vmatprep.subr.bf16.mxu0 0
      %731 = vmatpush2.bf16.msra.mxu0 0
      %732 = vmatprep.mubr.bf16.mxu0 0
      %733 = vmatmul.mubr.bf16.gmra.mxu0 %v695
      %v734 = vpop.f32.mrf.mxu0
      %v735 = vadd.f32 0.0, %v734
      %v736 = vpop.f32.mrf.mxu0
      %v737 = vpop.f32.mrf.mxu0
      %v738 = vpop.f32.mrf.mxu0
      %739 = vdwg.mxu0
      %741 = vrot.lane.b32.xlu0 %v451, 8
      %v742 = vpop.permute.xlu0 %741
      %745 = vrot.lane.b32.xlu0 %v593, 16
      %v746 = vpop.permute.xlu0 %745
      %749 = vrot.lane.b32.xlu0 %v735, 24
      %v750 = vpop.permute.xlu0 %749
      %v752 = vsel %vm167, %v309, %v742
      %vm753 = vcmask 130048
      %v754 = vsel %vm753, %v752, %v746
      %vm755 = vcmask 195584
      %v756 = vsel %vm755, %v754, %v750
      %v757 = vpack.c.bf16 %v756, %v756
      %vm758 = vcmask 257024
      %759 = vst.msk [vmem:[%s158] sm:$0xf] %vm758, %v757
      %p760 = scmp.lt.s32.totalorder %s13, 1
      %s761 = scalar_select %p760, %s13, 1
      %s762 = smul.addr %s761, 4
      %s763 = scalar_lea.vmem %s2, %s762
      // Predicated region
      $region29: #{gpt_decoder_forward.24} parent=27 // pred_check
        %p764 = pneg %p83
      $region30: #{gpt_decoder_forward.24} parent=27 // pred_check_branch
        %766 = sbr.rel (%p764) target = $region32
      $region31: #{gpt_decoder_forward.24} parent=27 // pred_region
        _
      $region32: #{gpt_decoder_forward.24} parent=27 // pred_fallthru
        _
    $region28: #{gpt_decoder_forward.24} parent=5 // pred_fallthru
      _
    %p767 = scmp.le.s32.totalorder 2, %s8
    // Predicated region
    $region33: #{gpt_decoder_forward.24} parent=5 // pred_check
      %p768 = pneg %p767
    $region34: #{gpt_decoder_forward.24} parent=5 // pred_check_branch
      %770 = sbr.rel (%p768) target = $region36
    $region35: #{gpt_decoder_forward.24} parent=5 // pred_region
      %s771 = ssub.s32 %s8, 2
      // Predicated region
      $region37: #{gpt_decoder_forward.24} parent=35 // pred_check
        %p772 = pneg %p89
      $region38: #{gpt_decoder_forward.24} parent=35 // pred_check_branch
        %774 = sbr.rel (%p772) target = $region40
      $region39: #{gpt_decoder_forward.24} parent=35 // pred_region
        %p775 = scmp.lt.s32.totalorder %s14, 1
        %s776 = scalar_select %p775, %s14, 1
        %s777 = smul.addr %s776, 4
        %s778 = scalar_lea.vmem %s2, %s777
      $region40: #{gpt_decoder_forward.24} parent=35 // pred_fallthru
        _
    $region36: #{gpt_decoder_forward.24} parent=5 // pred_fallthru
      _
  $region6: #{gpt_decoder_forward.24} parent=0 // loop_footer
    %s12 = sadd.s32 1, %s8
  $region7: #{gpt_decoder_forward.24} parent=0 // loop_footer_branch
    %7 = sbr.rel target = $region3
  $region8: #{gpt_decoder_forward.24} parent=0 // loop_exit
    _

// kernel: gpt_decoder_forward.37
$region0: #{gpt_decoder_forward.37}
  #allocation0 [shape = 'u32[]', space=smem, size = 0x4, offset = 0x4, fixed_abs, tag = 'smem constant byte address 0x4 - core index']
  #allocation1 [shape = 'u32[144,128]{1,0:T(1,128)}', space=vmem, size = 0x12000, scoped, tag = 'internal scratch']
  #allocation2 [shape = 'f32[16,128]{1,0:T(8,128)}', space=vmem, size = 0x2000, scoped, tag = 'scratch operand']
  %s0 = inlined_call_operand.vmem [shape: bf16[16,32], index: 0, kind: input, shape index: {}]
  %s1 = inlined_call_operand.vmem [shape: bf16[32,128], index: 1, kind: input, shape index: {}]
  %s2 = inlined_call_operand.vmem [shape: f32[1,128], index: 2, kind: input, shape index: {}]
  %s3 = inlined_call_operand.hbm [shape: f32[16,128], index: 3, kind: output, shape index: {}]
  %s4 = sld [smem:[#allocation0]]
  $region30: #{gpt_decoder_forward.37} parent=0
    _
  %s6 = ssub.s32 1, %s4
  %s7 = scalar_select 0, %s6, %s4
  $region1: #{gpt_decoder_forward.37} parent=0
    #allocation3 [shape = 'u8[8192]{0}', space=vmem, size = 0x2000, scoped, tag = 'output window, operand 0, single buffered']
    #allocation4 [shape = 's32[1]{0}', space=sflag, size = 0x4, scoped, tag = 'scoped memory for gpt_decoder_forward.37']
    %8 = vsyncpa [#allocation4], 0
    // Predicated region
    $region2: #{gpt_decoder_forward.37} parent=1 // pred_check
      _
    $region3: #{gpt_decoder_forward.37} parent=1 // pred_check_branch
      %10 = sbr.rel (0) target = $region5
    $region4: #{gpt_decoder_forward.37} parent=1 // pred_region
      _
    $region5: #{gpt_decoder_forward.37} parent=1 // pred_fallthru
      _
    // Predicated region
    $region6: #{gpt_decoder_forward.37} parent=1 // pred_check
      _
    $region7: #{gpt_decoder_forward.37} parent=1 // pred_check_branch
      %12 = sbr.rel (0) target = $region9
    $region8: #{gpt_decoder_forward.37} parent=1 // pred_region
      _
    $region9: #{gpt_decoder_forward.37} parent=1 // pred_fallthru
      _
    // Predicated region
    $region10: #{gpt_decoder_forward.37} parent=1 // pred_check
      _
    $region11: #{gpt_decoder_forward.37} parent=1 // pred_check_branch
      %14 = sbr.rel (0) target = $region13
    $region12: #{gpt_decoder_forward.37} parent=1 // pred_region
      _
    $region13: #{gpt_decoder_forward.37} parent=1 // pred_fallthru
      _
    %p16 = scmp.eq.s32.totalorder 0, 0
    // Predicated region
    $region14: #{gpt_decoder_forward.37} parent=1 // pred_check
      %p17 = pneg %p16
    $region15: #{gpt_decoder_forward.37} parent=1 // pred_check_branch
      %19 = sbr.rel (%p17) target = $region17
    $region16: #{gpt_decoder_forward.37} parent=1 // pred_region
      %20 = vst [vmem:[#allocation2] sm:$0xff] 0.0
      %21 = vst [vmem:[#allocation2 + $0x8] sm:$0xff] 0.0
    $region17: #{gpt_decoder_forward.37} parent=1 // pred_fallthru
      _
    %v22 = vld [vmem:[#allocation2] sm:$0xff]
    %v23 = vld [vmem:[#allocation2 + $0x8] sm:$0xff]
    %v24 = vld [vmem:[%s0] sm:$0xf]
    %v25 = vld [vmem:[%s0 + $0x4] sm:$0xf]
    %v26 = vld [vmem:[%s1] sm:$0xf]
    %v27 = vld [vmem:[%s1 + $0x4] sm:$0xf]
    %v28 = vld [vmem:[%s1 + $0x8] sm:$0xf]
    %v29 = vld [vmem:[%s1 + $0xc] sm:$0xf]
    %v32 = vunpack.c.l.b16 %v24
    %v33 = vunpack.c.l.b16 %v25
    %v34 = vpack.c.b16 %v33, %v32
    %v39 = vunpack.c.l.b16 %v26
    %v40 = vunpack.c.l.b16 %v27
    %v41 = vunpack.c.l.b16 %v28
    %v42 = vunpack.c.l.b16 %v29
    %v43 = vpack.c.b16 %v40, %v39
    %v44 = vpack.c.b16 %v42, %v41
    %vm47 = vcmask 261120
    %v49 = vsel %vm47, %v34, 0
    %51 = vmatprep.subr.bf16.mxu0 0
    %52 = vmatpush1.bf16.msra.mxu0 0
    %53 = vmatprep.subr.bf16.mxu0 0
    %54 = vmatpush1.bf16.msra.mxu0 0
    %55 = vmatprep.subr.bf16.mxu0 0
    %56 = vmatpush1.bf16.msra.mxu0 0
    %57 = vmatprep.subr.bf16.mxu0 0
    %58 = vmatpush1.bf16.msra.mxu0 0
    %59 = vmatprep.subr.bf16.mxu0 0
    %60 = vmatpush1.bf16.msra.mxu0 0
    %61 = vmatprep.subr.bf16.mxu0 0
    %62 = vmatpush1.bf16.msra.mxu0 0
    %63 = vmatprep.subr.bf16.mxu0 0
    %64 = vmatpush1.bf16.msra.mxu0 %v44
    %65 = vmatprep.subr.bf16.mxu0 0
    %66 = vmatpush1.bf16.msra.mxu0 %v43
    %67 = vmatprep.subr.bf16.mxu0 0
    %68 = vmatpush2.bf16.msra.mxu0 0
    %69 = vmatprep.subr.bf16.mxu0 0
    %70 = vmatpush2.bf16.msra.mxu0 0
    %71 = vmatprep.subr.bf16.mxu0 0
    %72 = vmatpush2.bf16.msra.mxu0 0
    %73 = vmatprep.subr.bf16.mxu0 0
    %74 = vmatpush2.bf16.msra.mxu0 0
    %75 = vmatprep.subr.bf16.mxu0 0
    %76 = vmatpush2.bf16.msra.mxu0 0
    %77 = vmatprep.subr.bf16.mxu0 0
    %78 = vmatpush2.bf16.msra.mxu0 0
    %79 = vmatprep.subr.bf16.mxu0 0
    %80 = vmatpush2.bf16.msra.mxu0 0
    %81 = vmatprep.subr.bf16.mxu0 0
    %82 = vmatpush2.bf16.msra.mxu0 0
    %83 = vmatprep.mubr.bf16.mxu0 0
    %84 = vmatmul.mubr.bf16.gmra.mxu0 %v49
    %v85 = vpop.f32.mrf.mxu0
    %v86 = vadd.f32 0.0, %v85
    %v87 = vpop.f32.mrf.mxu0
    %v88 = vpop.f32.mrf.mxu0
    %v89 = vadd.f32 0.0, %v88
    %v90 = vpop.f32.mrf.mxu0
    %91 = vdwg.mxu0
    %v92 = vadd.f32 %v22, %v86
    %v93 = vadd.f32 %v23, %v89
    %94 = vst [vmem:[#allocation2] sm:$0xff] %v92
    %95 = vst [vmem:[#allocation2 + $0x8] sm:$0xff] %v93
    // Predicated region
    $region18: #{gpt_decoder_forward.37} parent=1 // pred_check
      %p96 = pneg %p16
    $region19: #{gpt_decoder_forward.37} parent=1 // pred_check_branch
      %98 = sbr.rel (%p96) target = $region21
    $region20: #{gpt_decoder_forward.37} parent=1 // pred_region
      %v99 = vld [vmem:[#allocation2] sm:$0xff]
      %v100 = vld [vmem:[#allocation2 + $0x8] sm:$0xff]
      %v101 = vld [vmem:[%s2] sm:$0x1]
      %v103 = vlaneseq
      %v104 = vshrl.u32 %v103, 7
      %v105 = vsub.s32 0, %v104
      %v106 = vrot.slane %v101, %v105
      %v108 = vadd.f32 %v99, %v106
      %v109 = vadd.f32 %v100, %v106
      %110 = vst [vmem:[#allocation3] sm:$0xff] %v108
      %111 = vst [vmem:[#allocation3 + $0x8] sm:$0xff] %v109
    $region21: #{gpt_decoder_forward.37} parent=1 // pred_fallthru
      _
    // Predicated region
    $region22: #{gpt_decoder_forward.37} parent=1 // pred_check
      _
    $region23: #{gpt_decoder_forward.37} parent=1 // pred_check_branch
      %113 = sbr.rel (0) target = $region25
    $region24: #{gpt_decoder_forward.37} parent=1 // pred_region
      %s115 = ssub.s32 256, 256
      %116 = vsyncadd [#allocation4], %s115
      %s117 = sshll.u32 [#allocation3], 4
      %s118 = int_to_ptr.vmem [resolvable:$true] %s117
      %123 = dma.vmem_to_hbm [thread:$0]  %s118, 256, %s3, [#allocation4], 128, 128, 8
    $region25: #{gpt_decoder_forward.37} parent=1 // pred_fallthru
      _
    // Predicated region
    $region26: #{gpt_decoder_forward.37} parent=1 // pred_check
      _
    $region27: #{gpt_decoder_forward.37} parent=1 // pred_check_branch
      %125 = sbr.rel (0) target = $region29
    $region28: #{gpt_decoder_forward.37} parent=1 // pred_region
      %126 = dma.done [#allocation4], 256
    $region29: #{gpt_decoder_forward.37} parent=1 // pred_fallthru
      _
    %127 = vsyncpa [#allocation4], 1

// kernel: gpt_decoder_forward.27
$region0: #{gpt_decoder_forward.27}
  #allocation0 [shape = 'u32[]', space=smem, size = 0x4, offset = 0x4, fixed_abs, tag = 'smem constant byte address 0x4 - core index']
  #allocation1 [shape = 'u32[144,128]{1,0:T(1,128)}', space=vmem, size = 0x12000, scoped, tag = 'internal scratch']
  #allocation2 [shape = 'f32[16,32]{1,0:T(8,128)}', space=vmem, size = 0x2000, scoped, tag = 'scratch operand']
  %s0 = inlined_call_operand.vmem [shape: bf16[16,64], index: 0, kind: input, shape index: {}]
  %s1 = inlined_call_operand.vmem [shape: bf16[64,32], index: 1, kind: input, shape index: {}]
  %s2 = inlined_call_operand.vmem [shape: f32[1,32], index: 2, kind: input, shape index: {}]
  %s3 = inlined_call_operand.vmem [shape: bf16[16,32], index: 3, kind: input, shape index: {}]
  %s4 = inlined_call_operand.vmem [shape: f32[1,32], index: 4, kind: input, shape index: {}]
  %s5 = inlined_call_operand.vmem [shape: f32[1,32], index: 5, kind: input, shape index: {}]
  %s6 = inlined_call_operand.vmem [shape: bf16[16,32], index: 6, kind: output, shape index: {}]
  %s7 = sld [smem:[#allocation0]]
  $region42: #{gpt_decoder_forward.27} parent=0
    _
  %s9 = ssub.s32 1, %s7
  %s10 = scalar_select 0, %s9, %s7
  // Predicated region
  $region2: #{gpt_decoder_forward.27} parent=0 // pred_check
    _
  $region3: #{gpt_decoder_forward.27} parent=0 // pred_check_branch
    %12 = sbr.rel (0) target = $region5
  $region4: #{gpt_decoder_forward.27} parent=0 // pred_region
    _
  $region5: #{gpt_decoder_forward.27} parent=0 // pred_fallthru
    _
  // Predicated region
  $region6: #{gpt_decoder_forward.27} parent=0 // pred_check
    _
  $region7: #{gpt_decoder_forward.27} parent=0 // pred_check_branch
    %14 = sbr.rel (0) target = $region9
  $region8: #{gpt_decoder_forward.27} parent=0 // pred_region
    _
  $region9: #{gpt_decoder_forward.27} parent=0 // pred_fallthru
    _
  // Predicated region
  $region10: #{gpt_decoder_forward.27} parent=0 // pred_check
    _
  $region11: #{gpt_decoder_forward.27} parent=0 // pred_check_branch
    %16 = sbr.rel (0) target = $region13
  $region12: #{gpt_decoder_forward.27} parent=0 // pred_region
    _
  $region13: #{gpt_decoder_forward.27} parent=0 // pred_fallthru
    _
  // Predicated region
  $region14: #{gpt_decoder_forward.27} parent=0 // pred_check
    _
  $region15: #{gpt_decoder_forward.27} parent=0 // pred_check_branch
    %18 = sbr.rel (0) target = $region17
  $region16: #{gpt_decoder_forward.27} parent=0 // pred_region
    _
  $region17: #{gpt_decoder_forward.27} parent=0 // pred_fallthru
    _
  // Predicated region
  $region18: #{gpt_decoder_forward.27} parent=0 // pred_check
    _
  $region19: #{gpt_decoder_forward.27} parent=0 // pred_check_branch
    %20 = sbr.rel (0) target = $region21
  $region20: #{gpt_decoder_forward.27} parent=0 // pred_region
    _
  $region21: #{gpt_decoder_forward.27} parent=0 // pred_fallthru
    _
  // Predicated region
  $region22: #{gpt_decoder_forward.27} parent=0 // pred_check
    _
  $region23: #{gpt_decoder_forward.27} parent=0 // pred_check_branch
    %22 = sbr.rel (0) target = $region25
  $region24: #{gpt_decoder_forward.27} parent=0 // pred_region
    _
  $region25: #{gpt_decoder_forward.27} parent=0 // pred_fallthru
    _
  %p24 = scmp.eq.s32.totalorder 0, 0
  // Predicated region
  $region26: #{gpt_decoder_forward.27} parent=0 // pred_check
    %p25 = pneg %p24
  $region27: #{gpt_decoder_forward.27} parent=0 // pred_check_branch
    %27 = sbr.rel (%p25) target = $region29
  $region28: #{gpt_decoder_forward.27} parent=0 // pred_region
    %vm28 = vcmask 261120
    %29 = vst.msk [vmem:[#allocation2] sm:$0xff] %vm28, 0.0
    %30 = vst.msk [vmem:[#allocation2 + $0x8] sm:$0xff] %vm28, 0.0
  $region29: #{gpt_decoder_forward.27} parent=0 // pred_fallthru
    _
  %v31 = vld [vmem:[#allocation2] sm:$0xff]
  %v32 = vld [vmem:[#allocation2 + $0x8] sm:$0xff]
  %v33 = vld [vmem:[%s0] sm:$0xf]
  %v34 = vld [vmem:[%s0 + $0x4] sm:$0xf]
  %v35 = vld [vmem:[%s1] sm:$0xf]
  %v36 = vld [vmem:[%s1 + $0x4] sm:$0xf]
  %v37 = vld [vmem:[%s1 + $0x8] sm:$0xf]
  %v38 = vld [vmem:[%s1 + $0xc] sm:$0xf]
  %v39 = vld [vmem:[%s1 + $0x10] sm:$0xf]
  %v40 = vld [vmem:[%s1 + $0x14] sm:$0xf]
  %v41 = vld [vmem:[%s1 + $0x18] sm:$0xf]
  %v42 = vld [vmem:[%s1 + $0x1c] sm:$0xf]
  %v45 = vunpack.c.l.b16 %v33
  %v46 = vunpack.c.l.b16 %v34
  %v47 = vpack.c.b16 %v46, %v45
  %v56 = vunpack.c.l.b16 %v35
  %v57 = vunpack.c.l.b16 %v36
  %v58 = vunpack.c.l.b16 %v37
  %v59 = vunpack.c.l.b16 %v38
  %v60 = vunpack.c.l.b16 %v39
  %v61 = vunpack.c.l.b16 %v40
  %v62 = vunpack.c.l.b16 %v41
  %v63 = vunpack.c.l.b16 %v42
  %v64 = vpack.c.b16 %v57, %v56
  %v65 = vpack.c.b16 %v59, %v58
  %v66 = vpack.c.b16 %v61, %v60
  %v67 = vpack.c.b16 %v63, %v62
  %vm72 = vcmask 523264
  %v74 = vsel %vm72, %v47, 0
  %76 = vmatprep.subr.bf16.mxu0 0
  %77 = vmatpush1.bf16.msra.mxu0 0
  %78 = vmatprep.subr.bf16.mxu0 0
  %79 = vmatpush1.bf16.msra.mxu0 0
  %80 = vmatprep.subr.bf16.mxu0 0
  %81 = vmatpush1.bf16.msra.mxu0 0
  %82 = vmatprep.subr.bf16.mxu0 0
  %83 = vmatpush1.bf16.msra.mxu0 0
  %84 = vmatprep.subr.bf16.mxu0 0
  %85 = vmatpush1.bf16.msra.mxu0 %v67
  %86 = vmatprep.subr.bf16.mxu0 0
  %87 = vmatpush1.bf16.msra.mxu0 %v66
  %88 = vmatprep.subr.bf16.mxu0 0
  %89 = vmatpush1.bf16.msra.mxu0 %v65
  %90 = vmatprep.subr.bf16.mxu0 0
  %91 = vmatpush1.bf16.msra.mxu0 %v64
  %92 = vmatprep.subr.bf16.mxu0 0
  %93 = vmatpush2.bf16.msra.mxu0 0
  %94 = vmatprep.subr.bf16.mxu0 0
  %95 = vmatpush2.bf16.msra.mxu0 0
  %96 = vmatprep.subr.bf16.mxu0 0
  %97 = vmatpush2.bf16.msra.mxu0 0
  %98 = vmatprep.subr.bf16.mxu0 0
  %99 = vmatpush2.bf16.msra.mxu0 0
  %100 = vmatprep.subr.bf16.mxu0 0
  %101 = vmatpush2.bf16.msra.mxu0 0
  %102 = vmatprep.subr.bf16.mxu0 0
  %103 = vmatpush2.bf16.msra.mxu0 0
  %104 = vmatprep.subr.bf16.mxu0 0
  %105 = vmatpush2.bf16.msra.mxu0 0
  %106 = vmatprep.subr.bf16.mxu0 0
  %107 = vmatpush2.bf16.msra.mxu0 0
  %108 = vmatprep.mubr.bf16.mxu0 0
  %109 = vmatmul.mubr.bf16.gmra.mxu0 %v74
  %v110 = vpop.f32.mrf.mxu0
  %v111 = vadd.f32 0.0, %v110
  %v112 = vpop.f32.mrf.mxu0
  %v113 = vpop.f32.mrf.mxu0
  %v114 = vadd.f32 0.0, %v113
  %v115 = vpop.f32.mrf.mxu0
  %116 = vdwg.mxu0
  %v117 = vadd.f32 %v31, %v111
  %v118 = vadd.f32 %v32, %v114
  %vm119 = vcmask 261120
  %120 = vst.msk [vmem:[#allocation2] sm:$0xff] %vm119, %v117
  %121 = vst.msk [vmem:[#allocation2 + $0x8] sm:$0xff] %vm119, %v118
  // Predicated region
  $region30: #{gpt_decoder_forward.27} parent=0 // pred_check
    %p122 = pneg %p24
  $region31: #{gpt_decoder_forward.27} parent=0 // pred_check_branch
    %124 = sbr.rel (%p122) target = $region33
  $region32: #{gpt_decoder_forward.27} parent=0 // pred_region
    %v125 = vld [vmem:[#allocation2] sm:$0xff]
    %v126 = vld [vmem:[#allocation2 + $0x8] sm:$0xff]
    %v127 = vld [vmem:[%s2] sm:$0x1]
    %v129 = vlaneseq
    %v130 = vshrl.u32 %v129, 7
    %v131 = vsub.s32 0, %v130
    %v132 = vrot.slane %v127, %v131
    %v134 = vadd.f32 %v125, %v132
    %v135 = vadd.f32 %v126, %v132
    %v136 = vld [vmem:[%s3] sm:$0xf]
    %v137 = vld [vmem:[%s3 + $0x4] sm:$0xf]
    %v138 = vunpack.c.l.bf16 %v136
    %v139 = vunpack.c.l.bf16 %v137
    %v140 = vadd.f32 %v134, %v138
    %v141 = vadd.f32 %v135, %v139
    %v142 = vsel %vm119, %v140, 0.0
    %143 = vadd.xlane.f32.xlu0 %v142
    %v144 = vpop.xlane.xlu0 %143
    %v145 = vsel %vm119, %v141, 0.0
    %146 = vadd.xlane.f32.xlu0 %v145
    %v147 = vpop.xlane.xlu0 %146
    %v148 = vrcp.pop 32.0
    %v149 = vmul.f32 %v144, %v148
    %v150 = vmul.f32 %v147, %v148
    %v151 = vmul.f32 %v140, %v140
    %v152 = vmul.f32 %v141, %v141
    %v153 = vsel %vm119, %v151, 0.0
    %154 = vadd.xlane.f32.xlu0 %v153
    %v155 = vpop.xlane.xlu0 %154
    %v156 = vsel %vm119, %v152, 0.0
    %157 = vadd.xlane.f32.xlu0 %v156
    %v158 = vpop.xlane.xlu0 %157
    %v159 = vmul.f32 %v155, %v148
    %v160 = vmul.f32 %v158, %v148
    %v161 = vmul.f32 %v149, %v149
    %v162 = vmul.f32 %v150, %v150
    %v163 = vsub.f32 %v159, %v161
    %v164 = vsub.f32 %v160, %v162
    %v165 = vsub.f32 %v140, %v149
    %v166 = vsub.f32 %v141, %v150
    %v167 = vadd.f32 %v163, 1e-05
    %v168 = vadd.f32 %v164, 1e-05
    %v169 = vrsqrt.pop %v167
    %v170 = vrsqrt.pop %v168
    %v171 = vmul.f32 %v165, %v169
    %v172 = vmul.f32 %v166, %v170
    %v173 = vld [vmem:[%s4] sm:$0x1]
    %v175 = vlaneseq
    %v176 = vshrl.u32 %v175, 7
    %v177 = vsub.s32 0, %v176
    %v178 = vrot.slane %v173, %v177
    %v180 = vmul.f32 %v171, %v178
    %v181 = vmul.f32 %v172, %v178
    %v182 = vld [vmem:[%s5] sm:$0x1]
    %v184 = vlaneseq
    %v185 = vshrl.u32 %v184, 7
    %v186 = vsub.s32 0, %v185
    %v187 = vrot.slane %v182, %v186
    %v189 = vadd.f32 %v180, %v187
    %v190 = vadd.f32 %v181, %v187
    %v191 = vpack.c.bf16 %v190, %v189
    %v193 = vunpack.c.l.b16 %v191
    %v194 = vunpack.c.h.b16 %v191
    %v195 = vpack.c.b16 %v193, %v193
    %v196 = vpack.c.b16 %v194, %v194
    %vm199 = vcmask 257024
    %200 = vst.msk [vmem:[%s6] sm:$0xf] %vm199, %v195
    %201 = vst.msk [vmem:[%s6 + $0x4] sm:$0xf] %vm199, %v196
  $region33: #{gpt_decoder_forward.27} parent=0 // pred_fallthru
    _
  // Predicated region
  $region34: #{gpt_decoder_forward.27} parent=0 // pred_check
    _
  $region35: #{gpt_decoder_forward.27} parent=0 // pred_check_branch
    %203 = sbr.rel (0) target = $region37
  $region36: #{gpt_decoder_forward.27} parent=0 // pred_region
    _
  $region37: #{gpt_decoder_forward.27} parent=0 // pred_fallthru
    _
  // Predicated region
  $region38: #{gpt_decoder_forward.27} parent=0 // pred_check
    _
  $region39: #{gpt_decoder_forward.27} parent=0 // pred_check_branch
    %205 = sbr.rel (0) target = $region41
  $region40: #{gpt_decoder_forward.27} parent=0 // pred_region
    _
  $region41: #{gpt_decoder_forward.27} parent=0 // pred_fallthru
    _

</llo_original>
